<compile_context>
chip_gen: v6e
topology: v6e:2x2x1
jax: 0.10.0
libtpu: 0.0.40
codegen_flags: <defaults>
</compile_context>

<pallas_src>
import functools

import jax
import jax.numpy as jnp
from jax.experimental import pallas as pl
from jax.experimental.pallas import tpu as pltpu

EPS = 1e-5


def _bottleneck_kernel(Nb, H, W, Cin, P, Cout, cdt,
                       x_ref, w1_ref, b1_ref, w2_ref, b2_ref, w3_ref, b3_ref,
                       o_ref, pad_ref):
    rows = Nb * H * W

    # ---- conv1 (1x1, BN scale folded into w1) + bias + relu -----------------
    xm = x_ref[...].reshape(rows, Cin).astype(cdt)
    h1 = jnp.dot(xm, w1_ref[...], preferred_element_type=jnp.float32)
    h1 = jnp.maximum(h1 + b1_ref[...], 0.0)                       # (rows, P) f32

    # ---- conv2 (3x3, stride=1, pad=1) ----------------------------------------
    # Padded scratch in the compute dtype (bf16 by default).  Only the halo is
    # zeroed, every step: the interior is fully overwritten, and re-zeroing
    # keeps this correct when the "parallel" grid axis is sharded across
    # TensorCores (a core's first iteration may have program_id > 0).
    zero_row = jnp.zeros((Nb, 1, W + 2, P), cdt)
    zero_col = jnp.zeros((Nb, H, 1, P), cdt)
    pad_ref[:, 0:1, :, :] = zero_row
    pad_ref[:, H + 1:H + 2, :, :] = zero_row
    pad_ref[:, 1:H + 1, 0:1, :] = zero_col
    pad_ref[:, 1:H + 1, W + 1:W + 2, :] = zero_col
    pad_ref[:, 1:H + 1, 1:W + 1, :] = h1.reshape(Nb, H, W, P).astype(cdt)

    # Direct accumulation over the nine taps: the old im2col *store* pass
    # (single vst slot) becomes shifted *loads* (3 vld slots), and no
    # (rows, 9P) buffer or cast pass is materialized.
    # TODO(synk): for P that is a multiple of 128, a fused K=9P im2col matmul
    #             (lane-aligned taps) may feed the MXU better; benchmark both.
    h2 = jnp.zeros((rows, P), jnp.float32)
    for k in range(9):                                             # static unroll
        dy, dx = k // 3, k % 3
        tap = pad_ref[:, dy:dy + H, dx:dx + W, :].reshape(rows, P)
        h2 = h2 + jnp.dot(tap, w2_ref[k], preferred_element_type=jnp.float32)
    h2 = jnp.maximum(h2 + b2_ref[...], 0.0)                        # (rows, P) f32

    # ---- conv3 (1x1) + bias + identity residual + relu -----------------------
    h3 = jnp.dot(h2.astype(cdt), w3_ref[...], preferred_element_type=jnp.float32)
    res = x_ref[...].reshape(rows, Cout).astype(jnp.float32)       # deferred read
    out = jnp.maximum(h3 + b3_ref[...] + res, 0.0)
    o_ref[...] = out.reshape(Nb, H, W, Cout).astype(o_ref.dtype)


def _fold_bn(bn):
    gamma, beta, mean, var = bn
    scale = gamma / jnp.sqrt(var + EPS)
    bias = beta - mean * scale
    return scale, bias                                             # (C,) each


def _pick_block_n(N, H, W, target_rows=1024, min_grid_steps=4):
    """Largest batch-block whose rows fit `target_rows` while keeping at least
    `min_grid_steps` grid steps (>= 2 per TensorCore on v7x megacore)."""
    divisors = [d for d in range(1, N + 1) if N % d == 0]
    candidates = [d for d in divisors if (N // d) >= min(min_grid_steps, N)]
    fitting = [d for d in candidates if d * H * W <= target_rows]
    return max(fitting) if fitting else min(candidates)


def _vmem_limit_bytes(Nb, H, W, Cin, P, Cout, cdt, io_dtype):
    """Scoped-VMEM limit derived from the actual buffers, capped per chip."""
    cbytes = jnp.dtype(cdt).itemsize
    iobytes = jnp.dtype(io_dtype).itemsize
    io_blocks = 2 * Nb * H * W * (Cin + Cout) * iobytes            # x/out, double-buffered
    weights = 2 * ((Cin * P + 9 * P * P + P * Cout) * cbytes
                   + (2 * P + Cout) * 4)                            # double-buffered by BlockSpec
    pad = Nb * (H + 2) * (W + 2) * P * cbytes                       # conv2 scratch
    live = 4 * Nb * H * W * (2 * P + Cout) * 4                      # f32 temporaries (generous)
    needed = io_blocks + weights + pad + live + (8 << 20)           # + compiler headroom
    try:
        cap = pltpu.get_tpu_info().vmem_capacity_bytes              # 128 MiB v5e/v6e, 64 MiB v7x
    except Exception:
        cap = 64 << 20                                              # conservative (v7x per core)
    return int(min(max(needed, 32 << 20), cap * 3 // 4))


def bottleneck_forward_nhwc(x_nhwc, params, *, block_n=None, compute_dtype=None,
                            target_rows=1024):
    """Bottleneck forward (stride=1, identity residual) on NHWC activations."""
    N, H, W, Cin = x_nhwc.shape
    P = params["w1"].shape[1]
    Cout = params["w3"].shape[1]
    assert Cin == Cout, "identity residual requires inplanes == 4*planes"

    # bf16 MXU operands by default (~3x+ MXU rate vs f32 on all generations);
    # accumulation, bias, residual and relu stay in f32.
    cdt = jnp.bfloat16 if compute_dtype is None else compute_dtype
    # TODO(synk): fp8 operands on v7x (scales already folded per channel) could
    #             roughly double MXU rate; needs accuracy validation.

    # Fold BN (eval mode) into the conv weights (scale) and a bias per channel.
    s1, b1 = _fold_bn(params["bn1"])
    s2, b2 = _fold_bn(params["bn2"])
    s3, b3 = _fold_bn(params["bn3"])
    w1f = (params["w1"] * s1[None, :]).astype(cdt)                         # (Cin, P)
    w2f = (params["w2"].reshape(9, P, P) * s2[None, None, :]).astype(cdt)  # (9, P, P)
    w3f = (params["w3"] * s3[None, :]).astype(cdt)                         # (P, Cout)
    b1 = b1.reshape(1, P).astype(jnp.float32)
    b2 = b2.reshape(1, P).astype(jnp.float32)
    b3 = b3.reshape(1, Cout).astype(jnp.float32)

    Nb = block_n if block_n is not None else _pick_block_n(N, H, W, target_rows)
    assert N % Nb == 0, "batch must be divisible by the per-step block"

    kernel = functools.partial(_bottleneck_kernel, Nb, H, W, Cin, P, Cout, cdt)
    # TODO(synk): for P < 128, fold spatial positions onto the lane axis
    #             (e.g. view intermediates as (rows/4, 4*P)) to fill all 128
    #             lanes / MXU columns; biggest remaining lever for small P.
    # TODO(synk): single-buffer the grid-invariant weight/bias inputs
    #             (pipeline_mode=pl.Buffered(1)) when P is large enough for the
    #             wasted second buffer to matter against v7x's 64 MiB VMEM.
    out = pl.pallas_call(
        kernel,
        out_shape=jax.ShapeDtypeStruct((N, H, W, Cout), x_nhwc.dtype),
        grid_spec=pltpu.PrefetchScalarGridSpec(
            num_scalar_prefetch=0,
            grid=(N // Nb,),
            in_specs=[
                pl.BlockSpec((Nb, H, W, Cin), lambda n: (n, 0, 0, 0)),
                pl.BlockSpec((Cin, P), lambda n: (0, 0)),
                pl.BlockSpec((1, P), lambda n: (0, 0)),
                pl.BlockSpec((9, P, P), lambda n: (0, 0, 0)),
                pl.BlockSpec((1, P), lambda n: (0, 0)),
                pl.BlockSpec((P, Cout), lambda n: (0, 0)),
                pl.BlockSpec((1, Cout), lambda n: (0, 0)),
            ],
            out_specs=pl.BlockSpec((Nb, H, W, Cout), lambda n: (n, 0, 0, 0)),
            scratch_shapes=[
                pltpu.VMEM((Nb, H + 2, W + 2, P), cdt),   # conv2 padded input
            ],
        ),
        compiler_params=pltpu.CompilerParams(
            dimension_semantics=("parallel",),            # independent images
            vmem_limit_bytes=_vmem_limit_bytes(Nb, H, W, Cin, P, Cout, cdt,
                                               x_nhwc.dtype),
        ),
    )(x_nhwc, w1f, b1, w2f, b2, w3f, b3)
    return out


def bottleneck_forward(x_nchw, params, **kwargs):
    """PyTorch-layout wrapper: NCHW in / NCHW out (transposes at the boundary)."""
    x = jnp.transpose(x_nchw, (0, 2, 3, 1))
    out = bottleneck_forward_nhwc(x, params, **kwargs)
    return jnp.transpose(out, (0, 3, 1, 2))


def init_params(key, inplanes, planes, dtype=jnp.float32):
    """Deterministic synthetic parameters matching Bottleneck.__init__ shapes."""
    expansion = 4
    keys = jax.random.split(key, 6)

    def conv_w(k, shape, fan_in):
        return jax.random.normal(k, shape, dtype) / jnp.sqrt(jnp.asarray(fan_in, dtype))

    def bn(k, c):
        k1, k2, k3, k4 = jax.random.split(k, 4)
        gamma = 0.5 + jax.random.uniform(k1, (c,), dtype)
        beta = 0.1 * jax.random.normal(k2, (c,), dtype)
        mean = 0.1 * jax.random.normal(k3, (c,), dtype)
        var = 0.5 + jax.random.uniform(k4, (c,), dtype)
        return gamma, beta, mean, var

    return dict(
        w1=conv_w(keys[0], (inplanes, planes), inplanes),           # conv1 1x1 (Cin, P)
        w2=conv_w(keys[1], (3, 3, planes, planes), 9 * planes),     # conv2 3x3 HWIO
        w3=conv_w(keys[2], (planes, planes * expansion), planes),   # conv3 1x1 (P, 4P)
        bn1=bn(keys[3], planes),
        bn2=bn(keys[4], planes),
        bn3=bn(keys[5], planes * expansion),
    )


def ref_forward(x_nchw, params):
    """Pure-JAX reference (eval-mode BN) for correctness checking."""
    x = jnp.transpose(x_nchw, (0, 2, 3, 1))
    s1, b1 = _fold_bn(params["bn1"])
    s2, b2 = _fold_bn(params["bn2"])
    s3, b3 = _fold_bn(params["bn3"])
    h = jnp.einsum("nhwc,cp->nhwp", x, params["w1"])
    h = jnp.maximum(h * s1 + b1, 0.0)
    h = jax.lax.conv_general_dilated(
        h, params["w2"], window_strides=(1, 1), padding="SAME",
        dimension_numbers=("NHWC", "HWIO", "NHWC"))
    h = jnp.maximum(h * s2 + b2, 0.0)
    h = jnp.einsum("nhwp,pq->nhwq", h, params["w3"])
    h = jnp.maximum(h * s3 + b3 + x, 0.0)
    return jnp.transpose(h, (0, 3, 1, 2))


if __name__ == "__main__":
    key = jax.random.PRNGKey(0)
    kx, kp = jax.random.split(key)

    # batch=8, inplanes=128, planes=32 (expansion 4 -> 128 out), 8x8 spatial.
    N, inplanes, planes, H, W = 8, 128, 32, 8, 8
    x = jax.random.normal(kx, (N, inplanes, H, W), jnp.float32)
    params = init_params(kp, inplanes, planes)

    ref = ref_forward(x, params)

    # Default path: bf16 MXU operands, f32 accumulation / epilogue.
    out = jax.block_until_ready(bottleneck_forward(x, params))
    assert out.shape == (N, planes * 4, H, W)
    err_bf16 = float(jnp.max(jnp.abs(out - ref)))
    assert err_bf16 < 0.5, f"bf16 max abs err = {err_bf16}"

    # f32 opt-in path.  Structural check with a modest tolerance: TPU f32
    # matmuls may run as bf16 MXU passes at default precision (both here and
    # in the XLA reference), so exact f32 agreement is not guaranteed.
    out_f32 = jax.block_until_ready(
        bottleneck_forward(x, params, compute_dtype=jnp.float32))
    err_f32 = float(jnp.max(jnp.abs(out_f32 - ref)))
    assert err_f32 < 0.1, f"f32 max abs err = {err_f32}"

    print("KERNEL_OK")
</pallas_src>

<mosaic_0001>
module attributes {stable_mosaic.version = 11 : i64} {
  func.func @_bottleneck_kernel(%arg0: i32, %arg1: memref<2x8x8x128xf32, #tpu.memory_space<vmem>>, %arg2: memref<128x32xbf16, #tpu.memory_space<vmem>>, %arg3: memref<1x32xf32, #tpu.memory_space<vmem>>, %arg4: memref<9x32x32xbf16, #tpu.memory_space<vmem>>, %arg5: memref<1x32xf32, #tpu.memory_space<vmem>>, %arg6: memref<32x128xbf16, #tpu.memory_space<vmem>>, %arg7: memref<1x128xf32, #tpu.memory_space<vmem>>, %arg8: memref<2x8x8x128xf32, #tpu.memory_space<vmem>>, %arg9: memref<2x10x10x32xbf16, #tpu.memory_space<vmem>>) attributes {dimension_semantics = [#tpu.dimension_semantics<parallel>], iteration_bounds = array<i64: 4>, scalar_prefetch = 0 : i64, scratch_operands = 1 : i64, tpu.core_type = #tpu.core_type<tc>, window_params = [{transform_indices = @transform_0, window_bounds = array<i64: 2, 8, 8, 128>}, {pipeline_mode = #tpu.pipeline_mode<synchronous>, transform_indices = @transform_1, window_bounds = array<i64: 128, 32>}, {pipeline_mode = #tpu.pipeline_mode<synchronous>, transform_indices = @transform_2, window_bounds = array<i64: 1, 32>}, {pipeline_mode = #tpu.pipeline_mode<synchronous>, transform_indices = @transform_3, window_bounds = array<i64: 9, 32, 32>}, {pipeline_mode = #tpu.pipeline_mode<synchronous>, transform_indices = @transform_4, window_bounds = array<i64: 1, 32>}, {pipeline_mode = #tpu.pipeline_mode<synchronous>, transform_indices = @transform_5, window_bounds = array<i64: 32, 128>}, {pipeline_mode = #tpu.pipeline_mode<synchronous>, transform_indices = @transform_6, window_bounds = array<i64: 1, 128>}, {transform_indices = @transform_7, window_bounds = array<i64: 2, 8, 8, 128>}]} {
    %c0 = arith.constant 0 : index
    %c0_0 = arith.constant 0 : index
    %c0_1 = arith.constant 0 : index
    %c0_2 = arith.constant 0 : index
    %0 = vector.load %arg1[%c0, %c0_0, %c0_1, %c0_2] : memref<2x8x8x128xf32, #tpu.memory_space<vmem>>, vector<2x8x8x128xf32>
    %1 = vector.shape_cast %0 : vector<2x8x8x128xf32> to vector<128x128xf32>
    %2 = arith.truncf %1 : vector<128x128xf32> to vector<128x128xbf16>
    %c0_3 = arith.constant 0 : index
    %c0_4 = arith.constant 0 : index
    %3 = vector.load %arg2[%c0_3, %c0_4] : memref<128x32xbf16, #tpu.memory_space<vmem>>, vector<128x32xbf16>
    %cst = arith.constant dense<0.000000e+00> : vector<128x32xf32>
    %4 = tpu.matmul %2, %3, %cst {dimension_numbers = #tpu.dot_dimension_numbers<[1], [0], [0], [1], [0, 0, 1, 1], [], []>} : vector<128x128xbf16>, vector<128x32xbf16>, vector<128x32xf32> -> vector<128x32xf32>
    %c0_5 = arith.constant 0 : index
    %c0_6 = arith.constant 0 : index
    %5 = vector.load %arg3[%c0_5, %c0_6] : memref<1x32xf32, #tpu.memory_space<vmem>>, vector<1x32xf32>
    %6 = vector.broadcast %5 : vector<1x32xf32> to vector<128x32xf32>
    %7 = arith.addf %4, %6 : vector<128x32xf32>
    %cst_7 = arith.constant 0.000000e+00 : f32
    %8 = vector.broadcast %cst_7 : f32 to vector<128x32xf32>
    %9 = arith.maximumf %7, %8 : vector<128x32xf32>
    %cst_8 = arith.constant 0.000000e+00 : bf16
    %10 = vector.broadcast %cst_8 : bf16 to vector<2x1x10x32xbf16>
    %cst_9 = arith.constant 0.000000e+00 : bf16
    %11 = vector.broadcast %cst_9 : bf16 to vector<2x8x1x32xbf16>
    %c0_10 = arith.constant 0 : index
    %c0_11 = arith.constant 0 : index
    %c0_12 = arith.constant 0 : index
    %c0_13 = arith.constant 0 : index
    %12 = vector.load %arg9[%c0_10, %c0_11, %c0_12, %c0_13] : memref<2x10x10x32xbf16, #tpu.memory_space<vmem>>, vector<2x1x10x32xbf16>
    tpu.vector_store %arg9[%c0_10, %c0_11, %c0_12, %c0_13], %10 {strides = array<i32>} : memref<2x10x10x32xbf16, #tpu.memory_space<vmem>>, vector<2x1x10x32xbf16>,
    %c0_14 = arith.constant 0 : index
    %c9 = arith.constant 9 : index
    %c0_15 = arith.constant 0 : index
    %c0_16 = arith.constant 0 : index
    %13 = vector.load %arg9[%c0_14, %c9, %c0_15, %c0_16] : memref<2x10x10x32xbf16, #tpu.memory_space<vmem>>, vector<2x1x10x32xbf16>
    tpu.vector_store %arg9[%c0_14, %c9, %c0_15, %c0_16], %10 {strides = array<i32>} : memref<2x10x10x32xbf16, #tpu.memory_space<vmem>>, vector<2x1x10x32xbf16>,
    %c0_17 = arith.constant 0 : index
    %c1 = arith.constant 1 : index
    %c0_18 = arith.constant 0 : index
    %c0_19 = arith.constant 0 : index
    %14 = vector.load %arg9[%c0_17, %c1, %c0_18, %c0_19] : memref<2x10x10x32xbf16, #tpu.memory_space<vmem>>, vector<2x8x1x32xbf16>
    tpu.vector_store %arg9[%c0_17, %c1, %c0_18, %c0_19], %11 {strides = array<i32>} : memref<2x10x10x32xbf16, #tpu.memory_space<vmem>>, vector<2x8x1x32xbf16>,
    %c0_20 = arith.constant 0 : index
    %c1_21 = arith.constant 1 : index
    %c9_22 = arith.constant 9 : index
    %c0_23 = arith.constant 0 : index
    %15 = vector.load %arg9[%c0_20, %c1_21, %c9_22, %c0_23] : memref<2x10x10x32xbf16, #tpu.memory_space<vmem>>, vector<2x8x1x32xbf16>
    tpu.vector_store %arg9[%c0_20, %c1_21, %c9_22, %c0_23], %11 {strides = array<i32>} : memref<2x10x10x32xbf16, #tpu.memory_space<vmem>>, vector<2x8x1x32xbf16>,
    %16 = vector.shape_cast %9 : vector<128x32xf32> to vector<2x8x8x32xf32>
    %17 = arith.truncf %16 : vector<2x8x8x32xf32> to vector<2x8x8x32xbf16>
    %c0_24 = arith.constant 0 : index
    %c1_25 = arith.constant 1 : index
    %c1_26 = arith.constant 1 : index
    %c0_27 = arith.constant 0 : index
    %18 = vector.load %arg9[%c0_24, %c1_25, %c1_26, %c0_27] : memref<2x10x10x32xbf16, #tpu.memory_space<vmem>>, vector<2x8x8x32xbf16>
    tpu.vector_store %arg9[%c0_24, %c1_25, %c1_26, %c0_27], %17 {strides = array<i32>} : memref<2x10x10x32xbf16, #tpu.memory_space<vmem>>, vector<2x8x8x32xbf16>,
    %cst_28 = arith.constant 0.000000e+00 : f32
    %19 = vector.broadcast %cst_28 : f32 to vector<128x32xf32>
    %c0_29 = arith.constant 0 : index
    %c0_30 = arith.constant 0 : index
    %c0_31 = arith.constant 0 : index
    %c0_32 = arith.constant 0 : index
    %20 = vector.load %arg9[%c0_29, %c0_30, %c0_31, %c0_32] : memref<2x10x10x32xbf16, #tpu.memory_space<vmem>>, vector<2x8x8x32xbf16>
    %21 = vector.shape_cast %20 : vector<2x8x8x32xbf16> to vector<128x32xbf16>
    %c0_33 = arith.constant 0 : index
    %c0_34 = arith.constant 0 : index
    %c0_35 = arith.constant 0 : index
    %22 = vector.load %arg4[%c0_33, %c0_34, %c0_35] : memref<9x32x32xbf16, #tpu.memory_space<vmem>>, vector<1x32x32xbf16>
    %23 = vector.shape_cast %22 : vector<1x32x32xbf16> to vector<32x32xbf16>
    %cst_36 = arith.constant dense<0.000000e+00> : vector<128x32xf32>
    %24 = tpu.matmul %21, %23, %cst_36 {dimension_numbers = #tpu.dot_dimension_numbers<[1], [0], [0], [1], [0, 0, 1, 1], [], []>} : vector<128x32xbf16>, vector<32x32xbf16>, vector<128x32xf32> -> vector<128x32xf32>
    %25 = arith.addf %19, %24 : vector<128x32xf32>
    %c0_37 = arith.constant 0 : index
    %c0_38 = arith.constant 0 : index
    %c1_39 = arith.constant 1 : index
    %c0_40 = arith.constant 0 : index
    %26 = vector.load %arg9[%c0_37, %c0_38, %c1_39, %c0_40] : memref<2x10x10x32xbf16, #tpu.memory_space<vmem>>, vector<2x8x8x32xbf16>
    %27 = vector.shape_cast %26 : vector<2x8x8x32xbf16> to vector<128x32xbf16>
    %c1_41 = arith.constant 1 : index
    %c0_42 = arith.constant 0 : index
    %c0_43 = arith.constant 0 : index
    %28 = vector.load %arg4[%c1_41, %c0_42, %c0_43] : memref<9x32x32xbf16, #tpu.memory_space<vmem>>, vector<1x32x32xbf16>
    %29 = vector.shape_cast %28 : vector<1x32x32xbf16> to vector<32x32xbf16>
    %cst_44 = arith.constant dense<0.000000e+00> : vector<128x32xf32>
    %30 = tpu.matmul %27, %29, %cst_44 {dimension_numbers = #tpu.dot_dimension_numbers<[1], [0], [0], [1], [0, 0, 1, 1], [], []>} : vector<128x32xbf16>, vector<32x32xbf16>, vector<128x32xf32> -> vector<128x32xf32>
    %31 = arith.addf %25, %30 : vector<128x32xf32>
    %c0_45 = arith.constant 0 : index
    %c0_46 = arith.constant 0 : index
    %c2 = arith.constant 2 : index
    %c0_47 = arith.constant 0 : index
    %32 = vector.load %arg9[%c0_45, %c0_46, %c2, %c0_47] : memref<2x10x10x32xbf16, #tpu.memory_space<vmem>>, vector<2x8x8x32xbf16>
    %33 = vector.shape_cast %32 : vector<2x8x8x32xbf16> to vector<128x32xbf16>
    %c2_48 = arith.constant 2 : index
    %c0_49 = arith.constant 0 : index
    %c0_50 = arith.constant 0 : index
    %34 = vector.load %arg4[%c2_48, %c0_49, %c0_50] : memref<9x32x32xbf16, #tpu.memory_space<vmem>>, vector<1x32x32xbf16>
    %35 = vector.shape_cast %34 : vector<1x32x32xbf16> to vector<32x32xbf16>
    %cst_51 = arith.constant dense<0.000000e+00> : vector<128x32xf32>
    %36 = tpu.matmul %33, %35, %cst_51 {dimension_numbers = #tpu.dot_dimension_numbers<[1], [0], [0], [1], [0, 0, 1, 1], [], []>} : vector<128x32xbf16>, vector<32x32xbf16>, vector<128x32xf32> -> vector<128x32xf32>
    %37 = arith.addf %31, %36 : vector<128x32xf32>
    %c0_52 = arith.constant 0 : index
    %c1_53 = arith.constant 1 : index
    %c0_54 = arith.constant 0 : index
    %c0_55 = arith.constant 0 : index
    %38 = vector.load %arg9[%c0_52, %c1_53, %c0_54, %c0_55] : memref<2x10x10x32xbf16, #tpu.memory_space<vmem>>, vector<2x8x8x32xbf16>
    %39 = vector.shape_cast %38 : vector<2x8x8x32xbf16> to vector<128x32xbf16>
    %c3 = arith.constant 3 : index
    %c0_56 = arith.constant 0 : index
    %c0_57 = arith.constant 0 : index
    %40 = vector.load %arg4[%c3, %c0_56, %c0_57] : memref<9x32x32xbf16, #tpu.memory_space<vmem>>, vector<1x32x32xbf16>
    %41 = vector.shape_cast %40 : vector<1x32x32xbf16> to vector<32x32xbf16>
    %cst_58 = arith.constant dense<0.000000e+00> : vector<128x32xf32>
    %42 = tpu.matmul %39, %41, %cst_58 {dimension_numbers = #tpu.dot_dimension_numbers<[1], [0], [0], [1], [0, 0, 1, 1], [], []>} : vector<128x32xbf16>, vector<32x32xbf16>, vector<128x32xf32> -> vector<128x32xf32>
    %43 = arith.addf %37, %42 : vector<128x32xf32>
    %c0_59 = arith.constant 0 : index
    %c1_60 = arith.constant 1 : index
    %c1_61 = arith.constant 1 : index
    %c0_62 = arith.constant 0 : index
    %44 = vector.load %arg9[%c0_59, %c1_60, %c1_61, %c0_62] : memref<2x10x10x32xbf16, #tpu.memory_space<vmem>>, vector<2x8x8x32xbf16>
    %45 = vector.shape_cast %44 : vector<2x8x8x32xbf16> to vector<128x32xbf16>
    %c4 = arith.constant 4 : index
    %c0_63 = arith.constant 0 : index
    %c0_64 = arith.constant 0 : index
    %46 = vector.load %arg4[%c4, %c0_63, %c0_64] : memref<9x32x32xbf16, #tpu.memory_space<vmem>>, vector<1x32x32xbf16>
    %47 = vector.shape_cast %46 : vector<1x32x32xbf16> to vector<32x32xbf16>
    %cst_65 = arith.constant dense<0.000000e+00> : vector<128x32xf32>
    %48 = tpu.matmul %45, %47, %cst_65 {dimension_numbers = #tpu.dot_dimension_numbers<[1], [0], [0], [1], [0, 0, 1, 1], [], []>} : vector<128x32xbf16>, vector<32x32xbf16>, vector<128x32xf32> -> vector<128x32xf32>
    %49 = arith.addf %43, %48 : vector<128x32xf32>
    %c0_66 = arith.constant 0 : index
    %c1_67 = arith.constant 1 : index
    %c2_68 = arith.constant 2 : index
    %c0_69 = arith.constant 0 : index
    %50 = vector.load %arg9[%c0_66, %c1_67, %c2_68, %c0_69] : memref<2x10x10x32xbf16, #tpu.memory_space<vmem>>, vector<2x8x8x32xbf16>
    %51 = vector.shape_cast %50 : vector<2x8x8x32xbf16> to vector<128x32xbf16>
    %c5 = arith.constant 5 : index
    %c0_70 = arith.constant 0 : index
    %c0_71 = arith.constant 0 : index
    %52 = vector.load %arg4[%c5, %c0_70, %c0_71] : memref<9x32x32xbf16, #tpu.memory_space<vmem>>, vector<1x32x32xbf16>
    %53 = vector.shape_cast %52 : vector<1x32x32xbf16> to vector<32x32xbf16>
    %cst_72 = arith.constant dense<0.000000e+00> : vector<128x32xf32>
    %54 = tpu.matmul %51, %53, %cst_72 {dimension_numbers = #tpu.dot_dimension_numbers<[1], [0], [0], [1], [0, 0, 1, 1], [], []>} : vector<128x32xbf16>, vector<32x32xbf16>, vector<128x32xf32> -> vector<128x32xf32>
    %55 = arith.addf %49, %54 : vector<128x32xf32>
    %c0_73 = arith.constant 0 : index
    %c2_74 = arith.constant 2 : index
    %c0_75 = arith.constant 0 : index
    %c0_76 = arith.constant 0 : index
    %56 = vector.load %arg9[%c0_73, %c2_74, %c0_75, %c0_76] : memref<2x10x10x32xbf16, #tpu.memory_space<vmem>>, vector<2x8x8x32xbf16>
    %57 = vector.shape_cast %56 : vector<2x8x8x32xbf16> to vector<128x32xbf16>
    %c6 = arith.constant 6 : index
    %c0_77 = arith.constant 0 : index
    %c0_78 = arith.constant 0 : index
    %58 = vector.load %arg4[%c6, %c0_77, %c0_78] : memref<9x32x32xbf16, #tpu.memory_space<vmem>>, vector<1x32x32xbf16>
    %59 = vector.shape_cast %58 : vector<1x32x32xbf16> to vector<32x32xbf16>
    %cst_79 = arith.constant dense<0.000000e+00> : vector<128x32xf32>
    %60 = tpu.matmul %57, %59, %cst_79 {dimension_numbers = #tpu.dot_dimension_numbers<[1], [0], [0], [1], [0, 0, 1, 1], [], []>} : vector<128x32xbf16>, vector<32x32xbf16>, vector<128x32xf32> -> vector<128x32xf32>
    %61 = arith.addf %55, %60 : vector<128x32xf32>
    %c0_80 = arith.constant 0 : index
    %c2_81 = arith.constant 2 : index
    %c1_82 = arith.constant 1 : index
    %c0_83 = arith.constant 0 : index
    %62 = vector.load %arg9[%c0_80, %c2_81, %c1_82, %c0_83] : memref<2x10x10x32xbf16, #tpu.memory_space<vmem>>, vector<2x8x8x32xbf16>
    %63 = vector.shape_cast %62 : vector<2x8x8x32xbf16> to vector<128x32xbf16>
    %c7 = arith.constant 7 : index
    %c0_84 = arith.constant 0 : index
    %c0_85 = arith.constant 0 : index
    %64 = vector.load %arg4[%c7, %c0_84, %c0_85] : memref<9x32x32xbf16, #tpu.memory_space<vmem>>, vector<1x32x32xbf16>
    %65 = vector.shape_cast %64 : vector<1x32x32xbf16> to vector<32x32xbf16>
    %cst_86 = arith.constant dense<0.000000e+00> : vector<128x32xf32>
    %66 = tpu.matmul %63, %65, %cst_86 {dimension_numbers = #tpu.dot_dimension_numbers<[1], [0], [0], [1], [0, 0, 1, 1], [], []>} : vector<128x32xbf16>, vector<32x32xbf16>, vector<128x32xf32> -> vector<128x32xf32>
    %67 = arith.addf %61, %66 : vector<128x32xf32>
    %c0_87 = arith.constant 0 : index
    %c2_88 = arith.constant 2 : index
    %c2_89 = arith.constant 2 : index
    %c0_90 = arith.constant 0 : index
    %68 = vector.load %arg9[%c0_87, %c2_88, %c2_89, %c0_90] : memref<2x10x10x32xbf16, #tpu.memory_space<vmem>>, vector<2x8x8x32xbf16>
    %69 = vector.shape_cast %68 : vector<2x8x8x32xbf16> to vector<128x32xbf16>
    %c8 = arith.constant 8 : index
    %c0_91 = arith.constant 0 : index
    %c0_92 = arith.constant 0 : index
    %70 = vector.load %arg4[%c8, %c0_91, %c0_92] : memref<9x32x32xbf16, #tpu.memory_space<vmem>>, vector<1x32x32xbf16>
    %71 = vector.shape_cast %70 : vector<1x32x32xbf16> to vector<32x32xbf16>
    %cst_93 = arith.constant dense<0.000000e+00> : vector<128x32xf32>
    %72 = tpu.matmul %69, %71, %cst_93 {dimension_numbers = #tpu.dot_dimension_numbers<[1], [0], [0], [1], [0, 0, 1, 1], [], []>} : vector<128x32xbf16>, vector<32x32xbf16>, vector<128x32xf32> -> vector<128x32xf32>
    %73 = arith.addf %67, %72 : vector<128x32xf32>
    %c0_94 = arith.constant 0 : index
    %c0_95 = arith.constant 0 : index
    %74 = vector.load %arg5[%c0_94, %c0_95] : memref<1x32xf32, #tpu.memory_space<vmem>>, vector<1x32xf32>
    %75 = vector.broadcast %74 : vector<1x32xf32> to vector<128x32xf32>
    %76 = arith.addf %73, %75 : vector<128x32xf32>
    %cst_96 = arith.constant 0.000000e+00 : f32
    %77 = vector.broadcast %cst_96 : f32 to vector<128x32xf32>
    %78 = arith.maximumf %76, %77 : vector<128x32xf32>
    %79 = arith.truncf %78 : vector<128x32xf32> to vector<128x32xbf16>
    %c0_97 = arith.constant 0 : index
    %c0_98 = arith.constant 0 : index
    %80 = vector.load %arg6[%c0_97, %c0_98] : memref<32x128xbf16, #tpu.memory_space<vmem>>, vector<32x128xbf16>
    %cst_99 = arith.constant dense<0.000000e+00> : vector<128x128xf32>
    %81 = tpu.matmul %79, %80, %cst_99 {dimension_numbers = #tpu.dot_dimension_numbers<[1], [0], [0], [1], [0, 0, 1, 1], [], []>} : vector<128x32xbf16>, vector<32x128xbf16>, vector<128x128xf32> -> vector<128x128xf32>
    %c0_100 = arith.constant 0 : index
    %c0_101 = arith.constant 0 : index
    %c0_102 = arith.constant 0 : index
    %c0_103 = arith.constant 0 : index
    %82 = vector.load %arg1[%c0_100, %c0_101, %c0_102, %c0_103] : memref<2x8x8x128xf32, #tpu.memory_space<vmem>>, vector<2x8x8x128xf32>
    %83 = vector.shape_cast %82 : vector<2x8x8x128xf32> to vector<128x128xf32>
    %c0_104 = arith.constant 0 : index
    %c0_105 = arith.constant 0 : index
    %84 = vector.load %arg7[%c0_104, %c0_105] : memref<1x128xf32, #tpu.memory_space<vmem>>, vector<1x128xf32>
    %85 = vector.broadcast %84 : vector<1x128xf32> to vector<128x128xf32>
    %86 = arith.addf %81, %85 : vector<128x128xf32>
    %87 = arith.addf %86, %83 : vector<128x128xf32>
    %cst_106 = arith.constant 0.000000e+00 : f32
    %88 = vector.broadcast %cst_106 : f32 to vector<128x128xf32>
    %89 = arith.maximumf %87, %88 : vector<128x128xf32>
    %90 = vector.shape_cast %89 : vector<128x128xf32> to vector<2x8x8x128xf32>
    %c0_107 = arith.constant 0 : index
    %c0_108 = arith.constant 0 : index
    %c0_109 = arith.constant 0 : index
    %c0_110 = arith.constant 0 : index
    %91 = vector.load %arg8[%c0_107, %c0_108, %c0_109, %c0_110] : memref<2x8x8x128xf32, #tpu.memory_space<vmem>>, vector<2x8x8x128xf32>
    tpu.vector_store %arg8[%c0_107, %c0_108, %c0_109, %c0_110], %90 {strides = array<i32>} : memref<2x8x8x128xf32, #tpu.memory_space<vmem>>, vector<2x8x8x128xf32>,
    return
  }
  func.func @transform_0(%arg0: i32) -> (i32, i32, i32, i32) {
    %c0_i32 = arith.constant 0 : i32
    %c0_i32_0 = arith.constant 0 : i32
    %c0_i32_1 = arith.constant 0 : i32
    %c0_i32_2 = arith.constant 0 : i32
    return %arg0, %c0_i32, %c0_i32_0, %c0_i32_1 : i32, i32, i32, i32
  }
  func.func @transform_1(%arg0: i32) -> (i32, i32) {
    %c0_i32 = arith.constant 0 : i32
    %c0_i32_0 = arith.constant 0 : i32
    %c0_i32_1 = arith.constant 0 : i32
    return %c0_i32, %c0_i32_0 : i32, i32
  }
  func.func @transform_2(%arg0: i32) -> (i32, i32) {
    %c0_i32 = arith.constant 0 : i32
    %c0_i32_0 = arith.constant 0 : i32
    %c0_i32_1 = arith.constant 0 : i32
    return %c0_i32, %c0_i32_0 : i32, i32
  }
  func.func @transform_3(%arg0: i32) -> (i32, i32, i32) {
    %c0_i32 = arith.constant 0 : i32
    %c0_i32_0 = arith.constant 0 : i32
    %c0_i32_1 = arith.constant 0 : i32
    %c0_i32_2 = arith.constant 0 : i32
    return %c0_i32, %c0_i32_0, %c0_i32_1 : i32, i32, i32
  }
  func.func @transform_4(%arg0: i32) -> (i32, i32) {
    %c0_i32 = arith.constant 0 : i32
    %c0_i32_0 = arith.constant 0 : i32
    %c0_i32_1 = arith.constant 0 : i32
    return %c0_i32, %c0_i32_0 : i32, i32
  }
  func.func @transform_5(%arg0: i32) -> (i32, i32) {
    %c0_i32 = arith.constant 0 : i32
    %c0_i32_0 = arith.constant 0 : i32
    %c0_i32_1 = arith.constant 0 : i32
    return %c0_i32, %c0_i32_0 : i32, i32
  }
  func.func @transform_6(%arg0: i32) -> (i32, i32) {
    %c0_i32 = arith.constant 0 : i32
    %c0_i32_0 = arith.constant 0 : i32
    %c0_i32_1 = arith.constant 0 : i32
    return %c0_i32, %c0_i32_0 : i32, i32
  }
  func.func @transform_7(%arg0: i32) -> (i32, i32, i32, i32) {
    %c0_i32 = arith.constant 0 : i32
    %c0_i32_0 = arith.constant 0 : i32
    %c0_i32_1 = arith.constant 0 : i32
    %c0_i32_2 = arith.constant 0 : i32
    return %arg0, %c0_i32, %c0_i32_0, %c0_i32_1 : i32, i32, i32, i32
  }
}

</mosaic_0001>

<llo_original>
// kernel: tpu_custom_call.1
$region0: #{tpu_custom_call.1}
  #allocation0 [shape = 'u32[]', space=smem, size = 0x4, offset = 0x4, fixed_abs, tag = 'smem constant byte address 0x4 - core index']
  #allocation1 [shape = 'u32[144,128]{1,0:T(1,128)}', space=vmem, size = 0x12000, scoped, tag = 'internal scratch']
  #allocation2 [shape = 'bf16[2,10,10,32]{3,2,1,0:T(8,128)(2,1)}', space=vmem, size = 0x14000, scoped, tag = 'scratch operand']
  %s0 = inlined_call_operand.hbm [shape: f32[8,8,8,128], index: 0, kind: input, shape index: {}]
  %s1 = inlined_call_operand.vmem [shape: bf16[128,32], index: 1, kind: input, shape index: {}]
  %s2 = inlined_call_operand.vmem [shape: f32[1,32], index: 2, kind: input, shape index: {}]
  %s3 = inlined_call_operand.hbm [shape: bf16[9,32,32], index: 3, kind: input, shape index: {}]
  %s4 = inlined_call_operand.vmem [shape: f32[1,32], index: 4, kind: input, shape index: {}]
  %s5 = inlined_call_operand.vmem [shape: bf16[32,128], index: 5, kind: input, shape index: {}]
  %s6 = inlined_call_operand.vmem [shape: f32[1,128], index: 6, kind: input, shape index: {}]
  %s7 = inlined_call_operand.hbm [shape: f32[8,8,8,128], index: 7, kind: output, shape index: {}]
  %s8 = sld [smem:[#allocation0]]
  $region69: #{tpu_custom_call.1} parent=0
    _
  %s10 = ssub.s32 1, %s8
  %s11 = scalar_select 0, %s10, %s8
  $region1: #{tpu_custom_call.1} parent=0
    #allocation3 [shape = 'u8[131072]{0}', space=vmem, size = 0x20000, scoped, tag = 'input window, operand 0']
    #allocation4 [shape = 's32[2]{0}', space=sflag, size = 0x8, scoped, tag = 'scoped memory for tpu_custom_call.1']
    #allocation5 [shape = 's32[2]{0}', space=sflag, size = 0x8, scoped, tag = 'scoped memory for tpu_custom_call.1']
    #allocation6 [shape = 'u8[73728]{0}', space=vmem, size = 0x12000, scoped, tag = 'input window, operand 3, single buffered']
    #allocation7 [shape = 's32[1]{0}', space=sflag, size = 0x4, scoped, tag = 'scoped memory for tpu_custom_call.1']
    #allocation8 [shape = 'u8[131072]{0}', space=vmem, size = 0x20000, scoped, tag = 'output window, operand 0']
    %12 = vsyncpa [#allocation4], 0
    %s13 = scalar_lea.sflag [#allocation4], 1
    %14 = vsyncpa %s13, 0
    %15 = vsyncpa [#allocation7], 0
    %16 = vsyncpa [#allocation5], 0
    %s17 = scalar_lea.sflag [#allocation5], 1
    %18 = vsyncpa %s17, 0
    loop: start=0, step=1, limit=6
    $region2: #{tpu_custom_call.1} parent=1 // loop_pre_header
      _
    $region3: #{tpu_custom_call.1} parent=1 // loop_header
      %s20 = sphi 0, %s24
      %p21 = scmp.ge.s32.totalorder %s20, 6
      %s30 = sphi 0, %s32
      %s33 = sphi 0, %s30
      %s34 = sphi 0, %s33
      %s50 = sphi 0, %s34
      %s54 = sphi 0, %s54
      %s56 = sphi 0, %s54
      %s57 = sphi 0, %s56
      %s71 = sphi 0, %s57
      %s75 = sphi 0, %s75
      %s77 = sphi 0, %s75
      %s78 = sphi 0, %s77
      %s92 = sphi 0, %s78
      %s96 = sphi 0, %s96
      %s98 = sphi 0, %s96
      %s99 = sphi 0, %s98
      %s113 = sphi 0, %s99
      %s117 = sphi 0, %s117
      %s119 = sphi 0, %s117
      %s120 = sphi 0, %s119
      %s134 = sphi 0, %s120
      %s138 = sphi 0, %s138
      %s140 = sphi 0, %s138
      %s141 = sphi 0, %s140
      %s155 = sphi 0, %s141
      %s159 = sphi 0, %s159
      %s161 = sphi 0, %s159
      %s162 = sphi 0, %s161
      %s176 = sphi 0, %s162
      %s182 = sphi 0, %s184
      %s185 = sphi 0, %s182
      %s186 = sphi 0, %s185
      %s202 = sphi 0, %s186
    $region4: #{tpu_custom_call.1} parent=1 // loop_header_branch
      %23 = sbr.rel (%p21) target = $region8
    $region5: #{tpu_custom_call.1} parent=1 // loop_body
      %s25 = ssub.s32 %s20, 1
      %s26 = ssub.s32 %s20, 2
      %s27 = sadd.s32 %s20, 1
      %s28 = ssub.s32 %s20, %s27
      %p29 = scmp.eq.s32.totalorder %s28, 0
      %s31 = sadd.s32 %s30, 1
      %s32 = scalar_select %p29, %s30, %s31
      %p35 = pneg %p29
      %p36 = scmp.eq.s32.totalorder %s20, 3
      %p37 = por %p35, %p36
      %p38 = scmp.ne.s32.totalorder %s30, %s33
      %p39 = scmp.eq.s32.totalorder %s20, 0
      %p40 = por %p38, %p39
      %p41 = scmp.ne.s32.totalorder %s30, %s33
      %p42 = scmp.eq.s32.totalorder %s25, 3
      %p43 = por %p41, %p42
      %p44 = scmp.ne.s32.totalorder %s33, %s34
      %p45 = scmp.eq.s32.totalorder %s25, 0
      %p46 = por %p44, %p45
      %p47 = scmp.ne.s32.totalorder %s33, %s34
      %p48 = scmp.eq.s32.totalorder %s26, 3
      %p49 = por %p47, %p48
      %p51 = scmp.ne.s32.totalorder %s34, %s50
      %p52 = scmp.eq.s32.totalorder %s26, 0
      %p53 = por %p51, %p52
      %s55 = sadd.s32 %s54, 1
      %p58 = scmp.eq.s32.totalorder %s20, 3
      %p59 = scmp.ne.s32.totalorder %s54, %s56
      %p60 = scmp.eq.s32.totalorder %s20, 0
      %p61 = por %p59, %p60
      %p62 = scmp.ne.s32.totalorder %s54, %s56
      %p63 = scmp.eq.s32.totalorder %s25, 3
      %p64 = por %p62, %p63
      %p65 = scmp.ne.s32.totalorder %s56, %s57
      %p66 = scmp.eq.s32.totalorder %s25, 0
      %p67 = por %p65, %p66
      %p68 = scmp.ne.s32.totalorder %s56, %s57
      %p69 = scmp.eq.s32.totalorder %s26, 3
      %p70 = por %p68, %p69
      %p72 = scmp.ne.s32.totalorder %s57, %s71
      %p73 = scmp.eq.s32.totalorder %s26, 0
      %p74 = por %p72, %p73
      %s76 = sadd.s32 %s75, 1
      %p79 = scmp.eq.s32.totalorder %s20, 3
      %p80 = scmp.ne.s32.totalorder %s75, %s77
      %p81 = scmp.eq.s32.totalorder %s20, 0
      %p82 = por %p80, %p81
      %p83 = scmp.ne.s32.totalorder %s75, %s77
      %p84 = scmp.eq.s32.totalorder %s25, 3
      %p85 = por %p83, %p84
      %p86 = scmp.ne.s32.totalorder %s77, %s78
      %p87 = scmp.eq.s32.totalorder %s25, 0
      %p88 = por %p86, %p87
      %p89 = scmp.ne.s32.totalorder %s77, %s78
      %p90 = scmp.eq.s32.totalorder %s26, 3
      %p91 = por %p89, %p90
      %p93 = scmp.ne.s32.totalorder %s78, %s92
      %p94 = scmp.eq.s32.totalorder %s26, 0
      %p95 = por %p93, %p94
      %s97 = sadd.s32 %s96, 1
      %p100 = scmp.eq.s32.totalorder %s20, 3
      %p101 = scmp.ne.s32.totalorder %s96, %s98
      %p102 = scmp.eq.s32.totalorder %s20, 0
      %p103 = por %p101, %p102
      %p104 = scmp.ne.s32.totalorder %s96, %s98
      %p105 = scmp.eq.s32.totalorder %s25, 3
      %p106 = por %p104, %p105
      %p107 = scmp.ne.s32.totalorder %s98, %s99
      %p108 = scmp.eq.s32.totalorder %s25, 0
      %p109 = por %p107, %p108
      %p110 = scmp.ne.s32.totalorder %s98, %s99
      %p111 = scmp.eq.s32.totalorder %s26, 3
      %p112 = por %p110, %p111
      %p114 = scmp.ne.s32.totalorder %s99, %s113
      %p115 = scmp.eq.s32.totalorder %s26, 0
      %p116 = por %p114, %p115
      %s118 = sadd.s32 %s117, 1
      %p121 = scmp.eq.s32.totalorder %s20, 3
      %p122 = scmp.ne.s32.totalorder %s117, %s119
      %p123 = scmp.eq.s32.totalorder %s20, 0
      %p124 = por %p122, %p123
      %p125 = scmp.ne.s32.totalorder %s117, %s119
      %p126 = scmp.eq.s32.totalorder %s25, 3
      %p127 = por %p125, %p126
      %p128 = scmp.ne.s32.totalorder %s119, %s120
      %p129 = scmp.eq.s32.totalorder %s25, 0
      %p130 = por %p128, %p129
      %p131 = scmp.ne.s32.totalorder %s119, %s120
      %p132 = scmp.eq.s32.totalorder %s26, 3
      %p133 = por %p131, %p132
      %p135 = scmp.ne.s32.totalorder %s120, %s134
      %p136 = scmp.eq.s32.totalorder %s26, 0
      %p137 = por %p135, %p136
      %s139 = sadd.s32 %s138, 1
      %p142 = scmp.eq.s32.totalorder %s20, 3
      %p143 = scmp.ne.s32.totalorder %s138, %s140
      %p144 = scmp.eq.s32.totalorder %s20, 0
      %p145 = por %p143, %p144
      %p146 = scmp.ne.s32.totalorder %s138, %s140
      %p147 = scmp.eq.s32.totalorder %s25, 3
      %p148 = por %p146, %p147
      %p149 = scmp.ne.s32.totalorder %s140, %s141
      %p150 = scmp.eq.s32.totalorder %s25, 0
      %p151 = por %p149, %p150
      %p152 = scmp.ne.s32.totalorder %s140, %s141
      %p153 = scmp.eq.s32.totalorder %s26, 3
      %p154 = por %p152, %p153
      %p156 = scmp.ne.s32.totalorder %s141, %s155
      %p157 = scmp.eq.s32.totalorder %s26, 0
      %p158 = por %p156, %p157
      %s160 = sadd.s32 %s159, 1
      %p163 = scmp.eq.s32.totalorder %s20, 3
      %p164 = scmp.ne.s32.totalorder %s159, %s161
      %p165 = scmp.eq.s32.totalorder %s20, 0
      %p166 = por %p164, %p165
      %p167 = scmp.ne.s32.totalorder %s159, %s161
      %p168 = scmp.eq.s32.totalorder %s25, 3
      %p169 = por %p167, %p168
      %p170 = scmp.ne.s32.totalorder %s161, %s162
      %p171 = scmp.eq.s32.totalorder %s25, 0
      %p172 = por %p170, %p171
      %p173 = scmp.ne.s32.totalorder %s161, %s162
      %p174 = scmp.eq.s32.totalorder %s26, 3
      %p175 = por %p173, %p174
      %p177 = scmp.ne.s32.totalorder %s162, %s176
      %p178 = scmp.eq.s32.totalorder %s26, 0
      %p179 = por %p177, %p178
      %s180 = ssub.s32 %s20, %s27
      %p181 = scmp.eq.s32.totalorder %s180, 0
      %s183 = sadd.s32 %s182, 1
      %s184 = scalar_select %p181, %s182, %s183
      %p187 = pneg %p181
      %p188 = scmp.eq.s32.totalorder %s20, 3
      %p189 = por %p187, %p188
      %p190 = scmp.ne.s32.totalorder %s182, %s185
      %p191 = scmp.eq.s32.totalorder %s20, 0
      %p192 = por %p190, %p191
      %p193 = scmp.ne.s32.totalorder %s182, %s185
      %p194 = scmp.eq.s32.totalorder %s25, 3
      %p195 = por %p193, %p194
      %p196 = scmp.ne.s32.totalorder %s185, %s186
      %p197 = scmp.eq.s32.totalorder %s25, 0
      %p198 = por %p196, %p197
      %p199 = scmp.ne.s32.totalorder %s185, %s186
      %p200 = scmp.eq.s32.totalorder %s26, 3
      %p201 = por %p199, %p200
      %p203 = scmp.ne.s32.totalorder %s186, %s202
      %p204 = scmp.eq.s32.totalorder %s26, 0
      %p205 = por %p203, %p204
      %p206 = scmp.le.s32.totalorder 1, %s20
      %p207 = scmp.lt.s32.totalorder %s20, 5
      %p208 = pnand %p206, %p207
      %p209 = pneg %p208
      // Predicated region
      $region9: #{tpu_custom_call.1} parent=5 // pred_check
        _
      $region10: #{tpu_custom_call.1} parent=5 // pred_check_branch
        %211 = sbr.rel (%p208) target = $region12
      $region11: #{tpu_custom_call.1} parent=5 // pred_region
        %s212 = ssub.s32 %s20, 1
        // Predicated region
        $region13: #{tpu_custom_call.1} parent=11 // pred_check
          %p213 = pneg %p67
        $region14: #{tpu_custom_call.1} parent=11 // pred_check_branch
          %215 = sbr.rel (%p213) target = $region16
        $region15: #{tpu_custom_call.1} parent=11 // pred_region
          _
        $region16: #{tpu_custom_call.1} parent=11 // pred_fallthru
          _
        // Predicated region
        $region17: #{tpu_custom_call.1} parent=11 // pred_check
          %p216 = pneg %p88
        $region18: #{tpu_custom_call.1} parent=11 // pred_check_branch
          %218 = sbr.rel (%p216) target = $region20
        $region19: #{tpu_custom_call.1} parent=11 // pred_region
          _
        $region20: #{tpu_custom_call.1} parent=11 // pred_fallthru
          _
        // Predicated region
        $region21: #{tpu_custom_call.1} parent=11 // pred_check
          %p219 = pneg %p109
        $region22: #{tpu_custom_call.1} parent=11 // pred_check_branch
          %221 = sbr.rel (%p219) target = $region24
        $region23: #{tpu_custom_call.1} parent=11 // pred_region
          %s223 = ssub.s32 2304, 2304
          %224 = vsyncadd [#allocation7], %s223
          %s225 = sshll.u32 [#allocation6], 4
          %s226 = int_to_ptr.vmem [resolvable:$true] %s225
          %231 = dma.hbm_to_vmem [thread:$0]  %s3, 2304, %s226, [#allocation7], 64, 64, 4
        $region24: #{tpu_custom_call.1} parent=11 // pred_fallthru
          _
        // Predicated region
        $region25: #{tpu_custom_call.1} parent=11 // pred_check
          %p232 = pneg %p130
        $region26: #{tpu_custom_call.1} parent=11 // pred_check_branch
          %234 = sbr.rel (%p232) target = $region28
        $region27: #{tpu_custom_call.1} parent=11 // pred_region
          _
        $region28: #{tpu_custom_call.1} parent=11 // pred_fallthru
          _
        // Predicated region
        $region29: #{tpu_custom_call.1} parent=11 // pred_check
          %p235 = pneg %p151
        $region30: #{tpu_custom_call.1} parent=11 // pred_check_branch
          %237 = sbr.rel (%p235) target = $region32
        $region31: #{tpu_custom_call.1} parent=11 // pred_region
          _
        $region32: #{tpu_custom_call.1} parent=11 // pred_fallthru
          _
        // Predicated region
        $region33: #{tpu_custom_call.1} parent=11 // pred_check
          %p238 = pneg %p172
        $region34: #{tpu_custom_call.1} parent=11 // pred_check_branch
          %240 = sbr.rel (%p238) target = $region36
        $region35: #{tpu_custom_call.1} parent=11 // pred_region
          _
        $region36: #{tpu_custom_call.1} parent=11 // pred_fallthru
          _
      $region12: #{tpu_custom_call.1} parent=5 // pred_fallthru
        _
      %p241 = scmp.lt.s32.totalorder %s20, 4
      // Predicated region
      $region37: #{tpu_custom_call.1} parent=5 // pred_check
        %p242 = pneg %p241
      $region38: #{tpu_custom_call.1} parent=5 // pred_check_branch
        %244 = sbr.rel (%p242) target = $region40
      $region39: #{tpu_custom_call.1} parent=5 // pred_region
        // Predicated region
        $region41: #{tpu_custom_call.1} parent=39 // pred_check
          %p245 = pneg %p40
        $region42: #{tpu_custom_call.1} parent=39 // pred_check_branch
          %247 = sbr.rel (%p245) target = $region44
        $region43: #{tpu_custom_call.1} parent=39 // pred_region
          %s248 = sand.u32 %s30, 1
          %s249 = scalar_lea.sflag [#allocation4], %s248
          %s250 = sand.u32 %s30, 1
          %s251 = smul.addr %s250, 128
          %s252 = scalar_lea.vmem [#allocation3], %s251
          %s253 = smul.u32 2, %s20
          %s255 = ssub.s32 2048, 2048
          %256 = vsyncadd %s249, %s255
          %s257 = smul.addr %s253, 8
          %s258 = smul.addr %s257, 128
          %s259 = scalar_lea.hbm %s0, %s258
          %s260 = sshll.u32 %s252, 4
          %s261 = int_to_ptr.vmem [resolvable:$true] %s260
          %266 = dma.hbm_to_vmem [thread:$0]  %s259, 2048, %s261, %s249, 128, 128, 8
        $region44: #{tpu_custom_call.1} parent=39 // pred_fallthru
          _
      $region40: #{tpu_custom_call.1} parent=5 // pred_fallthru
        _
      %p267 = scmp.le.s32.totalorder 1, %s20
      %p268 = scmp.lt.s32.totalorder %s20, 5
      %p269 = pnand %p267, %p268
      %p270 = pneg %p269
      // Predicated region
      $region45: #{tpu_custom_call.1} parent=5 // pred_check
        _
      $region46: #{tpu_custom_call.1} parent=5 // pred_check_branch
        %272 = sbr.rel (%p269) target = $region48
      $region47: #{tpu_custom_call.1} parent=5 // pred_region
        %s273 = ssub.s32 %s20, 1
        %s274 = sand.u32 %s33, 1
        %s275 = scalar_lea.sflag [#allocation4], %s274
        %s276 = sand.u32 %s33, 1
        %s277 = smul.addr %s276, 128
        %s278 = scalar_lea.vmem [#allocation3], %s277
        // Predicated region
        $region49: #{tpu_custom_call.1} parent=47 // pred_check
          %p279 = pneg %p46
        $region50: #{tpu_custom_call.1} parent=47 // pred_check_branch
          %281 = sbr.rel (%p279) target = $region52
        $region51: #{tpu_custom_call.1} parent=47 // pred_region
          %282 = dma.done %s275, 2048
        $region52: #{tpu_custom_call.1} parent=47 // pred_fallthru
          _
        // Predicated region
        $region53: #{tpu_custom_call.1} parent=47 // pred_check
          %p283 = pneg %p109
        $region54: #{tpu_custom_call.1} parent=47 // pred_check_branch
          %285 = sbr.rel (%p283) target = $region56
        $region55: #{tpu_custom_call.1} parent=47 // pred_region
          %286 = dma.done [#allocation7], 2304
        $region56: #{tpu_custom_call.1} parent=47 // pred_fallthru
          _
        %s287 = sand.u32 %s33, 1
        %s288 = scalar_lea.sflag [#allocation4], %s287
        %s289 = sand.u32 %s33, 1
        %s290 = smul.addr %s289, 128
        %s291 = scalar_lea.vmem [#allocation3], %s290
        %p292 = pneg %p46
        %p293 = pneg %p43
        %p294 = pneg %p67
        %p295 = pneg %p64
        %p296 = pneg %p88
        %p297 = pneg %p85
        %p298 = pneg %p109
        %p299 = pneg %p106
        %p300 = pneg %p130
        %p301 = pneg %p127
        %p302 = pneg %p151
        %p303 = pneg %p148
        %p304 = pneg %p172
        %p305 = pneg %p169
        %p306 = pneg %p198
        %p307 = pneg %p195
        %s308 = sand.u32 %s185, 1
        %s309 = scalar_lea.sflag [#allocation5], %s308
        %s310 = sand.u32 %s185, 1
        %s311 = smul.addr %s310, 128
        %s312 = scalar_lea.vmem [#allocation8], %s311
        %s313 = smul.u32 2, %s25
        %s314 = smul.u32 2, %s25
        %v316 = vld [vmem:[%s278] sm:$0xff]
        %v317 = vld [vmem:[%s278 + $0x8] sm:$0xff]
        %v318 = vld [vmem:[%s278 + $0x10] sm:$0xff]
        %v319 = vld [vmem:[%s278 + $0x18] sm:$0xff]
        %v320 = vld [vmem:[%s278 + $0x20] sm:$0xff]
        %v321 = vld [vmem:[%s278 + $0x28] sm:$0xff]
        %v322 = vld [vmem:[%s278 + $0x30] sm:$0xff]
        %v323 = vld [vmem:[%s278 + $0x38] sm:$0xff]
        %v324 = vld [vmem:[%s278 + $0x40] sm:$0xff]
        %v325 = vld [vmem:[%s278 + $0x48] sm:$0xff]
        %v326 = vld [vmem:[%s278 + $0x50] sm:$0xff]
        %v327 = vld [vmem:[%s278 + $0x58] sm:$0xff]
        %v328 = vld [vmem:[%s278 + $0x60] sm:$0xff]
        %v329 = vld [vmem:[%s278 + $0x68] sm:$0xff]
        %v330 = vld [vmem:[%s278 + $0x70] sm:$0xff]
        %v331 = vld [vmem:[%s278 + $0x78] sm:$0xff]
        %v332 = vpack.c.bf16 %v317, %v316
        %v333 = vpack.c.bf16 %v319, %v318
        %v334 = vpack.c.bf16 %v321, %v320
        %v335 = vpack.c.bf16 %v323, %v322
        %v336 = vpack.c.bf16 %v325, %v324
        %v337 = vpack.c.bf16 %v327, %v326
        %v338 = vpack.c.bf16 %v329, %v328
        %v339 = vpack.c.bf16 %v331, %v330
        %v340 = vld [vmem:[%s1] sm:$0xf]
        %v341 = vld [vmem:[%s1 + $0x4] sm:$0xf]
        %v342 = vld [vmem:[%s1 + $0x8] sm:$0xf]
        %v343 = vld [vmem:[%s1 + $0xc] sm:$0xf]
        %v344 = vld [vmem:[%s1 + $0x10] sm:$0xf]
        %v345 = vld [vmem:[%s1 + $0x14] sm:$0xf]
        %v346 = vld [vmem:[%s1 + $0x18] sm:$0xf]
        %v347 = vld [vmem:[%s1 + $0x1c] sm:$0xf]
        %v348 = vld [vmem:[%s1 + $0x20] sm:$0xf]
        %v349 = vld [vmem:[%s1 + $0x24] sm:$0xf]
        %v350 = vld [vmem:[%s1 + $0x28] sm:$0xf]
        %v351 = vld [vmem:[%s1 + $0x2c] sm:$0xf]
        %v352 = vld [vmem:[%s1 + $0x30] sm:$0xf]
        %v353 = vld [vmem:[%s1 + $0x34] sm:$0xf]
        %v354 = vld [vmem:[%s1 + $0x38] sm:$0xf]
        %v355 = vld [vmem:[%s1 + $0x3c] sm:$0xf]
        %v356 = vld [vmem:[%s2] sm:$0x1]
        %v358 = vlaneseq
        %v359 = vshrl.u32 %v358, 7
        %v360 = vsub.s32 0, %v359
        %v361 = vrot.slane %v356, %v360
        %v379 = vunpack.c.l.b16 %v340
        %v380 = vunpack.c.l.b16 %v341
        %v381 = vunpack.c.l.b16 %v342
        %v382 = vunpack.c.l.b16 %v343
        %v383 = vunpack.c.l.b16 %v344
        %v384 = vunpack.c.l.b16 %v345
        %v385 = vunpack.c.l.b16 %v346
        %v386 = vunpack.c.l.b16 %v347
        %v387 = vunpack.c.l.b16 %v348
        %v388 = vunpack.c.l.b16 %v349
        %v389 = vunpack.c.l.b16 %v350
        %v390 = vunpack.c.l.b16 %v351
        %v391 = vunpack.c.l.b16 %v352
        %v392 = vunpack.c.l.b16 %v353
        %v393 = vunpack.c.l.b16 %v354
        %v394 = vunpack.c.l.b16 %v355
        %v395 = vpack.c.b16 %v380, %v379
        %v396 = vpack.c.b16 %v382, %v381
        %v397 = vpack.c.b16 %v384, %v383
        %v398 = vpack.c.b16 %v386, %v385
        %v399 = vpack.c.b16 %v388, %v387
        %v400 = vpack.c.b16 %v390, %v389
        %v401 = vpack.c.b16 %v392, %v391
        %v402 = vpack.c.b16 %v394, %v393
        %411 = vmatprep.subr.bf16.mxu0 0
        %412 = vmatpush1.bf16.msra.mxu0 %v402
        %413 = vmatprep.subr.bf16.mxu0 0
        %414 = vmatpush1.bf16.msra.mxu0 %v401
        %415 = vmatprep.subr.bf16.mxu0 0
        %416 = vmatpush1.bf16.msra.mxu0 %v400
        %417 = vmatprep.subr.bf16.mxu0 0
        %418 = vmatpush1.bf16.msra.mxu0 %v399
        %419 = vmatprep.subr.bf16.mxu0 0
        %420 = vmatpush1.bf16.msra.mxu0 %v398
        %421 = vmatprep.subr.bf16.mxu0 0
        %422 = vmatpush1.bf16.msra.mxu0 %v397
        %423 = vmatprep.subr.bf16.mxu0 0
        %424 = vmatpush1.bf16.msra.mxu0 %v396
        %425 = vmatprep.subr.bf16.mxu0 0
        %426 = vmatpush1.bf16.msra.mxu0 %v395
        %427 = vmatprep.subr.bf16.mxu0 0
        %428 = vmatpush2.bf16.msra.mxu0 0
        %429 = vmatprep.subr.bf16.mxu0 0
        %430 = vmatpush2.bf16.msra.mxu0 0
        %431 = vmatprep.subr.bf16.mxu0 0
        %432 = vmatpush2.bf16.msra.mxu0 0
        %433 = vmatprep.subr.bf16.mxu0 0
        %434 = vmatpush2.bf16.msra.mxu0 0
        %435 = vmatprep.subr.bf16.mxu0 0
        %436 = vmatpush2.bf16.msra.mxu0 0
        %437 = vmatprep.subr.bf16.mxu0 0
        %438 = vmatpush2.bf16.msra.mxu0 0
        %439 = vmatprep.subr.bf16.mxu0 0
        %440 = vmatpush2.bf16.msra.mxu0 0
        %441 = vmatprep.subr.bf16.mxu0 0
        %442 = vmatpush2.bf16.msra.mxu0 0
        %443 = vmatprep.mubr.bf16.mxu0 0
        %444 = vmatmul.mubr.bf16.gmra.mxu0 %v332
        %v445 = vpop.f32.mrf.mxu0
        %v446 = vadd.f32 %v361, %v445
        %v447 = vpop.f32.mrf.mxu0
        %v448 = vpop.f32.mrf.mxu0
        %v449 = vadd.f32 %v361, %v448
        %v450 = vpop.f32.mrf.mxu0
        %451 = vmatprep.mubr.bf16.mxu0 0
        %452 = vmatmul.mubr.bf16.gmra.mxu0 %v333
        %v453 = vpop.f32.mrf.mxu0
        %v454 = vadd.f32 %v361, %v453
        %v455 = vpop.f32.mrf.mxu0
        %v456 = vpop.f32.mrf.mxu0
        %v457 = vadd.f32 %v361, %v456
        %v458 = vpop.f32.mrf.mxu0
        %459 = vmatprep.mubr.bf16.mxu0 0
        %460 = vmatmul.mubr.bf16.gmra.mxu0 %v334
        %v461 = vpop.f32.mrf.mxu0
        %v462 = vadd.f32 %v361, %v461
        %v463 = vpop.f32.mrf.mxu0
        %v464 = vpop.f32.mrf.mxu0
        %v465 = vadd.f32 %v361, %v464
        %v466 = vpop.f32.mrf.mxu0
        %467 = vmatprep.mubr.bf16.mxu0 0
        %468 = vmatmul.mubr.bf16.gmra.mxu0 %v335
        %v469 = vpop.f32.mrf.mxu0
        %v470 = vadd.f32 %v361, %v469
        %v471 = vpop.f32.mrf.mxu0
        %v472 = vpop.f32.mrf.mxu0
        %v473 = vadd.f32 %v361, %v472
        %v474 = vpop.f32.mrf.mxu0
        %475 = vmatprep.mubr.bf16.mxu0 0
        %476 = vmatmul.mubr.bf16.gmra.mxu0 %v336
        %v477 = vpop.f32.mrf.mxu0
        %v478 = vadd.f32 %v361, %v477
        %v479 = vpop.f32.mrf.mxu0
        %v480 = vpop.f32.mrf.mxu0
        %v481 = vadd.f32 %v361, %v480
        %v482 = vpop.f32.mrf.mxu0
        %483 = vmatprep.mubr.bf16.mxu0 0
        %484 = vmatmul.mubr.bf16.gmra.mxu0 %v337
        %v485 = vpop.f32.mrf.mxu0
        %v486 = vadd.f32 %v361, %v485
        %v487 = vpop.f32.mrf.mxu0
        %v488 = vpop.f32.mrf.mxu0
        %v489 = vadd.f32 %v361, %v488
        %v490 = vpop.f32.mrf.mxu0
        %491 = vmatprep.mubr.bf16.mxu0 0
        %492 = vmatmul.mubr.bf16.gmra.mxu0 %v338
        %v493 = vpop.f32.mrf.mxu0
        %v494 = vadd.f32 %v361, %v493
        %v495 = vpop.f32.mrf.mxu0
        %v496 = vpop.f32.mrf.mxu0
        %v497 = vadd.f32 %v361, %v496
        %v498 = vpop.f32.mrf.mxu0
        %499 = vmatprep.mubr.bf16.mxu0 0
        %500 = vmatmul.mubr.bf16.gmra.mxu0 %v339
        %v501 = vpop.f32.mrf.mxu0
        %v502 = vadd.f32 %v361, %v501
        %v503 = vpop.f32.mrf.mxu0
        %v504 = vpop.f32.mrf.mxu0
        %v505 = vadd.f32 %v361, %v504
        %v506 = vpop.f32.mrf.mxu0
        %507 = vdwg.mxu0
        %v508 = vmax.f32 %v446, 0.0
        %v509 = vmax.f32 %v449, 0.0
        %v510 = vmax.f32 %v454, 0.0
        %v511 = vmax.f32 %v457, 0.0
        %v512 = vmax.f32 %v462, 0.0
        %v513 = vmax.f32 %v465, 0.0
        %v514 = vmax.f32 %v470, 0.0
        %v515 = vmax.f32 %v473, 0.0
        %v516 = vmax.f32 %v478, 0.0
        %v517 = vmax.f32 %v481, 0.0
        %v518 = vmax.f32 %v486, 0.0
        %v519 = vmax.f32 %v489, 0.0
        %v520 = vmax.f32 %v494, 0.0
        %v521 = vmax.f32 %v497, 0.0
        %v522 = vmax.f32 %v502, 0.0
        %v523 = vmax.f32 %v505, 0.0
        %vm524 = vcmask 257024
        %525 = vst.msk [vmem:[#allocation2] sm:$0xf] %vm524, 0
        %vm526 = vcmask 253952
        %527 = vst.msk [vmem:[#allocation2 + $0x4] sm:$0x1] %vm526, 0
        %528 = vst.msk [vmem:[#allocation2 + $0x50] sm:$0xf] %vm524, 0
        %529 = vst.msk [vmem:[#allocation2 + $0x54] sm:$0x1] %vm526, 0
        %s530 = scalar_lea.vmem [#allocation2], 72
        %531 = vst.msk [vmem:[%s530] sm:$0xf] %vm524, 0
        %532 = vst.msk [vmem:[%s530 + $0x4] sm:$0x1] %vm526, 0
        %533 = vst.msk [vmem:[%s530 + $0x50] sm:$0xf] %vm524, 0
        %534 = vst.msk [vmem:[%s530 + $0x54] sm:$0x1] %vm526, 0
        %s535 = scalar_lea.vmem [#allocation2], 8
        %vm536 = vcmask 253952
        %vm537 = vsmask.f32 256
        %vm538 = vmand %vm536, %vm537
        %v539 = vld [vmem:[%s535] sm:$0x1]
        %v540 = vsel %vm538, 0, %v539
        %541 = vst [vmem:[%s535] sm:$0x1] %v540
        %v542 = vld [vmem:[%s535 + $0x8] sm:$0x1]
        %v543 = vsel %vm538, 0, %v542
        %544 = vst [vmem:[%s535 + $0x8] sm:$0x1] %v543
        %v545 = vld [vmem:[%s535 + $0x10] sm:$0x1]
        %v546 = vsel %vm538, 0, %v545
        %547 = vst [vmem:[%s535 + $0x10] sm:$0x1] %v546
        %v548 = vld [vmem:[%s535 + $0x18] sm:$0x1]
        %v549 = vsel %vm538, 0, %v548
        %550 = vst [vmem:[%s535 + $0x18] sm:$0x1] %v549
        %v551 = vld [vmem:[%s535 + $0x20] sm:$0x1]
        %v552 = vsel %vm538, 0, %v551
        %553 = vst [vmem:[%s535 + $0x20] sm:$0x1] %v552
        %v554 = vld [vmem:[%s535 + $0x28] sm:$0x1]
        %v555 = vsel %vm538, 0, %v554
        %556 = vst [vmem:[%s535 + $0x28] sm:$0x1] %v555
        %v557 = vld [vmem:[%s535 + $0x30] sm:$0x1]
        %v558 = vsel %vm538, 0, %v557
        %559 = vst [vmem:[%s535 + $0x30] sm:$0x1] %v558
        %v560 = vld [vmem:[%s535 + $0x38] sm:$0x1]
        %v561 = vsel %vm538, 0, %v560
        %562 = vst [vmem:[%s535 + $0x38] sm:$0x1] %v561
        %v563 = vld [vmem:[%s535 + $0x50] sm:$0x1]
        %v564 = vsel %vm538, 0, %v563
        %565 = vst [vmem:[%s535 + $0x50] sm:$0x1] %v564
        %v566 = vld [vmem:[%s535 + $0x58] sm:$0x1]
        %v567 = vsel %vm538, 0, %v566
        %568 = vst [vmem:[%s535 + $0x58] sm:$0x1] %v567
        %v569 = vld [vmem:[%s535 + $0x60] sm:$0x1]
        %v570 = vsel %vm538, 0, %v569
        %571 = vst [vmem:[%s535 + $0x60] sm:$0x1] %v570
        %v572 = vld [vmem:[%s535 + $0x68] sm:$0x1]
        %v573 = vsel %vm538, 0, %v572
        %574 = vst [vmem:[%s535 + $0x68] sm:$0x1] %v573
        %v575 = vld [vmem:[%s535 + $0x70] sm:$0x1]
        %v576 = vsel %vm538, 0, %v575
        %577 = vst [vmem:[%s535 + $0x70] sm:$0x1] %v576
        %v578 = vld [vmem:[%s535 + $0x78] sm:$0x1]
        %v579 = vsel %vm538, 0, %v578
        %580 = vst [vmem:[%s535 + $0x78] sm:$0x1] %v579
        %v581 = vld [vmem:[%s535 + $0x80] sm:$0x1]
        %v582 = vsel %vm538, 0, %v581
        %583 = vst [vmem:[%s535 + $0x80] sm:$0x1] %v582
        %v584 = vld [vmem:[%s535 + $0x88] sm:$0x1]
        %v585 = vsel %vm538, 0, %v584
        %586 = vst [vmem:[%s535 + $0x88] sm:$0x1] %v585
        %vm587 = vsmask.f32 7938
        %vm588 = vmand %vm536, %vm587
        %v589 = vld [vmem:[%s535 + $0x4] sm:$0x1]
        %v590 = vsel %vm588, 0, %v589
        %591 = vst [vmem:[%s535 + $0x4] sm:$0x1] %v590
        %v592 = vld [vmem:[%s535 + $0xc] sm:$0x1]
        %v593 = vsel %vm588, 0, %v592
        %594 = vst [vmem:[%s535 + $0xc] sm:$0x1] %v593
        %v595 = vld [vmem:[%s535 + $0x14] sm:$0x1]
        %v596 = vsel %vm588, 0, %v595
        %597 = vst [vmem:[%s535 + $0x14] sm:$0x1] %v596
        %v598 = vld [vmem:[%s535 + $0x1c] sm:$0x1]
        %v599 = vsel %vm588, 0, %v598
        %600 = vst [vmem:[%s535 + $0x1c] sm:$0x1] %v599
        %v601 = vld [vmem:[%s535 + $0x24] sm:$0x1]
        %v602 = vsel %vm588, 0, %v601
        %603 = vst [vmem:[%s535 + $0x24] sm:$0x1] %v602
        %v604 = vld [vmem:[%s535 + $0x2c] sm:$0x1]
        %v605 = vsel %vm588, 0, %v604
        %606 = vst [vmem:[%s535 + $0x2c] sm:$0x1] %v605
        %v607 = vld [vmem:[%s535 + $0x34] sm:$0x1]
        %v608 = vsel %vm588, 0, %v607
        %609 = vst [vmem:[%s535 + $0x34] sm:$0x1] %v608
        %v610 = vld [vmem:[%s535 + $0x3c] sm:$0x1]
        %v611 = vsel %vm588, 0, %v610
        %612 = vst [vmem:[%s535 + $0x3c] sm:$0x1] %v611
        %v613 = vld [vmem:[%s535 + $0x54] sm:$0x1]
        %v614 = vsel %vm588, 0, %v613
        %615 = vst [vmem:[%s535 + $0x54] sm:$0x1] %v614
        %v616 = vld [vmem:[%s535 + $0x5c] sm:$0x1]
        %v617 = vsel %vm588, 0, %v616
        %618 = vst [vmem:[%s535 + $0x5c] sm:$0x1] %v617
        %v619 = vld [vmem:[%s535 + $0x64] sm:$0x1]
        %v620 = vsel %vm588, 0, %v619
        %621 = vst [vmem:[%s535 + $0x64] sm:$0x1] %v620
        %v622 = vld [vmem:[%s535 + $0x6c] sm:$0x1]
        %v623 = vsel %vm588, 0, %v622
        %624 = vst [vmem:[%s535 + $0x6c] sm:$0x1] %v623
        %v625 = vld [vmem:[%s535 + $0x74] sm:$0x1]
        %v626 = vsel %vm588, 0, %v625
        %627 = vst [vmem:[%s535 + $0x74] sm:$0x1] %v626
        %v628 = vld [vmem:[%s535 + $0x7c] sm:$0x1]
        %v629 = vsel %vm588, 0, %v628
        %630 = vst [vmem:[%s535 + $0x7c] sm:$0x1] %v629
        %v631 = vld [vmem:[%s535 + $0x84] sm:$0x1]
        %v632 = vsel %vm588, 0, %v631
        %633 = vst [vmem:[%s535 + $0x84] sm:$0x1] %v632
        %v634 = vld [vmem:[%s535 + $0x8c] sm:$0x1]
        %v635 = vsel %vm588, 0, %v634
        %636 = vst [vmem:[%s535 + $0x8c] sm:$0x1] %v635
        %v637 = vpack.c.bf16 %v508, %v508
        %v638 = vpack.c.bf16 %v509, %v509
        %v639 = vpack.c.bf16 %v510, %v510
        %v640 = vpack.c.bf16 %v511, %v511
        %v641 = vpack.c.bf16 %v512, %v512
        %v642 = vpack.c.bf16 %v513, %v513
        %v643 = vpack.c.bf16 %v514, %v514
        %v644 = vpack.c.bf16 %v515, %v515
        %v645 = vpack.c.bf16 %v516, %v516
        %v646 = vpack.c.bf16 %v517, %v517
        %v647 = vpack.c.bf16 %v518, %v518
        %v648 = vpack.c.bf16 %v519, %v519
        %v649 = vpack.c.bf16 %v520, %v520
        %v650 = vpack.c.bf16 %v521, %v521
        %v651 = vpack.c.bf16 %v522, %v522
        %v652 = vpack.c.bf16 %v523, %v523
        %v669 = vunpack.c.l.b16 %v637
        %v670 = vunpack.c.l.b16 %v638
        %v671 = vunpack.c.l.b16 %v639
        %v672 = vunpack.c.l.b16 %v640
        %v673 = vunpack.c.l.b16 %v641
        %v674 = vunpack.c.l.b16 %v642
        %v675 = vunpack.c.l.b16 %v643
        %v676 = vunpack.c.l.b16 %v644
        %v677 = vunpack.c.l.b16 %v645
        %v678 = vunpack.c.l.b16 %v646
        %v679 = vunpack.c.l.b16 %v647
        %v680 = vunpack.c.l.b16 %v648
        %v681 = vunpack.c.l.b16 %v649
        %v682 = vunpack.c.l.b16 %v650
        %v683 = vunpack.c.l.b16 %v651
        %v684 = vunpack.c.l.b16 %v652
        %v685 = vpack.c.b16 %v669, %v669
        %v686 = vpack.c.b16 %v670, %v670
        %v687 = vpack.c.b16 %v671, %v671
        %v688 = vpack.c.b16 %v672, %v672
        %v689 = vpack.c.b16 %v673, %v673
        %v690 = vpack.c.b16 %v674, %v674
        %v691 = vpack.c.b16 %v675, %v675
        %v692 = vpack.c.b16 %v676, %v676
        %v693 = vpack.c.b16 %v677, %v677
        %v694 = vpack.c.b16 %v678, %v678
        %v695 = vpack.c.b16 %v679, %v679
        %v696 = vpack.c.b16 %v680, %v680
        %v697 = vpack.c.b16 %v681, %v681
        %v698 = vpack.c.b16 %v682, %v682
        %v699 = vpack.c.b16 %v683, %v683
        %v700 = vpack.c.b16 %v684, %v684
        %v702 = vshrl.u32 %v685, 16
        %v704 = vrot.slane %v702, 7
        %v705 = vshll.u32 %v685, 16
        %v707 = vor.u32 %v704, %v705
        %v708 = vrot.slane %v704, 4
        %v710 = vshrl.u32 %v686, 16
        %v712 = vrot.slane %v710, 7
        %v713 = vshll.u32 %v686, 16
        %v715 = vor.u32 %v712, %v713
        %v716 = vrot.slane %v712, 4
        %v718 = vshrl.u32 %v687, 16
        %v720 = vrot.slane %v718, 7
        %v721 = vshll.u32 %v687, 16
        %v723 = vor.u32 %v720, %v721
        %v724 = vrot.slane %v720, 4
        %v726 = vshrl.u32 %v688, 16
        %v728 = vrot.slane %v726, 7
        %v729 = vshll.u32 %v688, 16
        %v731 = vor.u32 %v728, %v729
        %v732 = vrot.slane %v728, 4
        %v734 = vshrl.u32 %v689, 16
        %v736 = vrot.slane %v734, 7
        %v737 = vshll.u32 %v689, 16
        %v739 = vor.u32 %v736, %v737
        %v740 = vrot.slane %v736, 4
        %v742 = vshrl.u32 %v690, 16
        %v744 = vrot.slane %v742, 7
        %v745 = vshll.u32 %v690, 16
        %v747 = vor.u32 %v744, %v745
        %v748 = vrot.slane %v744, 4
        %v750 = vshrl.u32 %v691, 16
        %v752 = vrot.slane %v750, 7
        %v753 = vshll.u32 %v691, 16
        %v755 = vor.u32 %v752, %v753
        %v756 = vrot.slane %v752, 4
        %v758 = vshrl.u32 %v692, 16
        %v760 = vrot.slane %v758, 7
        %v761 = vshll.u32 %v692, 16
        %v763 = vor.u32 %v760, %v761
        %v764 = vrot.slane %v760, 4
        %v766 = vshrl.u32 %v693, 16
        %v768 = vrot.slane %v766, 7
        %v769 = vshll.u32 %v693, 16
        %v771 = vor.u32 %v768, %v769
        %v772 = vrot.slane %v768, 4
        %v774 = vshrl.u32 %v694, 16
        %v776 = vrot.slane %v774, 7
        %v777 = vshll.u32 %v694, 16
        %v779 = vor.u32 %v776, %v777
        %v780 = vrot.slane %v776, 4
        %v782 = vshrl.u32 %v695, 16
        %v784 = vrot.slane %v782, 7
        %v785 = vshll.u32 %v695, 16
        %v787 = vor.u32 %v784, %v785
        %v788 = vrot.slane %v784, 4
        %v790 = vshrl.u32 %v696, 16
        %v792 = vrot.slane %v790, 7
        %v793 = vshll.u32 %v696, 16
        %v795 = vor.u32 %v792, %v793
        %v796 = vrot.slane %v792, 4
        %v798 = vshrl.u32 %v697, 16
        %v800 = vrot.slane %v798, 7
        %v801 = vshll.u32 %v697, 16
        %v803 = vor.u32 %v800, %v801
        %v804 = vrot.slane %v800, 4
        %v806 = vshrl.u32 %v698, 16
        %v808 = vrot.slane %v806, 7
        %v809 = vshll.u32 %v698, 16
        %v811 = vor.u32 %v808, %v809
        %v812 = vrot.slane %v808, 4
        %v814 = vshrl.u32 %v699, 16
        %v816 = vrot.slane %v814, 7
        %v817 = vshll.u32 %v699, 16
        %v819 = vor.u32 %v816, %v817
        %v820 = vrot.slane %v816, 4
        %v822 = vshrl.u32 %v700, 16
        %v824 = vrot.slane %v822, 7
        %v825 = vshll.u32 %v700, 16
        %v827 = vor.u32 %v824, %v825
        %v828 = vrot.slane %v824, 4
        %vm861 = vcmask 257024
        %vm862 = vmand %vm861, %vm587
        %v863 = vld [vmem:[%s535] sm:$0xf]
        %v864 = vsel %vm862, %v707, %v863
        %865 = vst [vmem:[%s535] sm:$0xf] %v864
        %v866 = vld [vmem:[%s535 + $0x4] sm:$0x1]
        %v867 = vsel %vm538, %v708, %v866
        %868 = vst [vmem:[%s535 + $0x4] sm:$0x1] %v867
        %v869 = vld [vmem:[%s535 + $0x8] sm:$0xf]
        %v870 = vsel %vm862, %v715, %v869
        %871 = vst [vmem:[%s535 + $0x8] sm:$0xf] %v870
        %v872 = vld [vmem:[%s535 + $0xc] sm:$0x1]
        %v873 = vsel %vm538, %v716, %v872
        %874 = vst [vmem:[%s535 + $0xc] sm:$0x1] %v873
        %v875 = vld [vmem:[%s535 + $0x10] sm:$0xf]
        %v876 = vsel %vm862, %v723, %v875
        %877 = vst [vmem:[%s535 + $0x10] sm:$0xf] %v876
        %v878 = vld [vmem:[%s535 + $0x14] sm:$0x1]
        %v879 = vsel %vm538, %v724, %v878
        %880 = vst [vmem:[%s535 + $0x14] sm:$0x1] %v879
        %v881 = vld [vmem:[%s535 + $0x18] sm:$0xf]
        %v882 = vsel %vm862, %v731, %v881
        %883 = vst [vmem:[%s535 + $0x18] sm:$0xf] %v882
        %v884 = vld [vmem:[%s535 + $0x1c] sm:$0x1]
        %v885 = vsel %vm538, %v732, %v884
        %886 = vst [vmem:[%s535 + $0x1c] sm:$0x1] %v885
        %v887 = vld [vmem:[%s535 + $0x20] sm:$0xf]
        %v888 = vsel %vm862, %v739, %v887
        %889 = vst [vmem:[%s535 + $0x20] sm:$0xf] %v888
        %v890 = vld [vmem:[%s535 + $0x24] sm:$0x1]
        %v891 = vsel %vm538, %v740, %v890
        %892 = vst [vmem:[%s535 + $0x24] sm:$0x1] %v891
        %v893 = vld [vmem:[%s535 + $0x28] sm:$0xf]
        %v894 = vsel %vm862, %v747, %v893
        %895 = vst [vmem:[%s535 + $0x28] sm:$0xf] %v894
        %v896 = vld [vmem:[%s535 + $0x2c] sm:$0x1]
        %v897 = vsel %vm538, %v748, %v896
        %898 = vst [vmem:[%s535 + $0x2c] sm:$0x1] %v897
        %v899 = vld [vmem:[%s535 + $0x30] sm:$0xf]
        %v900 = vsel %vm862, %v755, %v899
        %901 = vst [vmem:[%s535 + $0x30] sm:$0xf] %v900
        %v902 = vld [vmem:[%s535 + $0x34] sm:$0x1]
        %v903 = vsel %vm538, %v756, %v902
        %904 = vst [vmem:[%s535 + $0x34] sm:$0x1] %v903
        %v905 = vld [vmem:[%s535 + $0x38] sm:$0xf]
        %v906 = vsel %vm862, %v763, %v905
        %907 = vst [vmem:[%s535 + $0x38] sm:$0xf] %v906
        %v908 = vld [vmem:[%s535 + $0x3c] sm:$0x1]
        %v909 = vsel %vm538, %v764, %v908
        %910 = vst [vmem:[%s535 + $0x3c] sm:$0x1] %v909
        %v911 = vld [vmem:[%s535 + $0x50] sm:$0xf]
        %v912 = vsel %vm862, %v771, %v911
        %913 = vst [vmem:[%s535 + $0x50] sm:$0xf] %v912
        %v914 = vld [vmem:[%s535 + $0x54] sm:$0x1]
        %v915 = vsel %vm538, %v772, %v914
        %916 = vst [vmem:[%s535 + $0x54] sm:$0x1] %v915
        %v917 = vld [vmem:[%s535 + $0x58] sm:$0xf]
        %v918 = vsel %vm862, %v779, %v917
        %919 = vst [vmem:[%s535 + $0x58] sm:$0xf] %v918
        %v920 = vld [vmem:[%s535 + $0x5c] sm:$0x1]
        %v921 = vsel %vm538, %v780, %v920
        %922 = vst [vmem:[%s535 + $0x5c] sm:$0x1] %v921
        %v923 = vld [vmem:[%s535 + $0x60] sm:$0xf]
        %v924 = vsel %vm862, %v787, %v923
        %925 = vst [vmem:[%s535 + $0x60] sm:$0xf] %v924
        %v926 = vld [vmem:[%s535 + $0x64] sm:$0x1]
        %v927 = vsel %vm538, %v788, %v926
        %928 = vst [vmem:[%s535 + $0x64] sm:$0x1] %v927
        %v929 = vld [vmem:[%s535 + $0x68] sm:$0xf]
        %v930 = vsel %vm862, %v795, %v929
        %931 = vst [vmem:[%s535 + $0x68] sm:$0xf] %v930
        %v932 = vld [vmem:[%s535 + $0x6c] sm:$0x1]
        %v933 = vsel %vm538, %v796, %v932
        %934 = vst [vmem:[%s535 + $0x6c] sm:$0x1] %v933
        %v935 = vld [vmem:[%s535 + $0x70] sm:$0xf]
        %v936 = vsel %vm862, %v803, %v935
        %937 = vst [vmem:[%s535 + $0x70] sm:$0xf] %v936
        %v938 = vld [vmem:[%s535 + $0x74] sm:$0x1]
        %v939 = vsel %vm538, %v804, %v938
        %940 = vst [vmem:[%s535 + $0x74] sm:$0x1] %v939
        %v941 = vld [vmem:[%s535 + $0x78] sm:$0xf]
        %v942 = vsel %vm862, %v811, %v941
        %943 = vst [vmem:[%s535 + $0x78] sm:$0xf] %v942
        %v944 = vld [vmem:[%s535 + $0x7c] sm:$0x1]
        %v945 = vsel %vm538, %v812, %v944
        %946 = vst [vmem:[%s535 + $0x7c] sm:$0x1] %v945
        %v947 = vld [vmem:[%s535 + $0x80] sm:$0xf]
        %v948 = vsel %vm862, %v819, %v947
        %949 = vst [vmem:[%s535 + $0x80] sm:$0xf] %v948
        %v950 = vld [vmem:[%s535 + $0x84] sm:$0x1]
        %v951 = vsel %vm538, %v820, %v950
        %952 = vst [vmem:[%s535 + $0x84] sm:$0x1] %v951
        %v953 = vld [vmem:[%s535 + $0x88] sm:$0xf]
        %v954 = vsel %vm862, %v827, %v953
        %955 = vst [vmem:[%s535 + $0x88] sm:$0xf] %v954
        %v956 = vld [vmem:[%s535 + $0x8c] sm:$0x1]
        %v957 = vsel %vm538, %v828, %v956
        %958 = vst [vmem:[%s535 + $0x8c] sm:$0x1] %v957
        %v959 = vld [vmem:[#allocation2] sm:$0xf]
        %v960 = vld [vmem:[#allocation2 + $0x8] sm:$0xf]
        %v961 = vld [vmem:[#allocation2 + $0x10] sm:$0xf]
        %v962 = vld [vmem:[#allocation2 + $0x18] sm:$0xf]
        %v963 = vld [vmem:[#allocation2 + $0x20] sm:$0xf]
        %v964 = vld [vmem:[#allocation2 + $0x28] sm:$0xf]
        %v965 = vld [vmem:[#allocation2 + $0x30] sm:$0xf]
        %v966 = vld [vmem:[#allocation2 + $0x38] sm:$0xf]
        %v967 = vld [vmem:[#allocation2 + $0x50] sm:$0xf]
        %v968 = vld [vmem:[#allocation2 + $0x58] sm:$0xf]
        %v969 = vld [vmem:[#allocation2 + $0x60] sm:$0xf]
        %v970 = vld [vmem:[#allocation2 + $0x68] sm:$0xf]
        %v971 = vld [vmem:[#allocation2 + $0x70] sm:$0xf]
        %v972 = vld [vmem:[#allocation2 + $0x78] sm:$0xf]
        %v973 = vld [vmem:[#allocation2 + $0x80] sm:$0xf]
        %v974 = vld [vmem:[#allocation2 + $0x88] sm:$0xf]
        %v975 = vld [vmem:[#allocation6] sm:$0xf]
        %v976 = vld [vmem:[#allocation6 + $0x4] sm:$0xf]
        %v977 = vld [vmem:[#allocation6 + $0x8] sm:$0xf]
        %v978 = vld [vmem:[#allocation6 + $0xc] sm:$0xf]
        %v979 = vld [vmem:[#allocation2 + $0x4] sm:$0x1]
        %v980 = vld [vmem:[#allocation2 + $0xc] sm:$0x1]
        %v981 = vld [vmem:[#allocation2 + $0x14] sm:$0x1]
        %v982 = vld [vmem:[#allocation2 + $0x1c] sm:$0x1]
        %v983 = vld [vmem:[#allocation2 + $0x24] sm:$0x1]
        %v984 = vld [vmem:[#allocation2 + $0x2c] sm:$0x1]
        %v985 = vld [vmem:[#allocation2 + $0x34] sm:$0x1]
        %v986 = vld [vmem:[#allocation2 + $0x3c] sm:$0x1]
        %v987 = vld [vmem:[#allocation2 + $0x54] sm:$0x1]
        %v988 = vld [vmem:[#allocation2 + $0x5c] sm:$0x1]
        %v989 = vld [vmem:[#allocation2 + $0x64] sm:$0x1]
        %v990 = vld [vmem:[#allocation2 + $0x6c] sm:$0x1]
        %v991 = vld [vmem:[#allocation2 + $0x74] sm:$0x1]
        %v992 = vld [vmem:[#allocation2 + $0x7c] sm:$0x1]
        %v993 = vld [vmem:[#allocation2 + $0x84] sm:$0x1]
        %v994 = vld [vmem:[#allocation2 + $0x8c] sm:$0x1]
        %vm995 = vsmask.f32 3328
        %vm996 = vsmask.f32 7440
        %vm997 = vmor %vm995, %vm996
        %v999 = vshrl.u32 %v959, 16
        %v1001 = vrot.slane %v999, 4
        %v1002 = vshll.u32 %v959, 16
        %v1004 = vrot.slane %v1002, 5
        %v1005 = vor.u32 %v1001, %v1004
        %v1006 = vrot.slane %v1005, 4
        %v1008 = vshll.u32 %v979, 16
        %v1010 = vrot.slane %v1008, 5
        %v1011 = vsel %vm997, %v1006, %v1010
        %v1013 = vshrl.u32 %v960, 16
        %v1015 = vrot.slane %v1013, 4
        %v1016 = vshll.u32 %v960, 16
        %v1018 = vrot.slane %v1016, 5
        %v1019 = vor.u32 %v1015, %v1018
        %v1020 = vrot.slane %v1019, 4
        %v1022 = vshll.u32 %v980, 16
        %v1024 = vrot.slane %v1022, 5
        %v1025 = vsel %vm997, %v1020, %v1024
        %v1027 = vshrl.u32 %v961, 16
        %v1029 = vrot.slane %v1027, 4
        %v1030 = vshll.u32 %v961, 16
        %v1032 = vrot.slane %v1030, 5
        %v1033 = vor.u32 %v1029, %v1032
        %v1034 = vrot.slane %v1033, 4
        %v1036 = vshll.u32 %v981, 16
        %v1038 = vrot.slane %v1036, 5
        %v1039 = vsel %vm997, %v1034, %v1038
        %v1041 = vshrl.u32 %v962, 16
        %v1043 = vrot.slane %v1041, 4
        %v1044 = vshll.u32 %v962, 16
        %v1046 = vrot.slane %v1044, 5
        %v1047 = vor.u32 %v1043, %v1046
        %v1048 = vrot.slane %v1047, 4
        %v1050 = vshll.u32 %v982, 16
        %v1052 = vrot.slane %v1050, 5
        %v1053 = vsel %vm997, %v1048, %v1052
        %v1055 = vshrl.u32 %v963, 16
        %v1057 = vrot.slane %v1055, 4
        %v1058 = vshll.u32 %v963, 16
        %v1060 = vrot.slane %v1058, 5
        %v1061 = vor.u32 %v1057, %v1060
        %v1062 = vrot.slane %v1061, 4
        %v1064 = vshll.u32 %v983, 16
        %v1066 = vrot.slane %v1064, 5
        %v1067 = vsel %vm997, %v1062, %v1066
        %v1069 = vshrl.u32 %v964, 16
        %v1071 = vrot.slane %v1069, 4
        %v1072 = vshll.u32 %v964, 16
        %v1074 = vrot.slane %v1072, 5
        %v1075 = vor.u32 %v1071, %v1074
        %v1076 = vrot.slane %v1075, 4
        %v1078 = vshll.u32 %v984, 16
        %v1080 = vrot.slane %v1078, 5
        %v1081 = vsel %vm997, %v1076, %v1080
        %v1083 = vshrl.u32 %v965, 16
        %v1085 = vrot.slane %v1083, 4
        %v1086 = vshll.u32 %v965, 16
        %v1088 = vrot.slane %v1086, 5
        %v1089 = vor.u32 %v1085, %v1088
        %v1090 = vrot.slane %v1089, 4
        %v1092 = vshll.u32 %v985, 16
        %v1094 = vrot.slane %v1092, 5
        %v1095 = vsel %vm997, %v1090, %v1094
        %v1097 = vshrl.u32 %v966, 16
        %v1099 = vrot.slane %v1097, 4
        %v1100 = vshll.u32 %v966, 16
        %v1102 = vrot.slane %v1100, 5
        %v1103 = vor.u32 %v1099, %v1102
        %v1104 = vrot.slane %v1103, 4
        %v1106 = vshll.u32 %v986, 16
        %v1108 = vrot.slane %v1106, 5
        %v1109 = vsel %vm997, %v1104, %v1108
        %v1111 = vshrl.u32 %v967, 16
        %v1113 = vrot.slane %v1111, 4
        %v1114 = vshll.u32 %v967, 16
        %v1116 = vrot.slane %v1114, 5
        %v1117 = vor.u32 %v1113, %v1116
        %v1118 = vrot.slane %v1117, 4
        %v1120 = vshll.u32 %v987, 16
        %v1122 = vrot.slane %v1120, 5
        %v1123 = vsel %vm997, %v1118, %v1122
        %v1125 = vshrl.u32 %v968, 16
        %v1127 = vrot.slane %v1125, 4
        %v1128 = vshll.u32 %v968, 16
        %v1130 = vrot.slane %v1128, 5
        %v1131 = vor.u32 %v1127, %v1130
        %v1132 = vrot.slane %v1131, 4
        %v1134 = vshll.u32 %v988, 16
        %v1136 = vrot.slane %v1134, 5
        %v1137 = vsel %vm997, %v1132, %v1136
        %v1139 = vshrl.u32 %v969, 16
        %v1141 = vrot.slane %v1139, 4
        %v1142 = vshll.u32 %v969, 16
        %v1144 = vrot.slane %v1142, 5
        %v1145 = vor.u32 %v1141, %v1144
        %v1146 = vrot.slane %v1145, 4
        %v1148 = vshll.u32 %v989, 16
        %v1150 = vrot.slane %v1148, 5
        %v1151 = vsel %vm997, %v1146, %v1150
        %v1153 = vshrl.u32 %v970, 16
        %v1155 = vrot.slane %v1153, 4
        %v1156 = vshll.u32 %v970, 16
        %v1158 = vrot.slane %v1156, 5
        %v1159 = vor.u32 %v1155, %v1158
        %v1160 = vrot.slane %v1159, 4
        %v1162 = vshll.u32 %v990, 16
        %v1164 = vrot.slane %v1162, 5
        %v1165 = vsel %vm997, %v1160, %v1164
        %v1167 = vshrl.u32 %v971, 16
        %v1169 = vrot.slane %v1167, 4
        %v1170 = vshll.u32 %v971, 16
        %v1172 = vrot.slane %v1170, 5
        %v1173 = vor.u32 %v1169, %v1172
        %v1174 = vrot.slane %v1173, 4
        %v1176 = vshll.u32 %v991, 16
        %v1178 = vrot.slane %v1176, 5
        %v1179 = vsel %vm997, %v1174, %v1178
        %v1181 = vshrl.u32 %v972, 16
        %v1183 = vrot.slane %v1181, 4
        %v1184 = vshll.u32 %v972, 16
        %v1186 = vrot.slane %v1184, 5
        %v1187 = vor.u32 %v1183, %v1186
        %v1188 = vrot.slane %v1187, 4
        %v1190 = vshll.u32 %v992, 16
        %v1192 = vrot.slane %v1190, 5
        %v1193 = vsel %vm997, %v1188, %v1192
        %v1195 = vshrl.u32 %v973, 16
        %v1197 = vrot.slane %v1195, 4
        %v1198 = vshll.u32 %v973, 16
        %v1200 = vrot.slane %v1198, 5
        %v1201 = vor.u32 %v1197, %v1200
        %v1202 = vrot.slane %v1201, 4
        %v1204 = vshll.u32 %v993, 16
        %v1206 = vrot.slane %v1204, 5
        %v1207 = vsel %vm997, %v1202, %v1206
        %v1209 = vshrl.u32 %v974, 16
        %v1211 = vrot.slane %v1209, 4
        %v1212 = vshll.u32 %v974, 16
        %v1214 = vrot.slane %v1212, 5
        %v1215 = vor.u32 %v1211, %v1214
        %v1216 = vrot.slane %v1215, 4
        %v1218 = vshll.u32 %v994, 16
        %v1220 = vrot.slane %v1218, 5
        %v1221 = vsel %vm997, %v1216, %v1220
        %s1222 = scalar_lea.vmem [#allocation6], 16
        %v1223 = vld [vmem:[%s1222] sm:$0xf]
        %v1224 = vld [vmem:[%s1222 + $0x4] sm:$0xf]
        %v1225 = vld [vmem:[%s1222 + $0x8] sm:$0xf]
        %v1226 = vld [vmem:[%s1222 + $0xc] sm:$0xf]
        %v1227 = vunpack.c.l.b16 %v1011
        %v1228 = vunpack.c.l.b16 %v1025
        %v1229 = vunpack.c.l.b16 %v1039
        %v1230 = vunpack.c.l.b16 %v1053
        %v1231 = vunpack.c.l.b16 %v1067
        %v1232 = vunpack.c.l.b16 %v1081
        %v1233 = vunpack.c.l.b16 %v1095
        %v1234 = vunpack.c.l.b16 %v1109
        %v1235 = vunpack.c.l.b16 %v1123
        %v1236 = vunpack.c.l.b16 %v1137
        %v1237 = vunpack.c.l.b16 %v1151
        %v1238 = vunpack.c.l.b16 %v1165
        %v1239 = vunpack.c.l.b16 %v1179
        %v1240 = vunpack.c.l.b16 %v1193
        %v1241 = vunpack.c.l.b16 %v1207
        %v1242 = vunpack.c.l.b16 %v1221
        %v1243 = vpack.c.b16 %v1228, %v1227
        %v1244 = vpack.c.b16 %v1230, %v1229
        %v1245 = vpack.c.b16 %v1232, %v1231
        %v1246 = vpack.c.b16 %v1234, %v1233
        %v1247 = vpack.c.b16 %v1236, %v1235
        %v1248 = vpack.c.b16 %v1238, %v1237
        %v1249 = vpack.c.b16 %v1240, %v1239
        %v1250 = vpack.c.b16 %v1242, %v1241
        %v1255 = vunpack.c.l.b16 %v1223
        %v1256 = vunpack.c.l.b16 %v1224
        %v1257 = vunpack.c.l.b16 %v1225
        %v1258 = vunpack.c.l.b16 %v1226
        %v1259 = vpack.c.b16 %v1256, %v1255
        %v1260 = vpack.c.b16 %v1258, %v1257
        %vm1263 = vcmask 261120
        %v1265 = vsel %vm1263, %v1243, 0
        %v1268 = vsel %vm1263, %v1244, 0
        %v1271 = vsel %vm1263, %v1245, 0
        %v1274 = vsel %vm1263, %v1246, 0
        %v1277 = vsel %vm1263, %v1247, 0
        %v1280 = vsel %vm1263, %v1248, 0
        %v1283 = vsel %vm1263, %v1249, 0
        %v1286 = vsel %vm1263, %v1250, 0
        %1288 = vmatprep.subr.bf16.mxu0 0
        %1289 = vmatpush1.bf16.msra.mxu0 0
        %1290 = vmatprep.subr.bf16.mxu0 0
        %1291 = vmatpush1.bf16.msra.mxu0 0
        %1292 = vmatprep.subr.bf16.mxu0 0
        %1293 = vmatpush1.bf16.msra.mxu0 0
        %1294 = vmatprep.subr.bf16.mxu0 0
        %1295 = vmatpush1.bf16.msra.mxu0 0
        %1296 = vmatprep.subr.bf16.mxu0 0
        %1297 = vmatpush1.bf16.msra.mxu0 0
        %1298 = vmatprep.subr.bf16.mxu0 0
        %1299 = vmatpush1.bf16.msra.mxu0 0
        %1300 = vmatprep.subr.bf16.mxu0 0
        %1301 = vmatpush1.bf16.msra.mxu0 %v1260
        %1302 = vmatprep.subr.bf16.mxu0 0
        %1303 = vmatpush1.bf16.msra.mxu0 %v1259
        %1304 = vmatprep.subr.bf16.mxu0 0
        %1305 = vmatpush2.bf16.msra.mxu0 0
        %1306 = vmatprep.subr.bf16.mxu0 0
        %1307 = vmatpush2.bf16.msra.mxu0 0
        %1308 = vmatprep.subr.bf16.mxu0 0
        %1309 = vmatpush2.bf16.msra.mxu0 0
        %1310 = vmatprep.subr.bf16.mxu0 0
        %1311 = vmatpush2.bf16.msra.mxu0 0
        %1312 = vmatprep.subr.bf16.mxu0 0
        %1313 = vmatpush2.bf16.msra.mxu0 0
        %1314 = vmatprep.subr.bf16.mxu0 0
        %1315 = vmatpush2.bf16.msra.mxu0 0
        %1316 = vmatprep.subr.bf16.mxu0 0
        %1317 = vmatpush2.bf16.msra.mxu0 0
        %1318 = vmatprep.subr.bf16.mxu0 0
        %1319 = vmatpush2.bf16.msra.mxu0 0
        %1320 = vmatprep.mubr.bf16.mxu0 0
        %1321 = vmatmul.mubr.bf16.gmra.mxu0 %v1265
        %v1322 = vpop.f32.mrf.mxu0
        %v1323 = vadd.f32 0.0, %v1322
        %v1324 = vpop.f32.mrf.mxu0
        %v1325 = vpop.f32.mrf.mxu0
        %v1326 = vadd.f32 0.0, %v1325
        %v1327 = vpop.f32.mrf.mxu0
        %1328 = vmatprep.mubr.bf16.mxu0 0
        %1329 = vmatmul.mubr.bf16.gmra.mxu0 %v1268
        %v1330 = vpop.f32.mrf.mxu0
        %v1331 = vadd.f32 0.0, %v1330
        %v1332 = vpop.f32.mrf.mxu0
        %v1333 = vpop.f32.mrf.mxu0
        %v1334 = vadd.f32 0.0, %v1333
        %v1335 = vpop.f32.mrf.mxu0
        %1336 = vmatprep.mubr.bf16.mxu0 0
        %1337 = vmatmul.mubr.bf16.gmra.mxu0 %v1271
        %v1338 = vpop.f32.mrf.mxu0
        %v1339 = vadd.f32 0.0, %v1338
        %v1340 = vpop.f32.mrf.mxu0
        %v1341 = vpop.f32.mrf.mxu0
        %v1342 = vadd.f32 0.0, %v1341
        %v1343 = vpop.f32.mrf.mxu0
        %1344 = vmatprep.mubr.bf16.mxu0 0
        %1345 = vmatmul.mubr.bf16.gmra.mxu0 %v1274
        %v1346 = vpop.f32.mrf.mxu0
        %v1347 = vadd.f32 0.0, %v1346
        %v1348 = vpop.f32.mrf.mxu0
        %v1349 = vpop.f32.mrf.mxu0
        %v1350 = vadd.f32 0.0, %v1349
        %v1351 = vpop.f32.mrf.mxu0
        %1352 = vmatprep.mubr.bf16.mxu0 0
        %1353 = vmatmul.mubr.bf16.gmra.mxu0 %v1277
        %v1354 = vpop.f32.mrf.mxu0
        %v1355 = vadd.f32 0.0, %v1354
        %v1356 = vpop.f32.mrf.mxu0
        %v1357 = vpop.f32.mrf.mxu0
        %v1358 = vadd.f32 0.0, %v1357
        %v1359 = vpop.f32.mrf.mxu0
        %1360 = vmatprep.mubr.bf16.mxu0 0
        %1361 = vmatmul.mubr.bf16.gmra.mxu0 %v1280
        %v1362 = vpop.f32.mrf.mxu0
        %v1363 = vadd.f32 0.0, %v1362
        %v1364 = vpop.f32.mrf.mxu0
        %v1365 = vpop.f32.mrf.mxu0
        %v1366 = vadd.f32 0.0, %v1365
        %v1367 = vpop.f32.mrf.mxu0
        %1368 = vmatprep.mubr.bf16.mxu0 0
        %1369 = vmatmul.mubr.bf16.gmra.mxu0 %v1283
        %v1370 = vpop.f32.mrf.mxu0
        %v1371 = vadd.f32 0.0, %v1370
        %v1372 = vpop.f32.mrf.mxu0
        %v1373 = vpop.f32.mrf.mxu0
        %v1374 = vadd.f32 0.0, %v1373
        %v1375 = vpop.f32.mrf.mxu0
        %1376 = vmatprep.mubr.bf16.mxu0 0
        %1377 = vmatmul.mubr.bf16.gmra.mxu0 %v1286
        %v1378 = vpop.f32.mrf.mxu0
        %v1379 = vadd.f32 0.0, %v1378
        %v1380 = vpop.f32.mrf.mxu0
        %v1381 = vpop.f32.mrf.mxu0
        %v1382 = vadd.f32 0.0, %v1381
        %v1383 = vpop.f32.mrf.mxu0
        %1384 = vdwg.mxu0
        %v1401 = vunpack.c.l.b16 %v959
        %v1402 = vunpack.c.l.b16 %v960
        %v1403 = vunpack.c.l.b16 %v961
        %v1404 = vunpack.c.l.b16 %v962
        %v1405 = vunpack.c.l.b16 %v963
        %v1406 = vunpack.c.l.b16 %v964
        %v1407 = vunpack.c.l.b16 %v965
        %v1408 = vunpack.c.l.b16 %v966
        %v1409 = vunpack.c.l.b16 %v967
        %v1410 = vunpack.c.l.b16 %v968
        %v1411 = vunpack.c.l.b16 %v969
        %v1412 = vunpack.c.l.b16 %v970
        %v1413 = vunpack.c.l.b16 %v971
        %v1414 = vunpack.c.l.b16 %v972
        %v1415 = vunpack.c.l.b16 %v973
        %v1416 = vunpack.c.l.b16 %v974
        %v1417 = vpack.c.b16 %v1402, %v1401
        %v1418 = vpack.c.b16 %v1404, %v1403
        %v1419 = vpack.c.b16 %v1406, %v1405
        %v1420 = vpack.c.b16 %v1408, %v1407
        %v1421 = vpack.c.b16 %v1410, %v1409
        %v1422 = vpack.c.b16 %v1412, %v1411
        %v1423 = vpack.c.b16 %v1414, %v1413
        %v1424 = vpack.c.b16 %v1416, %v1415
        %v1429 = vunpack.c.l.b16 %v975
        %v1430 = vunpack.c.l.b16 %v976
        %v1431 = vunpack.c.l.b16 %v977
        %v1432 = vunpack.c.l.b16 %v978
        %v1433 = vpack.c.b16 %v1430, %v1429
        %v1434 = vpack.c.b16 %v1432, %v1431
        %v1438 = vsel %vm1263, %v1417, 0
        %v1441 = vsel %vm1263, %v1418, 0
        %v1444 = vsel %vm1263, %v1419, 0
        %v1447 = vsel %vm1263, %v1420, 0
        %v1450 = vsel %vm1263, %v1421, 0
        %v1453 = vsel %vm1263, %v1422, 0
        %v1456 = vsel %vm1263, %v1423, 0
        %v1459 = vsel %vm1263, %v1424, 0
        %1461 = vmatprep.subr.bf16.mxu0 0
        %1462 = vmatpush1.bf16.msra.mxu0 0
        %1463 = vmatprep.subr.bf16.mxu0 0
        %1464 = vmatpush1.bf16.msra.mxu0 0
        %1465 = vmatprep.subr.bf16.mxu0 0
        %1466 = vmatpush1.bf16.msra.mxu0 0
        %1467 = vmatprep.subr.bf16.mxu0 0
        %1468 = vmatpush1.bf16.msra.mxu0 0
        %1469 = vmatprep.subr.bf16.mxu0 0
        %1470 = vmatpush1.bf16.msra.mxu0 0
        %1471 = vmatprep.subr.bf16.mxu0 0
        %1472 = vmatpush1.bf16.msra.mxu0 0
        %1473 = vmatprep.subr.bf16.mxu0 0
        %1474 = vmatpush1.bf16.msra.mxu0 %v1434
        %1475 = vmatprep.subr.bf16.mxu0 0
        %1476 = vmatpush1.bf16.msra.mxu0 %v1433
        %1477 = vmatprep.subr.bf16.mxu0 0
        %1478 = vmatpush2.bf16.msra.mxu0 0
        %1479 = vmatprep.subr.bf16.mxu0 0
        %1480 = vmatpush2.bf16.msra.mxu0 0
        %1481 = vmatprep.subr.bf16.mxu0 0
        %1482 = vmatpush2.bf16.msra.mxu0 0
        %1483 = vmatprep.subr.bf16.mxu0 0
        %1484 = vmatpush2.bf16.msra.mxu0 0
        %1485 = vmatprep.subr.bf16.mxu0 0
        %1486 = vmatpush2.bf16.msra.mxu0 0
        %1487 = vmatprep.subr.bf16.mxu0 0
        %1488 = vmatpush2.bf16.msra.mxu0 0
        %1489 = vmatprep.subr.bf16.mxu0 0
        %1490 = vmatpush2.bf16.msra.mxu0 0
        %1491 = vmatprep.subr.bf16.mxu0 0
        %1492 = vmatpush2.bf16.msra.mxu0 0
        %1493 = vmatprep.mubr.bf16.mxu0 0
        %1494 = vmatmul.mubr.bf16.gmra.mxu0 %v1438
        %v1495 = vpop.f32.mrf.mxu0
        %v1496 = vadd.f32 %v1323, %v1495
        %v1497 = vpop.f32.mrf.mxu0
        %v1498 = vpop.f32.mrf.mxu0
        %v1499 = vadd.f32 %v1326, %v1498
        %v1500 = vpop.f32.mrf.mxu0
        %1501 = vmatprep.mubr.bf16.mxu0 0
        %1502 = vmatmul.mubr.bf16.gmra.mxu0 %v1441
        %v1503 = vpop.f32.mrf.mxu0
        %v1504 = vadd.f32 %v1331, %v1503
        %v1505 = vpop.f32.mrf.mxu0
        %v1506 = vpop.f32.mrf.mxu0
        %v1507 = vadd.f32 %v1334, %v1506
        %v1508 = vpop.f32.mrf.mxu0
        %1509 = vmatprep.mubr.bf16.mxu0 0
        %1510 = vmatmul.mubr.bf16.gmra.mxu0 %v1444
        %v1511 = vpop.f32.mrf.mxu0
        %v1512 = vadd.f32 %v1339, %v1511
        %v1513 = vpop.f32.mrf.mxu0
        %v1514 = vpop.f32.mrf.mxu0
        %v1515 = vadd.f32 %v1342, %v1514
        %v1516 = vpop.f32.mrf.mxu0
        %1517 = vmatprep.mubr.bf16.mxu0 0
        %1518 = vmatmul.mubr.bf16.gmra.mxu0 %v1447
        %v1519 = vpop.f32.mrf.mxu0
        %v1520 = vadd.f32 %v1347, %v1519
        %v1521 = vpop.f32.mrf.mxu0
        %v1522 = vpop.f32.mrf.mxu0
        %v1523 = vadd.f32 %v1350, %v1522
        %v1524 = vpop.f32.mrf.mxu0
        %1525 = vmatprep.mubr.bf16.mxu0 0
        %1526 = vmatmul.mubr.bf16.gmra.mxu0 %v1450
        %v1527 = vpop.f32.mrf.mxu0
        %v1528 = vadd.f32 %v1355, %v1527
        %v1529 = vpop.f32.mrf.mxu0
        %v1530 = vpop.f32.mrf.mxu0
        %v1531 = vadd.f32 %v1358, %v1530
        %v1532 = vpop.f32.mrf.mxu0
        %1533 = vmatprep.mubr.bf16.mxu0 0
        %1534 = vmatmul.mubr.bf16.gmra.mxu0 %v1453
        %v1535 = vpop.f32.mrf.mxu0
        %v1536 = vadd.f32 %v1363, %v1535
        %v1537 = vpop.f32.mrf.mxu0
        %v1538 = vpop.f32.mrf.mxu0
        %v1539 = vadd.f32 %v1366, %v1538
        %v1540 = vpop.f32.mrf.mxu0
        %1541 = vmatprep.mubr.bf16.mxu0 0
        %1542 = vmatmul.mubr.bf16.gmra.mxu0 %v1456
        %v1543 = vpop.f32.mrf.mxu0
        %v1544 = vadd.f32 %v1371, %v1543
        %v1545 = vpop.f32.mrf.mxu0
        %v1546 = vpop.f32.mrf.mxu0
        %v1547 = vadd.f32 %v1374, %v1546
        %v1548 = vpop.f32.mrf.mxu0
        %1549 = vmatprep.mubr.bf16.mxu0 0
        %1550 = vmatmul.mubr.bf16.gmra.mxu0 %v1459
        %v1551 = vpop.f32.mrf.mxu0
        %v1552 = vadd.f32 %v1379, %v1551
        %v1553 = vpop.f32.mrf.mxu0
        %v1554 = vpop.f32.mrf.mxu0
        %v1555 = vadd.f32 %v1382, %v1554
        %v1556 = vpop.f32.mrf.mxu0
        %1557 = vdwg.mxu0
        %v1558 = vld [vmem:[#allocation2] sm:$0xe]
        %v1559 = vld [vmem:[#allocation2 + $0x8] sm:$0xe]
        %v1560 = vld [vmem:[#allocation2 + $0x10] sm:$0xe]
        %v1561 = vld [vmem:[#allocation2 + $0x18] sm:$0xe]
        %v1562 = vld [vmem:[#allocation2 + $0x20] sm:$0xe]
        %v1563 = vld [vmem:[#allocation2 + $0x28] sm:$0xe]
        %v1564 = vld [vmem:[#allocation2 + $0x30] sm:$0xe]
        %v1565 = vld [vmem:[#allocation2 + $0x38] sm:$0xe]
        %v1566 = vld [vmem:[#allocation2 + $0x50] sm:$0xe]
        %v1567 = vld [vmem:[#allocation2 + $0x58] sm:$0xe]
        %v1568 = vld [vmem:[#allocation2 + $0x60] sm:$0xe]
        %v1569 = vld [vmem:[#allocation2 + $0x68] sm:$0xe]
        %v1570 = vld [vmem:[#allocation2 + $0x70] sm:$0xe]
        %v1571 = vld [vmem:[#allocation2 + $0x78] sm:$0xe]
        %v1572 = vld [vmem:[#allocation2 + $0x80] sm:$0xe]
        %v1573 = vld [vmem:[#allocation2 + $0x88] sm:$0xe]
        %vm1606 = vcmask 1042432
        %vm1607 = vcmask 1046532
        %vm1608 = vmor %vm1606, %vm1607
        %v1609 = vrot.slane %v1558, 5
        %v1610 = vrot.slane %v1609, 4
        %v1611 = vrot.slane %v979, 5
        %v1612 = vsel %vm1608, %v1610, %v1611
        %v1613 = vrot.slane %v1559, 5
        %v1614 = vrot.slane %v1613, 4
        %v1615 = vrot.slane %v980, 5
        %v1616 = vsel %vm1608, %v1614, %v1615
        %v1617 = vrot.slane %v1560, 5
        %v1618 = vrot.slane %v1617, 4
        %v1619 = vrot.slane %v981, 5
        %v1620 = vsel %vm1608, %v1618, %v1619
        %v1621 = vrot.slane %v1561, 5
        %v1622 = vrot.slane %v1621, 4
        %v1623 = vrot.slane %v982, 5
        %v1624 = vsel %vm1608, %v1622, %v1623
        %v1625 = vrot.slane %v1562, 5
        %v1626 = vrot.slane %v1625, 4
        %v1627 = vrot.slane %v983, 5
        %v1628 = vsel %vm1608, %v1626, %v1627
        %v1629 = vrot.slane %v1563, 5
        %v1630 = vrot.slane %v1629, 4
        %v1631 = vrot.slane %v984, 5
        %v1632 = vsel %vm1608, %v1630, %v1631
        %v1633 = vrot.slane %v1564, 5
        %v1634 = vrot.slane %v1633, 4
        %v1635 = vrot.slane %v985, 5
        %v1636 = vsel %vm1608, %v1634, %v1635
        %v1637 = vrot.slane %v1565, 5
        %v1638 = vrot.slane %v1637, 4
        %v1639 = vrot.slane %v986, 5
        %v1640 = vsel %vm1608, %v1638, %v1639
        %v1641 = vrot.slane %v1566, 5
        %v1642 = vrot.slane %v1641, 4
        %v1643 = vrot.slane %v987, 5
        %v1644 = vsel %vm1608, %v1642, %v1643
        %v1645 = vrot.slane %v1567, 5
        %v1646 = vrot.slane %v1645, 4
        %v1647 = vrot.slane %v988, 5
        %v1648 = vsel %vm1608, %v1646, %v1647
        %v1649 = vrot.slane %v1568, 5
        %v1650 = vrot.slane %v1649, 4
        %v1651 = vrot.slane %v989, 5
        %v1652 = vsel %vm1608, %v1650, %v1651
        %v1653 = vrot.slane %v1569, 5
        %v1654 = vrot.slane %v1653, 4
        %v1655 = vrot.slane %v990, 5
        %v1656 = vsel %vm1608, %v1654, %v1655
        %v1657 = vrot.slane %v1570, 5
        %v1658 = vrot.slane %v1657, 4
        %v1659 = vrot.slane %v991, 5
        %v1660 = vsel %vm1608, %v1658, %v1659
        %v1661 = vrot.slane %v1571, 5
        %v1662 = vrot.slane %v1661, 4
        %v1663 = vrot.slane %v992, 5
        %v1664 = vsel %vm1608, %v1662, %v1663
        %v1665 = vrot.slane %v1572, 5
        %v1666 = vrot.slane %v1665, 4
        %v1667 = vrot.slane %v993, 5
        %v1668 = vsel %vm1608, %v1666, %v1667
        %v1669 = vrot.slane %v1573, 5
        %v1670 = vrot.slane %v1669, 4
        %v1671 = vrot.slane %v994, 5
        %v1672 = vsel %vm1608, %v1670, %v1671
        %s1673 = scalar_lea.vmem [#allocation6], 32
        %v1674 = vld [vmem:[%s1673] sm:$0xf]
        %v1675 = vld [vmem:[%s1673 + $0x4] sm:$0xf]
        %v1676 = vld [vmem:[%s1673 + $0x8] sm:$0xf]
        %v1677 = vld [vmem:[%s1673 + $0xc] sm:$0xf]
        %v1678 = vunpack.c.l.b16 %v1612
        %v1679 = vunpack.c.l.b16 %v1616
        %v1680 = vunpack.c.l.b16 %v1620
        %v1681 = vunpack.c.l.b16 %v1624
        %v1682 = vunpack.c.l.b16 %v1628
        %v1683 = vunpack.c.l.b16 %v1632
        %v1684 = vunpack.c.l.b16 %v1636
        %v1685 = vunpack.c.l.b16 %v1640
        %v1686 = vunpack.c.l.b16 %v1644
        %v1687 = vunpack.c.l.b16 %v1648
        %v1688 = vunpack.c.l.b16 %v1652
        %v1689 = vunpack.c.l.b16 %v1656
        %v1690 = vunpack.c.l.b16 %v1660
        %v1691 = vunpack.c.l.b16 %v1664
        %v1692 = vunpack.c.l.b16 %v1668
        %v1693 = vunpack.c.l.b16 %v1672
        %v1694 = vpack.c.b16 %v1679, %v1678
        %v1695 = vpack.c.b16 %v1681, %v1680
        %v1696 = vpack.c.b16 %v1683, %v1682
        %v1697 = vpack.c.b16 %v1685, %v1684
        %v1698 = vpack.c.b16 %v1687, %v1686
        %v1699 = vpack.c.b16 %v1689, %v1688
        %v1700 = vpack.c.b16 %v1691, %v1690
        %v1701 = vpack.c.b16 %v1693, %v1692
        %v1706 = vunpack.c.l.b16 %v1674
        %v1707 = vunpack.c.l.b16 %v1675
        %v1708 = vunpack.c.l.b16 %v1676
        %v1709 = vunpack.c.l.b16 %v1677
        %v1710 = vpack.c.b16 %v1707, %v1706
        %v1711 = vpack.c.b16 %v1709, %v1708
        %v1715 = vsel %vm1263, %v1694, 0
        %v1718 = vsel %vm1263, %v1695, 0
        %v1721 = vsel %vm1263, %v1696, 0
        %v1724 = vsel %vm1263, %v1697, 0
        %v1727 = vsel %vm1263, %v1698, 0
        %v1730 = vsel %vm1263, %v1699, 0
        %v1733 = vsel %vm1263, %v1700, 0
        %v1736 = vsel %vm1263, %v1701, 0
        %1738 = vmatprep.subr.bf16.mxu0 0
        %1739 = vmatpush1.bf16.msra.mxu0 0
        %1740 = vmatprep.subr.bf16.mxu0 0
        %1741 = vmatpush1.bf16.msra.mxu0 0
        %1742 = vmatprep.subr.bf16.mxu0 0
        %1743 = vmatpush1.bf16.msra.mxu0 0
        %1744 = vmatprep.subr.bf16.mxu0 0
        %1745 = vmatpush1.bf16.msra.mxu0 0
        %1746 = vmatprep.subr.bf16.mxu0 0
        %1747 = vmatpush1.bf16.msra.mxu0 0
        %1748 = vmatprep.subr.bf16.mxu0 0
        %1749 = vmatpush1.bf16.msra.mxu0 0
        %1750 = vmatprep.subr.bf16.mxu0 0
        %1751 = vmatpush1.bf16.msra.mxu0 %v1711
        %1752 = vmatprep.subr.bf16.mxu0 0
        %1753 = vmatpush1.bf16.msra.mxu0 %v1710
        %1754 = vmatprep.subr.bf16.mxu0 0
        %1755 = vmatpush2.bf16.msra.mxu0 0
        %1756 = vmatprep.subr.bf16.mxu0 0
        %1757 = vmatpush2.bf16.msra.mxu0 0
        %1758 = vmatprep.subr.bf16.mxu0 0
        %1759 = vmatpush2.bf16.msra.mxu0 0
        %1760 = vmatprep.subr.bf16.mxu0 0
        %1761 = vmatpush2.bf16.msra.mxu0 0
        %1762 = vmatprep.subr.bf16.mxu0 0
        %1763 = vmatpush2.bf16.msra.mxu0 0
        %1764 = vmatprep.subr.bf16.mxu0 0
        %1765 = vmatpush2.bf16.msra.mxu0 0
        %1766 = vmatprep.subr.bf16.mxu0 0
        %1767 = vmatpush2.bf16.msra.mxu0 0
        %1768 = vmatprep.subr.bf16.mxu0 0
        %1769 = vmatpush2.bf16.msra.mxu0 0
        %1770 = vmatprep.mubr.bf16.mxu0 0
        %1771 = vmatmul.mubr.bf16.gmra.mxu0 %v1715
        %v1772 = vpop.f32.mrf.mxu0
        %v1773 = vadd.f32 0.0, %v1772
        %v1774 = vpop.f32.mrf.mxu0
        %v1775 = vpop.f32.mrf.mxu0
        %v1776 = vadd.f32 0.0, %v1775
        %v1777 = vpop.f32.mrf.mxu0
        %1778 = vmatprep.mubr.bf16.mxu0 0
        %1779 = vmatmul.mubr.bf16.gmra.mxu0 %v1718
        %v1780 = vpop.f32.mrf.mxu0
        %v1781 = vadd.f32 0.0, %v1780
        %v1782 = vpop.f32.mrf.mxu0
        %v1783 = vpop.f32.mrf.mxu0
        %v1784 = vadd.f32 0.0, %v1783
        %v1785 = vpop.f32.mrf.mxu0
        %1786 = vmatprep.mubr.bf16.mxu0 0
        %1787 = vmatmul.mubr.bf16.gmra.mxu0 %v1721
        %v1788 = vpop.f32.mrf.mxu0
        %v1789 = vadd.f32 0.0, %v1788
        %v1790 = vpop.f32.mrf.mxu0
        %v1791 = vpop.f32.mrf.mxu0
        %v1792 = vadd.f32 0.0, %v1791
        %v1793 = vpop.f32.mrf.mxu0
        %1794 = vmatprep.mubr.bf16.mxu0 0
        %1795 = vmatmul.mubr.bf16.gmra.mxu0 %v1724
        %v1796 = vpop.f32.mrf.mxu0
        %v1797 = vadd.f32 0.0, %v1796
        %v1798 = vpop.f32.mrf.mxu0
        %v1799 = vpop.f32.mrf.mxu0
        %v1800 = vadd.f32 0.0, %v1799
        %v1801 = vpop.f32.mrf.mxu0
        %1802 = vmatprep.mubr.bf16.mxu0 0
        %1803 = vmatmul.mubr.bf16.gmra.mxu0 %v1727
        %v1804 = vpop.f32.mrf.mxu0
        %v1805 = vadd.f32 0.0, %v1804
        %v1806 = vpop.f32.mrf.mxu0
        %v1807 = vpop.f32.mrf.mxu0
        %v1808 = vadd.f32 0.0, %v1807
        %v1809 = vpop.f32.mrf.mxu0
        %1810 = vmatprep.mubr.bf16.mxu0 0
        %1811 = vmatmul.mubr.bf16.gmra.mxu0 %v1730
        %v1812 = vpop.f32.mrf.mxu0
        %v1813 = vadd.f32 0.0, %v1812
        %v1814 = vpop.f32.mrf.mxu0
        %v1815 = vpop.f32.mrf.mxu0
        %v1816 = vadd.f32 0.0, %v1815
        %v1817 = vpop.f32.mrf.mxu0
        %1818 = vmatprep.mubr.bf16.mxu0 0
        %1819 = vmatmul.mubr.bf16.gmra.mxu0 %v1733
        %v1820 = vpop.f32.mrf.mxu0
        %v1821 = vadd.f32 0.0, %v1820
        %v1822 = vpop.f32.mrf.mxu0
        %v1823 = vpop.f32.mrf.mxu0
        %v1824 = vadd.f32 0.0, %v1823
        %v1825 = vpop.f32.mrf.mxu0
        %1826 = vmatprep.mubr.bf16.mxu0 0
        %1827 = vmatmul.mubr.bf16.gmra.mxu0 %v1736
        %v1828 = vpop.f32.mrf.mxu0
        %v1829 = vadd.f32 0.0, %v1828
        %v1830 = vpop.f32.mrf.mxu0
        %v1831 = vpop.f32.mrf.mxu0
        %v1832 = vadd.f32 0.0, %v1831
        %v1833 = vpop.f32.mrf.mxu0
        %1834 = vdwg.mxu0
        %v1835 = vadd.f32 %v1496, %v1773
        %v1836 = vadd.f32 %v1499, %v1776
        %v1837 = vadd.f32 %v1504, %v1781
        %v1838 = vadd.f32 %v1507, %v1784
        %v1839 = vadd.f32 %v1512, %v1789
        %v1840 = vadd.f32 %v1515, %v1792
        %v1841 = vadd.f32 %v1520, %v1797
        %v1842 = vadd.f32 %v1523, %v1800
        %v1843 = vadd.f32 %v1528, %v1805
        %v1844 = vadd.f32 %v1531, %v1808
        %v1845 = vadd.f32 %v1536, %v1813
        %v1846 = vadd.f32 %v1539, %v1816
        %v1847 = vadd.f32 %v1544, %v1821
        %v1848 = vadd.f32 %v1547, %v1824
        %v1849 = vadd.f32 %v1552, %v1829
        %v1850 = vadd.f32 %v1555, %v1832
        %v1851 = vld [vmem:[%s535] sm:$0xf]
        %v1852 = vld [vmem:[%s535 + $0x8] sm:$0xf]
        %v1853 = vld [vmem:[%s535 + $0x10] sm:$0xf]
        %v1854 = vld [vmem:[%s535 + $0x18] sm:$0xf]
        %v1855 = vld [vmem:[%s535 + $0x20] sm:$0xf]
        %v1856 = vld [vmem:[%s535 + $0x28] sm:$0xf]
        %v1857 = vld [vmem:[%s535 + $0x30] sm:$0xf]
        %v1858 = vld [vmem:[%s535 + $0x38] sm:$0xf]
        %v1859 = vld [vmem:[%s535 + $0x50] sm:$0xf]
        %v1860 = vld [vmem:[%s535 + $0x58] sm:$0xf]
        %v1861 = vld [vmem:[%s535 + $0x60] sm:$0xf]
        %v1862 = vld [vmem:[%s535 + $0x68] sm:$0xf]
        %v1863 = vld [vmem:[%s535 + $0x70] sm:$0xf]
        %v1864 = vld [vmem:[%s535 + $0x78] sm:$0xf]
        %v1865 = vld [vmem:[%s535 + $0x80] sm:$0xf]
        %v1866 = vld [vmem:[%s535 + $0x88] sm:$0xf]
        %s1867 = scalar_lea.vmem [#allocation6], 48
        %v1868 = vld [vmem:[%s1867] sm:$0xf]
        %v1869 = vld [vmem:[%s1867 + $0x4] sm:$0xf]
        %v1870 = vld [vmem:[%s1867 + $0x8] sm:$0xf]
        %v1871 = vld [vmem:[%s1867 + $0xc] sm:$0xf]
        %v1888 = vunpack.c.l.b16 %v1851
        %v1889 = vunpack.c.l.b16 %v1852
        %v1890 = vunpack.c.l.b16 %v1853
        %v1891 = vunpack.c.l.b16 %v1854
        %v1892 = vunpack.c.l.b16 %v1855
        %v1893 = vunpack.c.l.b16 %v1856
        %v1894 = vunpack.c.l.b16 %v1857
        %v1895 = vunpack.c.l.b16 %v1858
        %v1896 = vunpack.c.l.b16 %v1859
        %v1897 = vunpack.c.l.b16 %v1860
        %v1898 = vunpack.c.l.b16 %v1861
        %v1899 = vunpack.c.l.b16 %v1862
        %v1900 = vunpack.c.l.b16 %v1863
        %v1901 = vunpack.c.l.b16 %v1864
        %v1902 = vunpack.c.l.b16 %v1865
        %v1903 = vunpack.c.l.b16 %v1866
        %v1904 = vpack.c.b16 %v1889, %v1888
        %v1905 = vpack.c.b16 %v1891, %v1890
        %v1906 = vpack.c.b16 %v1893, %v1892
        %v1907 = vpack.c.b16 %v1895, %v1894
        %v1908 = vpack.c.b16 %v1897, %v1896
        %v1909 = vpack.c.b16 %v1899, %v1898
        %v1910 = vpack.c.b16 %v1901, %v1900
        %v1911 = vpack.c.b16 %v1903, %v1902
        %v1916 = vunpack.c.l.b16 %v1868
        %v1917 = vunpack.c.l.b16 %v1869
        %v1918 = vunpack.c.l.b16 %v1870
        %v1919 = vunpack.c.l.b16 %v1871
        %v1920 = vpack.c.b16 %v1917, %v1916
        %v1921 = vpack.c.b16 %v1919, %v1918
        %v1925 = vsel %vm1263, %v1904, 0
        %v1928 = vsel %vm1263, %v1905, 0
        %v1931 = vsel %vm1263, %v1906, 0
        %v1934 = vsel %vm1263, %v1907, 0
        %v1937 = vsel %vm1263, %v1908, 0
        %v1940 = vsel %vm1263, %v1909, 0
        %v1943 = vsel %vm1263, %v1910, 0
        %v1946 = vsel %vm1263, %v1911, 0
        %1948 = vmatprep.subr.bf16.mxu0 0
        %1949 = vmatpush1.bf16.msra.mxu0 0
        %1950 = vmatprep.subr.bf16.mxu0 0
        %1951 = vmatpush1.bf16.msra.mxu0 0
        %1952 = vmatprep.subr.bf16.mxu0 0
        %1953 = vmatpush1.bf16.msra.mxu0 0
        %1954 = vmatprep.subr.bf16.mxu0 0
        %1955 = vmatpush1.bf16.msra.mxu0 0
        %1956 = vmatprep.subr.bf16.mxu0 0
        %1957 = vmatpush1.bf16.msra.mxu0 0
        %1958 = vmatprep.subr.bf16.mxu0 0
        %1959 = vmatpush1.bf16.msra.mxu0 0
        %1960 = vmatprep.subr.bf16.mxu0 0
        %1961 = vmatpush1.bf16.msra.mxu0 %v1921
        %1962 = vmatprep.subr.bf16.mxu0 0
        %1963 = vmatpush1.bf16.msra.mxu0 %v1920
        %1964 = vmatprep.subr.bf16.mxu0 0
        %1965 = vmatpush2.bf16.msra.mxu0 0
        %1966 = vmatprep.subr.bf16.mxu0 0
        %1967 = vmatpush2.bf16.msra.mxu0 0
        %1968 = vmatprep.subr.bf16.mxu0 0
        %1969 = vmatpush2.bf16.msra.mxu0 0
        %1970 = vmatprep.subr.bf16.mxu0 0
        %1971 = vmatpush2.bf16.msra.mxu0 0
        %1972 = vmatprep.subr.bf16.mxu0 0
        %1973 = vmatpush2.bf16.msra.mxu0 0
        %1974 = vmatprep.subr.bf16.mxu0 0
        %1975 = vmatpush2.bf16.msra.mxu0 0
        %1976 = vmatprep.subr.bf16.mxu0 0
        %1977 = vmatpush2.bf16.msra.mxu0 0
        %1978 = vmatprep.subr.bf16.mxu0 0
        %1979 = vmatpush2.bf16.msra.mxu0 0
        %1980 = vmatprep.mubr.bf16.mxu0 0
        %1981 = vmatmul.mubr.bf16.gmra.mxu0 %v1925
        %v1982 = vpop.f32.mrf.mxu0
        %v1983 = vadd.f32 0.0, %v1982
        %v1984 = vpop.f32.mrf.mxu0
        %v1985 = vpop.f32.mrf.mxu0
        %v1986 = vadd.f32 0.0, %v1985
        %v1987 = vpop.f32.mrf.mxu0
        %1988 = vmatprep.mubr.bf16.mxu0 0
        %1989 = vmatmul.mubr.bf16.gmra.mxu0 %v1928
        %v1990 = vpop.f32.mrf.mxu0
        %v1991 = vadd.f32 0.0, %v1990
        %v1992 = vpop.f32.mrf.mxu0
        %v1993 = vpop.f32.mrf.mxu0
        %v1994 = vadd.f32 0.0, %v1993
        %v1995 = vpop.f32.mrf.mxu0
        %1996 = vmatprep.mubr.bf16.mxu0 0
        %1997 = vmatmul.mubr.bf16.gmra.mxu0 %v1931
        %v1998 = vpop.f32.mrf.mxu0
        %v1999 = vadd.f32 0.0, %v1998
        %v2000 = vpop.f32.mrf.mxu0
        %v2001 = vpop.f32.mrf.mxu0
        %v2002 = vadd.f32 0.0, %v2001
        %v2003 = vpop.f32.mrf.mxu0
        %2004 = vmatprep.mubr.bf16.mxu0 0
        %2005 = vmatmul.mubr.bf16.gmra.mxu0 %v1934
        %v2006 = vpop.f32.mrf.mxu0
        %v2007 = vadd.f32 0.0, %v2006
        %v2008 = vpop.f32.mrf.mxu0
        %v2009 = vpop.f32.mrf.mxu0
        %v2010 = vadd.f32 0.0, %v2009
        %v2011 = vpop.f32.mrf.mxu0
        %2012 = vmatprep.mubr.bf16.mxu0 0
        %2013 = vmatmul.mubr.bf16.gmra.mxu0 %v1937
        %v2014 = vpop.f32.mrf.mxu0
        %v2015 = vadd.f32 0.0, %v2014
        %v2016 = vpop.f32.mrf.mxu0
        %v2017 = vpop.f32.mrf.mxu0
        %v2018 = vadd.f32 0.0, %v2017
        %v2019 = vpop.f32.mrf.mxu0
        %2020 = vmatprep.mubr.bf16.mxu0 0
        %2021 = vmatmul.mubr.bf16.gmra.mxu0 %v1940
        %v2022 = vpop.f32.mrf.mxu0
        %v2023 = vadd.f32 0.0, %v2022
        %v2024 = vpop.f32.mrf.mxu0
        %v2025 = vpop.f32.mrf.mxu0
        %v2026 = vadd.f32 0.0, %v2025
        %v2027 = vpop.f32.mrf.mxu0
        %2028 = vmatprep.mubr.bf16.mxu0 0
        %2029 = vmatmul.mubr.bf16.gmra.mxu0 %v1943
        %v2030 = vpop.f32.mrf.mxu0
        %v2031 = vadd.f32 0.0, %v2030
        %v2032 = vpop.f32.mrf.mxu0
        %v2033 = vpop.f32.mrf.mxu0
        %v2034 = vadd.f32 0.0, %v2033
        %v2035 = vpop.f32.mrf.mxu0
        %2036 = vmatprep.mubr.bf16.mxu0 0
        %2037 = vmatmul.mubr.bf16.gmra.mxu0 %v1946
        %v2038 = vpop.f32.mrf.mxu0
        %v2039 = vadd.f32 0.0, %v2038
        %v2040 = vpop.f32.mrf.mxu0
        %v2041 = vpop.f32.mrf.mxu0
        %v2042 = vadd.f32 0.0, %v2041
        %v2043 = vpop.f32.mrf.mxu0
        %2044 = vdwg.mxu0
        %v2045 = vadd.f32 %v1835, %v1983
        %v2046 = vadd.f32 %v1836, %v1986
        %v2047 = vadd.f32 %v1837, %v1991
        %v2048 = vadd.f32 %v1838, %v1994
        %v2049 = vadd.f32 %v1839, %v1999
        %v2050 = vadd.f32 %v1840, %v2002
        %v2051 = vadd.f32 %v1841, %v2007
        %v2052 = vadd.f32 %v1842, %v2010
        %v2053 = vadd.f32 %v1843, %v2015
        %v2054 = vadd.f32 %v1844, %v2018
        %v2055 = vadd.f32 %v1845, %v2023
        %v2056 = vadd.f32 %v1846, %v2026
        %v2057 = vadd.f32 %v1847, %v2031
        %v2058 = vadd.f32 %v1848, %v2034
        %v2059 = vadd.f32 %v1849, %v2039
        %v2060 = vadd.f32 %v1850, %v2042
        %v2061 = vld [vmem:[%s535] sm:$0xf]
        %v2062 = vld [vmem:[%s535 + $0x4] sm:$0x1]
        %v2063 = vld [vmem:[%s535 + $0x8] sm:$0xf]
        %v2064 = vld [vmem:[%s535 + $0xc] sm:$0x1]
        %v2065 = vld [vmem:[%s535 + $0x10] sm:$0xf]
        %v2066 = vld [vmem:[%s535 + $0x14] sm:$0x1]
        %v2067 = vld [vmem:[%s535 + $0x18] sm:$0xf]
        %v2068 = vld [vmem:[%s535 + $0x1c] sm:$0x1]
        %v2069 = vld [vmem:[%s535 + $0x20] sm:$0xf]
        %v2070 = vld [vmem:[%s535 + $0x24] sm:$0x1]
        %v2071 = vld [vmem:[%s535 + $0x28] sm:$0xf]
        %v2072 = vld [vmem:[%s535 + $0x2c] sm:$0x1]
        %v2073 = vld [vmem:[%s535 + $0x30] sm:$0xf]
        %v2074 = vld [vmem:[%s535 + $0x34] sm:$0x1]
        %v2075 = vld [vmem:[%s535 + $0x38] sm:$0xf]
        %v2076 = vld [vmem:[%s535 + $0x3c] sm:$0x1]
        %v2077 = vld [vmem:[%s535 + $0x50] sm:$0xf]
        %v2078 = vld [vmem:[%s535 + $0x54] sm:$0x1]
        %v2079 = vld [vmem:[%s535 + $0x58] sm:$0xf]
        %v2080 = vld [vmem:[%s535 + $0x5c] sm:$0x1]
        %v2081 = vld [vmem:[%s535 + $0x60] sm:$0xf]
        %v2082 = vld [vmem:[%s535 + $0x64] sm:$0x1]
        %v2083 = vld [vmem:[%s535 + $0x68] sm:$0xf]
        %v2084 = vld [vmem:[%s535 + $0x6c] sm:$0x1]
        %v2085 = vld [vmem:[%s535 + $0x70] sm:$0xf]
        %v2086 = vld [vmem:[%s535 + $0x74] sm:$0x1]
        %v2087 = vld [vmem:[%s535 + $0x78] sm:$0xf]
        %v2088 = vld [vmem:[%s535 + $0x7c] sm:$0x1]
        %v2089 = vld [vmem:[%s535 + $0x80] sm:$0xf]
        %v2090 = vld [vmem:[%s535 + $0x84] sm:$0x1]
        %v2091 = vld [vmem:[%s535 + $0x88] sm:$0xf]
        %v2092 = vld [vmem:[%s535 + $0x8c] sm:$0x1]
        %v2094 = vshrl.u32 %v2061, 16
        %v2096 = vrot.slane %v2094, 4
        %v2097 = vshll.u32 %v2061, 16
        %v2099 = vrot.slane %v2097, 5
        %v2100 = vor.u32 %v2096, %v2099
        %v2101 = vrot.slane %v2100, 4
        %v2103 = vshll.u32 %v2062, 16
        %v2105 = vrot.slane %v2103, 5
        %v2106 = vsel %vm997, %v2101, %v2105
        %v2108 = vshrl.u32 %v2063, 16
        %v2110 = vrot.slane %v2108, 4
        %v2111 = vshll.u32 %v2063, 16
        %v2113 = vrot.slane %v2111, 5
        %v2114 = vor.u32 %v2110, %v2113
        %v2115 = vrot.slane %v2114, 4
        %v2117 = vshll.u32 %v2064, 16
        %v2119 = vrot.slane %v2117, 5
        %v2120 = vsel %vm997, %v2115, %v2119
        %v2122 = vshrl.u32 %v2065, 16
        %v2124 = vrot.slane %v2122, 4
        %v2125 = vshll.u32 %v2065, 16
        %v2127 = vrot.slane %v2125, 5
        %v2128 = vor.u32 %v2124, %v2127
        %v2129 = vrot.slane %v2128, 4
        %v2131 = vshll.u32 %v2066, 16
        %v2133 = vrot.slane %v2131, 5
        %v2134 = vsel %vm997, %v2129, %v2133
        %v2136 = vshrl.u32 %v2067, 16
        %v2138 = vrot.slane %v2136, 4
        %v2139 = vshll.u32 %v2067, 16
        %v2141 = vrot.slane %v2139, 5
        %v2142 = vor.u32 %v2138, %v2141
        %v2143 = vrot.slane %v2142, 4
        %v2145 = vshll.u32 %v2068, 16
        %v2147 = vrot.slane %v2145, 5
        %v2148 = vsel %vm997, %v2143, %v2147
        %v2150 = vshrl.u32 %v2069, 16
        %v2152 = vrot.slane %v2150, 4
        %v2153 = vshll.u32 %v2069, 16
        %v2155 = vrot.slane %v2153, 5
        %v2156 = vor.u32 %v2152, %v2155
        %v2157 = vrot.slane %v2156, 4
        %v2159 = vshll.u32 %v2070, 16
        %v2161 = vrot.slane %v2159, 5
        %v2162 = vsel %vm997, %v2157, %v2161
        %v2164 = vshrl.u32 %v2071, 16
        %v2166 = vrot.slane %v2164, 4
        %v2167 = vshll.u32 %v2071, 16
        %v2169 = vrot.slane %v2167, 5
        %v2170 = vor.u32 %v2166, %v2169
        %v2171 = vrot.slane %v2170, 4
        %v2173 = vshll.u32 %v2072, 16
        %v2175 = vrot.slane %v2173, 5
        %v2176 = vsel %vm997, %v2171, %v2175
        %v2178 = vshrl.u32 %v2073, 16
        %v2180 = vrot.slane %v2178, 4
        %v2181 = vshll.u32 %v2073, 16
        %v2183 = vrot.slane %v2181, 5
        %v2184 = vor.u32 %v2180, %v2183
        %v2185 = vrot.slane %v2184, 4
        %v2187 = vshll.u32 %v2074, 16
        %v2189 = vrot.slane %v2187, 5
        %v2190 = vsel %vm997, %v2185, %v2189
        %v2192 = vshrl.u32 %v2075, 16
        %v2194 = vrot.slane %v2192, 4
        %v2195 = vshll.u32 %v2075, 16
        %v2197 = vrot.slane %v2195, 5
        %v2198 = vor.u32 %v2194, %v2197
        %v2199 = vrot.slane %v2198, 4
        %v2201 = vshll.u32 %v2076, 16
        %v2203 = vrot.slane %v2201, 5
        %v2204 = vsel %vm997, %v2199, %v2203
        %v2206 = vshrl.u32 %v2077, 16
        %v2208 = vrot.slane %v2206, 4
        %v2209 = vshll.u32 %v2077, 16
        %v2211 = vrot.slane %v2209, 5
        %v2212 = vor.u32 %v2208, %v2211
        %v2213 = vrot.slane %v2212, 4
        %v2215 = vshll.u32 %v2078, 16
        %v2217 = vrot.slane %v2215, 5
        %v2218 = vsel %vm997, %v2213, %v2217
        %v2220 = vshrl.u32 %v2079, 16
        %v2222 = vrot.slane %v2220, 4
        %v2223 = vshll.u32 %v2079, 16
        %v2225 = vrot.slane %v2223, 5
        %v2226 = vor.u32 %v2222, %v2225
        %v2227 = vrot.slane %v2226, 4
        %v2229 = vshll.u32 %v2080, 16
        %v2231 = vrot.slane %v2229, 5
        %v2232 = vsel %vm997, %v2227, %v2231
        %v2234 = vshrl.u32 %v2081, 16
        %v2236 = vrot.slane %v2234, 4
        %v2237 = vshll.u32 %v2081, 16
        %v2239 = vrot.slane %v2237, 5
        %v2240 = vor.u32 %v2236, %v2239
        %v2241 = vrot.slane %v2240, 4
        %v2243 = vshll.u32 %v2082, 16
        %v2245 = vrot.slane %v2243, 5
        %v2246 = vsel %vm997, %v2241, %v2245
        %v2248 = vshrl.u32 %v2083, 16
        %v2250 = vrot.slane %v2248, 4
        %v2251 = vshll.u32 %v2083, 16
        %v2253 = vrot.slane %v2251, 5
        %v2254 = vor.u32 %v2250, %v2253
        %v2255 = vrot.slane %v2254, 4
        %v2257 = vshll.u32 %v2084, 16
        %v2259 = vrot.slane %v2257, 5
        %v2260 = vsel %vm997, %v2255, %v2259
        %v2262 = vshrl.u32 %v2085, 16
        %v2264 = vrot.slane %v2262, 4
        %v2265 = vshll.u32 %v2085, 16
        %v2267 = vrot.slane %v2265, 5
        %v2268 = vor.u32 %v2264, %v2267
        %v2269 = vrot.slane %v2268, 4
        %v2271 = vshll.u32 %v2086, 16
        %v2273 = vrot.slane %v2271, 5
        %v2274 = vsel %vm997, %v2269, %v2273
        %v2276 = vshrl.u32 %v2087, 16
        %v2278 = vrot.slane %v2276, 4
        %v2279 = vshll.u32 %v2087, 16
        %v2281 = vrot.slane %v2279, 5
        %v2282 = vor.u32 %v2278, %v2281
        %v2283 = vrot.slane %v2282, 4
        %v2285 = vshll.u32 %v2088, 16
        %v2287 = vrot.slane %v2285, 5
        %v2288 = vsel %vm997, %v2283, %v2287
        %v2290 = vshrl.u32 %v2089, 16
        %v2292 = vrot.slane %v2290, 4
        %v2293 = vshll.u32 %v2089, 16
        %v2295 = vrot.slane %v2293, 5
        %v2296 = vor.u32 %v2292, %v2295
        %v2297 = vrot.slane %v2296, 4
        %v2299 = vshll.u32 %v2090, 16
        %v2301 = vrot.slane %v2299, 5
        %v2302 = vsel %vm997, %v2297, %v2301
        %v2304 = vshrl.u32 %v2091, 16
        %v2306 = vrot.slane %v2304, 4
        %v2307 = vshll.u32 %v2091, 16
        %v2309 = vrot.slane %v2307, 5
        %v2310 = vor.u32 %v2306, %v2309
        %v2311 = vrot.slane %v2310, 4
        %v2313 = vshll.u32 %v2092, 16
        %v2315 = vrot.slane %v2313, 5
        %v2316 = vsel %vm997, %v2311, %v2315
        %s2317 = scalar_lea.vmem [#allocation6], 64
        %v2318 = vld [vmem:[%s2317] sm:$0xf]
        %v2319 = vld [vmem:[%s2317 + $0x4] sm:$0xf]
        %v2320 = vld [vmem:[%s2317 + $0x8] sm:$0xf]
        %v2321 = vld [vmem:[%s2317 + $0xc] sm:$0xf]
        %v2322 = vunpack.c.l.b16 %v2106
        %v2323 = vunpack.c.l.b16 %v2120
        %v2324 = vunpack.c.l.b16 %v2134
        %v2325 = vunpack.c.l.b16 %v2148
        %v2326 = vunpack.c.l.b16 %v2162
        %v2327 = vunpack.c.l.b16 %v2176
        %v2328 = vunpack.c.l.b16 %v2190
        %v2329 = vunpack.c.l.b16 %v2204
        %v2330 = vunpack.c.l.b16 %v2218
        %v2331 = vunpack.c.l.b16 %v2232
        %v2332 = vunpack.c.l.b16 %v2246
        %v2333 = vunpack.c.l.b16 %v2260
        %v2334 = vunpack.c.l.b16 %v2274
        %v2335 = vunpack.c.l.b16 %v2288
        %v2336 = vunpack.c.l.b16 %v2302
        %v2337 = vunpack.c.l.b16 %v2316
        %v2338 = vpack.c.b16 %v2323, %v2322
        %v2339 = vpack.c.b16 %v2325, %v2324
        %v2340 = vpack.c.b16 %v2327, %v2326
        %v2341 = vpack.c.b16 %v2329, %v2328
        %v2342 = vpack.c.b16 %v2331, %v2330
        %v2343 = vpack.c.b16 %v2333, %v2332
        %v2344 = vpack.c.b16 %v2335, %v2334
        %v2345 = vpack.c.b16 %v2337, %v2336
        %v2350 = vunpack.c.l.b16 %v2318
        %v2351 = vunpack.c.l.b16 %v2319
        %v2352 = vunpack.c.l.b16 %v2320
        %v2353 = vunpack.c.l.b16 %v2321
        %v2354 = vpack.c.b16 %v2351, %v2350
        %v2355 = vpack.c.b16 %v2353, %v2352
        %v2359 = vsel %vm1263, %v2338, 0
        %v2362 = vsel %vm1263, %v2339, 0
        %v2365 = vsel %vm1263, %v2340, 0
        %v2368 = vsel %vm1263, %v2341, 0
        %v2371 = vsel %vm1263, %v2342, 0
        %v2374 = vsel %vm1263, %v2343, 0
        %v2377 = vsel %vm1263, %v2344, 0
        %v2380 = vsel %vm1263, %v2345, 0
        %2382 = vmatprep.subr.bf16.mxu0 0
        %2383 = vmatpush1.bf16.msra.mxu0 0
        %2384 = vmatprep.subr.bf16.mxu0 0
        %2385 = vmatpush1.bf16.msra.mxu0 0
        %2386 = vmatprep.subr.bf16.mxu0 0
        %2387 = vmatpush1.bf16.msra.mxu0 0
        %2388 = vmatprep.subr.bf16.mxu0 0
        %2389 = vmatpush1.bf16.msra.mxu0 0
        %2390 = vmatprep.subr.bf16.mxu0 0
        %2391 = vmatpush1.bf16.msra.mxu0 0
        %2392 = vmatprep.subr.bf16.mxu0 0
        %2393 = vmatpush1.bf16.msra.mxu0 0
        %2394 = vmatprep.subr.bf16.mxu0 0
        %2395 = vmatpush1.bf16.msra.mxu0 %v2355
        %2396 = vmatprep.subr.bf16.mxu0 0
        %2397 = vmatpush1.bf16.msra.mxu0 %v2354
        %2398 = vmatprep.subr.bf16.mxu0 0
        %2399 = vmatpush2.bf16.msra.mxu0 0
        %2400 = vmatprep.subr.bf16.mxu0 0
        %2401 = vmatpush2.bf16.msra.mxu0 0
        %2402 = vmatprep.subr.bf16.mxu0 0
        %2403 = vmatpush2.bf16.msra.mxu0 0
        %2404 = vmatprep.subr.bf16.mxu0 0
        %2405 = vmatpush2.bf16.msra.mxu0 0
        %2406 = vmatprep.subr.bf16.mxu0 0
        %2407 = vmatpush2.bf16.msra.mxu0 0
        %2408 = vmatprep.subr.bf16.mxu0 0
        %2409 = vmatpush2.bf16.msra.mxu0 0
        %2410 = vmatprep.subr.bf16.mxu0 0
        %2411 = vmatpush2.bf16.msra.mxu0 0
        %2412 = vmatprep.subr.bf16.mxu0 0
        %2413 = vmatpush2.bf16.msra.mxu0 0
        %2414 = vmatprep.mubr.bf16.mxu0 0
        %2415 = vmatmul.mubr.bf16.gmra.mxu0 %v2359
        %v2416 = vpop.f32.mrf.mxu0
        %v2417 = vadd.f32 0.0, %v2416
        %v2418 = vpop.f32.mrf.mxu0
        %v2419 = vpop.f32.mrf.mxu0
        %v2420 = vadd.f32 0.0, %v2419
        %v2421 = vpop.f32.mrf.mxu0
        %2422 = vmatprep.mubr.bf16.mxu0 0
        %2423 = vmatmul.mubr.bf16.gmra.mxu0 %v2362
        %v2424 = vpop.f32.mrf.mxu0
        %v2425 = vadd.f32 0.0, %v2424
        %v2426 = vpop.f32.mrf.mxu0
        %v2427 = vpop.f32.mrf.mxu0
        %v2428 = vadd.f32 0.0, %v2427
        %v2429 = vpop.f32.mrf.mxu0
        %2430 = vmatprep.mubr.bf16.mxu0 0
        %2431 = vmatmul.mubr.bf16.gmra.mxu0 %v2365
        %v2432 = vpop.f32.mrf.mxu0
        %v2433 = vadd.f32 0.0, %v2432
        %v2434 = vpop.f32.mrf.mxu0
        %v2435 = vpop.f32.mrf.mxu0
        %v2436 = vadd.f32 0.0, %v2435
        %v2437 = vpop.f32.mrf.mxu0
        %2438 = vmatprep.mubr.bf16.mxu0 0
        %2439 = vmatmul.mubr.bf16.gmra.mxu0 %v2368
        %v2440 = vpop.f32.mrf.mxu0
        %v2441 = vadd.f32 0.0, %v2440
        %v2442 = vpop.f32.mrf.mxu0
        %v2443 = vpop.f32.mrf.mxu0
        %v2444 = vadd.f32 0.0, %v2443
        %v2445 = vpop.f32.mrf.mxu0
        %2446 = vmatprep.mubr.bf16.mxu0 0
        %2447 = vmatmul.mubr.bf16.gmra.mxu0 %v2371
        %v2448 = vpop.f32.mrf.mxu0
        %v2449 = vadd.f32 0.0, %v2448
        %v2450 = vpop.f32.mrf.mxu0
        %v2451 = vpop.f32.mrf.mxu0
        %v2452 = vadd.f32 0.0, %v2451
        %v2453 = vpop.f32.mrf.mxu0
        %2454 = vmatprep.mubr.bf16.mxu0 0
        %2455 = vmatmul.mubr.bf16.gmra.mxu0 %v2374
        %v2456 = vpop.f32.mrf.mxu0
        %v2457 = vadd.f32 0.0, %v2456
        %v2458 = vpop.f32.mrf.mxu0
        %v2459 = vpop.f32.mrf.mxu0
        %v2460 = vadd.f32 0.0, %v2459
        %v2461 = vpop.f32.mrf.mxu0
        %2462 = vmatprep.mubr.bf16.mxu0 0
        %2463 = vmatmul.mubr.bf16.gmra.mxu0 %v2377
        %v2464 = vpop.f32.mrf.mxu0
        %v2465 = vadd.f32 0.0, %v2464
        %v2466 = vpop.f32.mrf.mxu0
        %v2467 = vpop.f32.mrf.mxu0
        %v2468 = vadd.f32 0.0, %v2467
        %v2469 = vpop.f32.mrf.mxu0
        %2470 = vmatprep.mubr.bf16.mxu0 0
        %2471 = vmatmul.mubr.bf16.gmra.mxu0 %v2380
        %v2472 = vpop.f32.mrf.mxu0
        %v2473 = vadd.f32 0.0, %v2472
        %v2474 = vpop.f32.mrf.mxu0
        %v2475 = vpop.f32.mrf.mxu0
        %v2476 = vadd.f32 0.0, %v2475
        %v2477 = vpop.f32.mrf.mxu0
        %2478 = vdwg.mxu0
        %v2479 = vadd.f32 %v2045, %v2417
        %v2480 = vadd.f32 %v2046, %v2420
        %v2481 = vadd.f32 %v2047, %v2425
        %v2482 = vadd.f32 %v2048, %v2428
        %v2483 = vadd.f32 %v2049, %v2433
        %v2484 = vadd.f32 %v2050, %v2436
        %v2485 = vadd.f32 %v2051, %v2441
        %v2486 = vadd.f32 %v2052, %v2444
        %v2487 = vadd.f32 %v2053, %v2449
        %v2488 = vadd.f32 %v2054, %v2452
        %v2489 = vadd.f32 %v2055, %v2457
        %v2490 = vadd.f32 %v2056, %v2460
        %v2491 = vadd.f32 %v2057, %v2465
        %v2492 = vadd.f32 %v2058, %v2468
        %v2493 = vadd.f32 %v2059, %v2473
        %v2494 = vadd.f32 %v2060, %v2476
        %v2495 = vld [vmem:[%s535] sm:$0xe]
        %v2496 = vld [vmem:[%s535 + $0x8] sm:$0xe]
        %v2497 = vld [vmem:[%s535 + $0x10] sm:$0xe]
        %v2498 = vld [vmem:[%s535 + $0x18] sm:$0xe]
        %v2499 = vld [vmem:[%s535 + $0x20] sm:$0xe]
        %v2500 = vld [vmem:[%s535 + $0x28] sm:$0xe]
        %v2501 = vld [vmem:[%s535 + $0x30] sm:$0xe]
        %v2502 = vld [vmem:[%s535 + $0x38] sm:$0xe]
        %v2503 = vld [vmem:[%s535 + $0x50] sm:$0xe]
        %v2504 = vld [vmem:[%s535 + $0x58] sm:$0xe]
        %v2505 = vld [vmem:[%s535 + $0x60] sm:$0xe]
        %v2506 = vld [vmem:[%s535 + $0x68] sm:$0xe]
        %v2507 = vld [vmem:[%s535 + $0x70] sm:$0xe]
        %v2508 = vld [vmem:[%s535 + $0x78] sm:$0xe]
        %v2509 = vld [vmem:[%s535 + $0x80] sm:$0xe]
        %v2510 = vld [vmem:[%s535 + $0x88] sm:$0xe]
        %v2543 = vrot.slane %v2495, 5
        %v2544 = vrot.slane %v2543, 4
        %v2545 = vrot.slane %v2062, 5
        %v2546 = vsel %vm1608, %v2544, %v2545
        %v2547 = vrot.slane %v2496, 5
        %v2548 = vrot.slane %v2547, 4
        %v2549 = vrot.slane %v2064, 5
        %v2550 = vsel %vm1608, %v2548, %v2549
        %v2551 = vrot.slane %v2497, 5
        %v2552 = vrot.slane %v2551, 4
        %v2553 = vrot.slane %v2066, 5
        %v2554 = vsel %vm1608, %v2552, %v2553
        %v2555 = vrot.slane %v2498, 5
        %v2556 = vrot.slane %v2555, 4
        %v2557 = vrot.slane %v2068, 5
        %v2558 = vsel %vm1608, %v2556, %v2557
        %v2559 = vrot.slane %v2499, 5
        %v2560 = vrot.slane %v2559, 4
        %v2561 = vrot.slane %v2070, 5
        %v2562 = vsel %vm1608, %v2560, %v2561
        %v2563 = vrot.slane %v2500, 5
        %v2564 = vrot.slane %v2563, 4
        %v2565 = vrot.slane %v2072, 5
        %v2566 = vsel %vm1608, %v2564, %v2565
        %v2567 = vrot.slane %v2501, 5
        %v2568 = vrot.slane %v2567, 4
        %v2569 = vrot.slane %v2074, 5
        %v2570 = vsel %vm1608, %v2568, %v2569
        %v2571 = vrot.slane %v2502, 5
        %v2572 = vrot.slane %v2571, 4
        %v2573 = vrot.slane %v2076, 5
        %v2574 = vsel %vm1608, %v2572, %v2573
        %v2575 = vrot.slane %v2503, 5
        %v2576 = vrot.slane %v2575, 4
        %v2577 = vrot.slane %v2078, 5
        %v2578 = vsel %vm1608, %v2576, %v2577
        %v2579 = vrot.slane %v2504, 5
        %v2580 = vrot.slane %v2579, 4
        %v2581 = vrot.slane %v2080, 5
        %v2582 = vsel %vm1608, %v2580, %v2581
        %v2583 = vrot.slane %v2505, 5
        %v2584 = vrot.slane %v2583, 4
        %v2585 = vrot.slane %v2082, 5
        %v2586 = vsel %vm1608, %v2584, %v2585
        %v2587 = vrot.slane %v2506, 5
        %v2588 = vrot.slane %v2587, 4
        %v2589 = vrot.slane %v2084, 5
        %v2590 = vsel %vm1608, %v2588, %v2589
        %v2591 = vrot.slane %v2507, 5
        %v2592 = vrot.slane %v2591, 4
        %v2593 = vrot.slane %v2086, 5
        %v2594 = vsel %vm1608, %v2592, %v2593
        %v2595 = vrot.slane %v2508, 5
        %v2596 = vrot.slane %v2595, 4
        %v2597 = vrot.slane %v2088, 5
        %v2598 = vsel %vm1608, %v2596, %v2597
        %v2599 = vrot.slane %v2509, 5
        %v2600 = vrot.slane %v2599, 4
        %v2601 = vrot.slane %v2090, 5
        %v2602 = vsel %vm1608, %v2600, %v2601
        %v2603 = vrot.slane %v2510, 5
        %v2604 = vrot.slane %v2603, 4
        %v2605 = vrot.slane %v2092, 5
        %v2606 = vsel %vm1608, %v2604, %v2605
        %s2607 = scalar_lea.vmem [#allocation6], 80
        %v2608 = vld [vmem:[%s2607] sm:$0xf]
        %v2609 = vld [vmem:[%s2607 + $0x4] sm:$0xf]
        %v2610 = vld [vmem:[%s2607 + $0x8] sm:$0xf]
        %v2611 = vld [vmem:[%s2607 + $0xc] sm:$0xf]
        %v2612 = vunpack.c.l.b16 %v2546
        %v2613 = vunpack.c.l.b16 %v2550
        %v2614 = vunpack.c.l.b16 %v2554
        %v2615 = vunpack.c.l.b16 %v2558
        %v2616 = vunpack.c.l.b16 %v2562
        %v2617 = vunpack.c.l.b16 %v2566
        %v2618 = vunpack.c.l.b16 %v2570
        %v2619 = vunpack.c.l.b16 %v2574
        %v2620 = vunpack.c.l.b16 %v2578
        %v2621 = vunpack.c.l.b16 %v2582
        %v2622 = vunpack.c.l.b16 %v2586
        %v2623 = vunpack.c.l.b16 %v2590
        %v2624 = vunpack.c.l.b16 %v2594
        %v2625 = vunpack.c.l.b16 %v2598
        %v2626 = vunpack.c.l.b16 %v2602
        %v2627 = vunpack.c.l.b16 %v2606
        %v2628 = vpack.c.b16 %v2613, %v2612
        %v2629 = vpack.c.b16 %v2615, %v2614
        %v2630 = vpack.c.b16 %v2617, %v2616
        %v2631 = vpack.c.b16 %v2619, %v2618
        %v2632 = vpack.c.b16 %v2621, %v2620
        %v2633 = vpack.c.b16 %v2623, %v2622
        %v2634 = vpack.c.b16 %v2625, %v2624
        %v2635 = vpack.c.b16 %v2627, %v2626
        %v2640 = vunpack.c.l.b16 %v2608
        %v2641 = vunpack.c.l.b16 %v2609
        %v2642 = vunpack.c.l.b16 %v2610
        %v2643 = vunpack.c.l.b16 %v2611
        %v2644 = vpack.c.b16 %v2641, %v2640
        %v2645 = vpack.c.b16 %v2643, %v2642
        %v2649 = vsel %vm1263, %v2628, 0
        %v2652 = vsel %vm1263, %v2629, 0
        %v2655 = vsel %vm1263, %v2630, 0
        %v2658 = vsel %vm1263, %v2631, 0
        %v2661 = vsel %vm1263, %v2632, 0
        %v2664 = vsel %vm1263, %v2633, 0
        %v2667 = vsel %vm1263, %v2634, 0
        %v2670 = vsel %vm1263, %v2635, 0
        %2672 = vmatprep.subr.bf16.mxu0 0
        %2673 = vmatpush1.bf16.msra.mxu0 0
        %2674 = vmatprep.subr.bf16.mxu0 0
        %2675 = vmatpush1.bf16.msra.mxu0 0
        %2676 = vmatprep.subr.bf16.mxu0 0
        %2677 = vmatpush1.bf16.msra.mxu0 0
        %2678 = vmatprep.subr.bf16.mxu0 0
        %2679 = vmatpush1.bf16.msra.mxu0 0
        %2680 = vmatprep.subr.bf16.mxu0 0
        %2681 = vmatpush1.bf16.msra.mxu0 0
        %2682 = vmatprep.subr.bf16.mxu0 0
        %2683 = vmatpush1.bf16.msra.mxu0 0
        %2684 = vmatprep.subr.bf16.mxu0 0
        %2685 = vmatpush1.bf16.msra.mxu0 %v2645
        %2686 = vmatprep.subr.bf16.mxu0 0
        %2687 = vmatpush1.bf16.msra.mxu0 %v2644
        %2688 = vmatprep.subr.bf16.mxu0 0
        %2689 = vmatpush2.bf16.msra.mxu0 0
        %2690 = vmatprep.subr.bf16.mxu0 0
        %2691 = vmatpush2.bf16.msra.mxu0 0
        %2692 = vmatprep.subr.bf16.mxu0 0
        %2693 = vmatpush2.bf16.msra.mxu0 0
        %2694 = vmatprep.subr.bf16.mxu0 0
        %2695 = vmatpush2.bf16.msra.mxu0 0
        %2696 = vmatprep.subr.bf16.mxu0 0
        %2697 = vmatpush2.bf16.msra.mxu0 0
        %2698 = vmatprep.subr.bf16.mxu0 0
        %2699 = vmatpush2.bf16.msra.mxu0 0
        %2700 = vmatprep.subr.bf16.mxu0 0
        %2701 = vmatpush2.bf16.msra.mxu0 0
        %2702 = vmatprep.subr.bf16.mxu0 0
        %2703 = vmatpush2.bf16.msra.mxu0 0
        %2704 = vmatprep.mubr.bf16.mxu0 0
        %2705 = vmatmul.mubr.bf16.gmra.mxu0 %v2649
        %v2706 = vpop.f32.mrf.mxu0
        %v2707 = vadd.f32 0.0, %v2706
        %v2708 = vpop.f32.mrf.mxu0
        %v2709 = vpop.f32.mrf.mxu0
        %v2710 = vadd.f32 0.0, %v2709
        %v2711 = vpop.f32.mrf.mxu0
        %2712 = vmatprep.mubr.bf16.mxu0 0
        %2713 = vmatmul.mubr.bf16.gmra.mxu0 %v2652
        %v2714 = vpop.f32.mrf.mxu0
        %v2715 = vadd.f32 0.0, %v2714
        %v2716 = vpop.f32.mrf.mxu0
        %v2717 = vpop.f32.mrf.mxu0
        %v2718 = vadd.f32 0.0, %v2717
        %v2719 = vpop.f32.mrf.mxu0
        %2720 = vmatprep.mubr.bf16.mxu0 0
        %2721 = vmatmul.mubr.bf16.gmra.mxu0 %v2655
        %v2722 = vpop.f32.mrf.mxu0
        %v2723 = vadd.f32 0.0, %v2722
        %v2724 = vpop.f32.mrf.mxu0
        %v2725 = vpop.f32.mrf.mxu0
        %v2726 = vadd.f32 0.0, %v2725
        %v2727 = vpop.f32.mrf.mxu0
        %2728 = vmatprep.mubr.bf16.mxu0 0
        %2729 = vmatmul.mubr.bf16.gmra.mxu0 %v2658
        %v2730 = vpop.f32.mrf.mxu0
        %v2731 = vadd.f32 0.0, %v2730
        %v2732 = vpop.f32.mrf.mxu0
        %v2733 = vpop.f32.mrf.mxu0
        %v2734 = vadd.f32 0.0, %v2733
        %v2735 = vpop.f32.mrf.mxu0
        %2736 = vmatprep.mubr.bf16.mxu0 0
        %2737 = vmatmul.mubr.bf16.gmra.mxu0 %v2661
        %v2738 = vpop.f32.mrf.mxu0
        %v2739 = vadd.f32 0.0, %v2738
        %v2740 = vpop.f32.mrf.mxu0
        %v2741 = vpop.f32.mrf.mxu0
        %v2742 = vadd.f32 0.0, %v2741
        %v2743 = vpop.f32.mrf.mxu0
        %2744 = vmatprep.mubr.bf16.mxu0 0
        %2745 = vmatmul.mubr.bf16.gmra.mxu0 %v2664
        %v2746 = vpop.f32.mrf.mxu0
        %v2747 = vadd.f32 0.0, %v2746
        %v2748 = vpop.f32.mrf.mxu0
        %v2749 = vpop.f32.mrf.mxu0
        %v2750 = vadd.f32 0.0, %v2749
        %v2751 = vpop.f32.mrf.mxu0
        %2752 = vmatprep.mubr.bf16.mxu0 0
        %2753 = vmatmul.mubr.bf16.gmra.mxu0 %v2667
        %v2754 = vpop.f32.mrf.mxu0
        %v2755 = vadd.f32 0.0, %v2754
        %v2756 = vpop.f32.mrf.mxu0
        %v2757 = vpop.f32.mrf.mxu0
        %v2758 = vadd.f32 0.0, %v2757
        %v2759 = vpop.f32.mrf.mxu0
        %2760 = vmatprep.mubr.bf16.mxu0 0
        %2761 = vmatmul.mubr.bf16.gmra.mxu0 %v2670
        %v2762 = vpop.f32.mrf.mxu0
        %v2763 = vadd.f32 0.0, %v2762
        %v2764 = vpop.f32.mrf.mxu0
        %v2765 = vpop.f32.mrf.mxu0
        %v2766 = vadd.f32 0.0, %v2765
        %v2767 = vpop.f32.mrf.mxu0
        %2768 = vdwg.mxu0
        %v2769 = vadd.f32 %v2479, %v2707
        %v2770 = vadd.f32 %v2480, %v2710
        %v2771 = vadd.f32 %v2481, %v2715
        %v2772 = vadd.f32 %v2482, %v2718
        %v2773 = vadd.f32 %v2483, %v2723
        %v2774 = vadd.f32 %v2484, %v2726
        %v2775 = vadd.f32 %v2485, %v2731
        %v2776 = vadd.f32 %v2486, %v2734
        %v2777 = vadd.f32 %v2487, %v2739
        %v2778 = vadd.f32 %v2488, %v2742
        %v2779 = vadd.f32 %v2489, %v2747
        %v2780 = vadd.f32 %v2490, %v2750
        %v2781 = vadd.f32 %v2491, %v2755
        %v2782 = vadd.f32 %v2492, %v2758
        %v2783 = vadd.f32 %v2493, %v2763
        %v2784 = vadd.f32 %v2494, %v2766
        %s2785 = scalar_lea.vmem [#allocation2], 16
        %v2786 = vld [vmem:[%s2785] sm:$0xf]
        %v2787 = vld [vmem:[%s2785 + $0x8] sm:$0xf]
        %v2788 = vld [vmem:[%s2785 + $0x10] sm:$0xf]
        %v2789 = vld [vmem:[%s2785 + $0x18] sm:$0xf]
        %v2790 = vld [vmem:[%s2785 + $0x20] sm:$0xf]
        %v2791 = vld [vmem:[%s2785 + $0x28] sm:$0xf]
        %v2792 = vld [vmem:[%s2785 + $0x30] sm:$0xf]
        %v2793 = vld [vmem:[%s2785 + $0x38] sm:$0xf]
        %v2794 = vld [vmem:[%s2785 + $0x50] sm:$0xf]
        %v2795 = vld [vmem:[%s2785 + $0x58] sm:$0xf]
        %v2796 = vld [vmem:[%s2785 + $0x60] sm:$0xf]
        %v2797 = vld [vmem:[%s2785 + $0x68] sm:$0xf]
        %v2798 = vld [vmem:[%s2785 + $0x70] sm:$0xf]
        %v2799 = vld [vmem:[%s2785 + $0x78] sm:$0xf]
        %v2800 = vld [vmem:[%s2785 + $0x80] sm:$0xf]
        %v2801 = vld [vmem:[%s2785 + $0x88] sm:$0xf]
        %s2802 = scalar_lea.vmem [#allocation6], 96
        %v2803 = vld [vmem:[%s2802] sm:$0xf]
        %v2804 = vld [vmem:[%s2802 + $0x4] sm:$0xf]
        %v2805 = vld [vmem:[%s2802 + $0x8] sm:$0xf]
        %v2806 = vld [vmem:[%s2802 + $0xc] sm:$0xf]
        %v2823 = vunpack.c.l.b16 %v2786
        %v2824 = vunpack.c.l.b16 %v2787
        %v2825 = vunpack.c.l.b16 %v2788
        %v2826 = vunpack.c.l.b16 %v2789
        %v2827 = vunpack.c.l.b16 %v2790
        %v2828 = vunpack.c.l.b16 %v2791
        %v2829 = vunpack.c.l.b16 %v2792
        %v2830 = vunpack.c.l.b16 %v2793
        %v2831 = vunpack.c.l.b16 %v2794
        %v2832 = vunpack.c.l.b16 %v2795
        %v2833 = vunpack.c.l.b16 %v2796
        %v2834 = vunpack.c.l.b16 %v2797
        %v2835 = vunpack.c.l.b16 %v2798
        %v2836 = vunpack.c.l.b16 %v2799
        %v2837 = vunpack.c.l.b16 %v2800
        %v2838 = vunpack.c.l.b16 %v2801
        %v2839 = vpack.c.b16 %v2824, %v2823
        %v2840 = vpack.c.b16 %v2826, %v2825
        %v2841 = vpack.c.b16 %v2828, %v2827
        %v2842 = vpack.c.b16 %v2830, %v2829
        %v2843 = vpack.c.b16 %v2832, %v2831
        %v2844 = vpack.c.b16 %v2834, %v2833
        %v2845 = vpack.c.b16 %v2836, %v2835
        %v2846 = vpack.c.b16 %v2838, %v2837
        %v2851 = vunpack.c.l.b16 %v2803
        %v2852 = vunpack.c.l.b16 %v2804
        %v2853 = vunpack.c.l.b16 %v2805
        %v2854 = vunpack.c.l.b16 %v2806
        %v2855 = vpack.c.b16 %v2852, %v2851
        %v2856 = vpack.c.b16 %v2854, %v2853
        %v2860 = vsel %vm1263, %v2839, 0
        %v2863 = vsel %vm1263, %v2840, 0
        %v2866 = vsel %vm1263, %v2841, 0
        %v2869 = vsel %vm1263, %v2842, 0
        %v2872 = vsel %vm1263, %v2843, 0
        %v2875 = vsel %vm1263, %v2844, 0
        %v2878 = vsel %vm1263, %v2845, 0
        %v2881 = vsel %vm1263, %v2846, 0
        %2883 = vmatprep.subr.bf16.mxu0 0
        %2884 = vmatpush1.bf16.msra.mxu0 0
        %2885 = vmatprep.subr.bf16.mxu0 0
        %2886 = vmatpush1.bf16.msra.mxu0 0
        %2887 = vmatprep.subr.bf16.mxu0 0
        %2888 = vmatpush1.bf16.msra.mxu0 0
        %2889 = vmatprep.subr.bf16.mxu0 0
        %2890 = vmatpush1.bf16.msra.mxu0 0
        %2891 = vmatprep.subr.bf16.mxu0 0
        %2892 = vmatpush1.bf16.msra.mxu0 0
        %2893 = vmatprep.subr.bf16.mxu0 0
        %2894 = vmatpush1.bf16.msra.mxu0 0
        %2895 = vmatprep.subr.bf16.mxu0 0
        %2896 = vmatpush1.bf16.msra.mxu0 %v2856
        %2897 = vmatprep.subr.bf16.mxu0 0
        %2898 = vmatpush1.bf16.msra.mxu0 %v2855
        %2899 = vmatprep.subr.bf16.mxu0 0
        %2900 = vmatpush2.bf16.msra.mxu0 0
        %2901 = vmatprep.subr.bf16.mxu0 0
        %2902 = vmatpush2.bf16.msra.mxu0 0
        %2903 = vmatprep.subr.bf16.mxu0 0
        %2904 = vmatpush2.bf16.msra.mxu0 0
        %2905 = vmatprep.subr.bf16.mxu0 0
        %2906 = vmatpush2.bf16.msra.mxu0 0
        %2907 = vmatprep.subr.bf16.mxu0 0
        %2908 = vmatpush2.bf16.msra.mxu0 0
        %2909 = vmatprep.subr.bf16.mxu0 0
        %2910 = vmatpush2.bf16.msra.mxu0 0
        %2911 = vmatprep.subr.bf16.mxu0 0
        %2912 = vmatpush2.bf16.msra.mxu0 0
        %2913 = vmatprep.subr.bf16.mxu0 0
        %2914 = vmatpush2.bf16.msra.mxu0 0
        %2915 = vmatprep.mubr.bf16.mxu0 0
        %2916 = vmatmul.mubr.bf16.gmra.mxu0 %v2860
        %v2917 = vpop.f32.mrf.mxu0
        %v2918 = vadd.f32 0.0, %v2917
        %v2919 = vpop.f32.mrf.mxu0
        %v2920 = vpop.f32.mrf.mxu0
        %v2921 = vadd.f32 0.0, %v2920
        %v2922 = vpop.f32.mrf.mxu0
        %2923 = vmatprep.mubr.bf16.mxu0 0
        %2924 = vmatmul.mubr.bf16.gmra.mxu0 %v2863
        %v2925 = vpop.f32.mrf.mxu0
        %v2926 = vadd.f32 0.0, %v2925
        %v2927 = vpop.f32.mrf.mxu0
        %v2928 = vpop.f32.mrf.mxu0
        %v2929 = vadd.f32 0.0, %v2928
        %v2930 = vpop.f32.mrf.mxu0
        %2931 = vmatprep.mubr.bf16.mxu0 0
        %2932 = vmatmul.mubr.bf16.gmra.mxu0 %v2866
        %v2933 = vpop.f32.mrf.mxu0
        %v2934 = vadd.f32 0.0, %v2933
        %v2935 = vpop.f32.mrf.mxu0
        %v2936 = vpop.f32.mrf.mxu0
        %v2937 = vadd.f32 0.0, %v2936
        %v2938 = vpop.f32.mrf.mxu0
        %2939 = vmatprep.mubr.bf16.mxu0 0
        %2940 = vmatmul.mubr.bf16.gmra.mxu0 %v2869
        %v2941 = vpop.f32.mrf.mxu0
        %v2942 = vadd.f32 0.0, %v2941
        %v2943 = vpop.f32.mrf.mxu0
        %v2944 = vpop.f32.mrf.mxu0
        %v2945 = vadd.f32 0.0, %v2944
        %v2946 = vpop.f32.mrf.mxu0
        %2947 = vmatprep.mubr.bf16.mxu0 0
        %2948 = vmatmul.mubr.bf16.gmra.mxu0 %v2872
        %v2949 = vpop.f32.mrf.mxu0
        %v2950 = vadd.f32 0.0, %v2949
        %v2951 = vpop.f32.mrf.mxu0
        %v2952 = vpop.f32.mrf.mxu0
        %v2953 = vadd.f32 0.0, %v2952
        %v2954 = vpop.f32.mrf.mxu0
        %2955 = vmatprep.mubr.bf16.mxu0 0
        %2956 = vmatmul.mubr.bf16.gmra.mxu0 %v2875
        %v2957 = vpop.f32.mrf.mxu0
        %v2958 = vadd.f32 0.0, %v2957
        %v2959 = vpop.f32.mrf.mxu0
        %v2960 = vpop.f32.mrf.mxu0
        %v2961 = vadd.f32 0.0, %v2960
        %v2962 = vpop.f32.mrf.mxu0
        %2963 = vmatprep.mubr.bf16.mxu0 0
        %2964 = vmatmul.mubr.bf16.gmra.mxu0 %v2878
        %v2965 = vpop.f32.mrf.mxu0
        %v2966 = vadd.f32 0.0, %v2965
        %v2967 = vpop.f32.mrf.mxu0
        %v2968 = vpop.f32.mrf.mxu0
        %v2969 = vadd.f32 0.0, %v2968
        %v2970 = vpop.f32.mrf.mxu0
        %2971 = vmatprep.mubr.bf16.mxu0 0
        %2972 = vmatmul.mubr.bf16.gmra.mxu0 %v2881
        %v2973 = vpop.f32.mrf.mxu0
        %v2974 = vadd.f32 0.0, %v2973
        %v2975 = vpop.f32.mrf.mxu0
        %v2976 = vpop.f32.mrf.mxu0
        %v2977 = vadd.f32 0.0, %v2976
        %v2978 = vpop.f32.mrf.mxu0
        %2979 = vdwg.mxu0
        %v2980 = vadd.f32 %v2769, %v2918
        %v2981 = vadd.f32 %v2770, %v2921
        %v2982 = vadd.f32 %v2771, %v2926
        %v2983 = vadd.f32 %v2772, %v2929
        %v2984 = vadd.f32 %v2773, %v2934
        %v2985 = vadd.f32 %v2774, %v2937
        %v2986 = vadd.f32 %v2775, %v2942
        %v2987 = vadd.f32 %v2776, %v2945
        %v2988 = vadd.f32 %v2777, %v2950
        %v2989 = vadd.f32 %v2778, %v2953
        %v2990 = vadd.f32 %v2779, %v2958
        %v2991 = vadd.f32 %v2780, %v2961
        %v2992 = vadd.f32 %v2781, %v2966
        %v2993 = vadd.f32 %v2782, %v2969
        %v2994 = vadd.f32 %v2783, %v2974
        %v2995 = vadd.f32 %v2784, %v2977
        %v2996 = vld [vmem:[%s2785] sm:$0xf]
        %v2997 = vld [vmem:[%s2785 + $0x4] sm:$0x1]
        %v2998 = vld [vmem:[%s2785 + $0x8] sm:$0xf]
        %v2999 = vld [vmem:[%s2785 + $0xc] sm:$0x1]
        %v3000 = vld [vmem:[%s2785 + $0x10] sm:$0xf]
        %v3001 = vld [vmem:[%s2785 + $0x14] sm:$0x1]
        %v3002 = vld [vmem:[%s2785 + $0x18] sm:$0xf]
        %v3003 = vld [vmem:[%s2785 + $0x1c] sm:$0x1]
        %v3004 = vld [vmem:[%s2785 + $0x20] sm:$0xf]
        %v3005 = vld [vmem:[%s2785 + $0x24] sm:$0x1]
        %v3006 = vld [vmem:[%s2785 + $0x28] sm:$0xf]
        %v3007 = vld [vmem:[%s2785 + $0x2c] sm:$0x1]
        %v3008 = vld [vmem:[%s2785 + $0x30] sm:$0xf]
        %v3009 = vld [vmem:[%s2785 + $0x34] sm:$0x1]
        %v3010 = vld [vmem:[%s2785 + $0x38] sm:$0xf]
        %v3011 = vld [vmem:[%s2785 + $0x3c] sm:$0x1]
        %v3012 = vld [vmem:[%s2785 + $0x50] sm:$0xf]
        %v3013 = vld [vmem:[%s2785 + $0x54] sm:$0x1]
        %v3014 = vld [vmem:[%s2785 + $0x58] sm:$0xf]
        %v3015 = vld [vmem:[%s2785 + $0x5c] sm:$0x1]
        %v3016 = vld [vmem:[%s2785 + $0x60] sm:$0xf]
        %v3017 = vld [vmem:[%s2785 + $0x64] sm:$0x1]
        %v3018 = vld [vmem:[%s2785 + $0x68] sm:$0xf]
        %v3019 = vld [vmem:[%s2785 + $0x6c] sm:$0x1]
        %v3020 = vld [vmem:[%s2785 + $0x70] sm:$0xf]
        %v3021 = vld [vmem:[%s2785 + $0x74] sm:$0x1]
        %v3022 = vld [vmem:[%s2785 + $0x78] sm:$0xf]
        %v3023 = vld [vmem:[%s2785 + $0x7c] sm:$0x1]
        %v3024 = vld [vmem:[%s2785 + $0x80] sm:$0xf]
        %v3025 = vld [vmem:[%s2785 + $0x84] sm:$0x1]
        %v3026 = vld [vmem:[%s2785 + $0x88] sm:$0xf]
        %v3027 = vld [vmem:[%s2785 + $0x8c] sm:$0x1]
        %v3029 = vshrl.u32 %v2996, 16
        %v3031 = vrot.slane %v3029, 4
        %v3032 = vshll.u32 %v2996, 16
        %v3034 = vrot.slane %v3032, 5
        %v3035 = vor.u32 %v3031, %v3034
        %v3036 = vrot.slane %v3035, 4
        %v3038 = vshll.u32 %v2997, 16
        %v3040 = vrot.slane %v3038, 5
        %v3041 = vsel %vm997, %v3036, %v3040
        %v3043 = vshrl.u32 %v2998, 16
        %v3045 = vrot.slane %v3043, 4
        %v3046 = vshll.u32 %v2998, 16
        %v3048 = vrot.slane %v3046, 5
        %v3049 = vor.u32 %v3045, %v3048
        %v3050 = vrot.slane %v3049, 4
        %v3052 = vshll.u32 %v2999, 16
        %v3054 = vrot.slane %v3052, 5
        %v3055 = vsel %vm997, %v3050, %v3054
        %v3057 = vshrl.u32 %v3000, 16
        %v3059 = vrot.slane %v3057, 4
        %v3060 = vshll.u32 %v3000, 16
        %v3062 = vrot.slane %v3060, 5
        %v3063 = vor.u32 %v3059, %v3062
        %v3064 = vrot.slane %v3063, 4
        %v3066 = vshll.u32 %v3001, 16
        %v3068 = vrot.slane %v3066, 5
        %v3069 = vsel %vm997, %v3064, %v3068
        %v3071 = vshrl.u32 %v3002, 16
        %v3073 = vrot.slane %v3071, 4
        %v3074 = vshll.u32 %v3002, 16
        %v3076 = vrot.slane %v3074, 5
        %v3077 = vor.u32 %v3073, %v3076
        %v3078 = vrot.slane %v3077, 4
        %v3080 = vshll.u32 %v3003, 16
        %v3082 = vrot.slane %v3080, 5
        %v3083 = vsel %vm997, %v3078, %v3082
        %v3085 = vshrl.u32 %v3004, 16
        %v3087 = vrot.slane %v3085, 4
        %v3088 = vshll.u32 %v3004, 16
        %v3090 = vrot.slane %v3088, 5
        %v3091 = vor.u32 %v3087, %v3090
        %v3092 = vrot.slane %v3091, 4
        %v3094 = vshll.u32 %v3005, 16
        %v3096 = vrot.slane %v3094, 5
        %v3097 = vsel %vm997, %v3092, %v3096
        %v3099 = vshrl.u32 %v3006, 16
        %v3101 = vrot.slane %v3099, 4
        %v3102 = vshll.u32 %v3006, 16
        %v3104 = vrot.slane %v3102, 5
        %v3105 = vor.u32 %v3101, %v3104
        %v3106 = vrot.slane %v3105, 4
        %v3108 = vshll.u32 %v3007, 16
        %v3110 = vrot.slane %v3108, 5
        %v3111 = vsel %vm997, %v3106, %v3110
        %v3113 = vshrl.u32 %v3008, 16
        %v3115 = vrot.slane %v3113, 4
        %v3116 = vshll.u32 %v3008, 16
        %v3118 = vrot.slane %v3116, 5
        %v3119 = vor.u32 %v3115, %v3118
        %v3120 = vrot.slane %v3119, 4
        %v3122 = vshll.u32 %v3009, 16
        %v3124 = vrot.slane %v3122, 5
        %v3125 = vsel %vm997, %v3120, %v3124
        %v3127 = vshrl.u32 %v3010, 16
        %v3129 = vrot.slane %v3127, 4
        %v3130 = vshll.u32 %v3010, 16
        %v3132 = vrot.slane %v3130, 5
        %v3133 = vor.u32 %v3129, %v3132
        %v3134 = vrot.slane %v3133, 4
        %v3136 = vshll.u32 %v3011, 16
        %v3138 = vrot.slane %v3136, 5
        %v3139 = vsel %vm997, %v3134, %v3138
        %v3141 = vshrl.u32 %v3012, 16
        %v3143 = vrot.slane %v3141, 4
        %v3144 = vshll.u32 %v3012, 16
        %v3146 = vrot.slane %v3144, 5
        %v3147 = vor.u32 %v3143, %v3146
        %v3148 = vrot.slane %v3147, 4
        %v3150 = vshll.u32 %v3013, 16
        %v3152 = vrot.slane %v3150, 5
        %v3153 = vsel %vm997, %v3148, %v3152
        %v3155 = vshrl.u32 %v3014, 16
        %v3157 = vrot.slane %v3155, 4
        %v3158 = vshll.u32 %v3014, 16
        %v3160 = vrot.slane %v3158, 5
        %v3161 = vor.u32 %v3157, %v3160
        %v3162 = vrot.slane %v3161, 4
        %v3164 = vshll.u32 %v3015, 16
        %v3166 = vrot.slane %v3164, 5
        %v3167 = vsel %vm997, %v3162, %v3166
        %v3169 = vshrl.u32 %v3016, 16
        %v3171 = vrot.slane %v3169, 4
        %v3172 = vshll.u32 %v3016, 16
        %v3174 = vrot.slane %v3172, 5
        %v3175 = vor.u32 %v3171, %v3174
        %v3176 = vrot.slane %v3175, 4
        %v3178 = vshll.u32 %v3017, 16
        %v3180 = vrot.slane %v3178, 5
        %v3181 = vsel %vm997, %v3176, %v3180
        %v3183 = vshrl.u32 %v3018, 16
        %v3185 = vrot.slane %v3183, 4
        %v3186 = vshll.u32 %v3018, 16
        %v3188 = vrot.slane %v3186, 5
        %v3189 = vor.u32 %v3185, %v3188
        %v3190 = vrot.slane %v3189, 4
        %v3192 = vshll.u32 %v3019, 16
        %v3194 = vrot.slane %v3192, 5
        %v3195 = vsel %vm997, %v3190, %v3194
        %v3197 = vshrl.u32 %v3020, 16
        %v3199 = vrot.slane %v3197, 4
        %v3200 = vshll.u32 %v3020, 16
        %v3202 = vrot.slane %v3200, 5
        %v3203 = vor.u32 %v3199, %v3202
        %v3204 = vrot.slane %v3203, 4
        %v3206 = vshll.u32 %v3021, 16
        %v3208 = vrot.slane %v3206, 5
        %v3209 = vsel %vm997, %v3204, %v3208
        %v3211 = vshrl.u32 %v3022, 16
        %v3213 = vrot.slane %v3211, 4
        %v3214 = vshll.u32 %v3022, 16
        %v3216 = vrot.slane %v3214, 5
        %v3217 = vor.u32 %v3213, %v3216
        %v3218 = vrot.slane %v3217, 4
        %v3220 = vshll.u32 %v3023, 16
        %v3222 = vrot.slane %v3220, 5
        %v3223 = vsel %vm997, %v3218, %v3222
        %v3225 = vshrl.u32 %v3024, 16
        %v3227 = vrot.slane %v3225, 4
        %v3228 = vshll.u32 %v3024, 16
        %v3230 = vrot.slane %v3228, 5
        %v3231 = vor.u32 %v3227, %v3230
        %v3232 = vrot.slane %v3231, 4
        %v3234 = vshll.u32 %v3025, 16
        %v3236 = vrot.slane %v3234, 5
        %v3237 = vsel %vm997, %v3232, %v3236
        %v3239 = vshrl.u32 %v3026, 16
        %v3241 = vrot.slane %v3239, 4
        %v3242 = vshll.u32 %v3026, 16
        %v3244 = vrot.slane %v3242, 5
        %v3245 = vor.u32 %v3241, %v3244
        %v3246 = vrot.slane %v3245, 4
        %v3248 = vshll.u32 %v3027, 16
        %v3250 = vrot.slane %v3248, 5
        %v3251 = vsel %vm997, %v3246, %v3250
        %s3252 = scalar_lea.vmem [#allocation6], 112
        %v3253 = vld [vmem:[%s3252] sm:$0xf]
        %v3254 = vld [vmem:[%s3252 + $0x4] sm:$0xf]
        %v3255 = vld [vmem:[%s3252 + $0x8] sm:$0xf]
        %v3256 = vld [vmem:[%s3252 + $0xc] sm:$0xf]
        %v3257 = vunpack.c.l.b16 %v3041
        %v3258 = vunpack.c.l.b16 %v3055
        %v3259 = vunpack.c.l.b16 %v3069
        %v3260 = vunpack.c.l.b16 %v3083
        %v3261 = vunpack.c.l.b16 %v3097
        %v3262 = vunpack.c.l.b16 %v3111
        %v3263 = vunpack.c.l.b16 %v3125
        %v3264 = vunpack.c.l.b16 %v3139
        %v3265 = vunpack.c.l.b16 %v3153
        %v3266 = vunpack.c.l.b16 %v3167
        %v3267 = vunpack.c.l.b16 %v3181
        %v3268 = vunpack.c.l.b16 %v3195
        %v3269 = vunpack.c.l.b16 %v3209
        %v3270 = vunpack.c.l.b16 %v3223
        %v3271 = vunpack.c.l.b16 %v3237
        %v3272 = vunpack.c.l.b16 %v3251
        %v3273 = vpack.c.b16 %v3258, %v3257
        %v3274 = vpack.c.b16 %v3260, %v3259
        %v3275 = vpack.c.b16 %v3262, %v3261
        %v3276 = vpack.c.b16 %v3264, %v3263
        %v3277 = vpack.c.b16 %v3266, %v3265
        %v3278 = vpack.c.b16 %v3268, %v3267
        %v3279 = vpack.c.b16 %v3270, %v3269
        %v3280 = vpack.c.b16 %v3272, %v3271
        %v3285 = vunpack.c.l.b16 %v3253
        %v3286 = vunpack.c.l.b16 %v3254
        %v3287 = vunpack.c.l.b16 %v3255
        %v3288 = vunpack.c.l.b16 %v3256
        %v3289 = vpack.c.b16 %v3286, %v3285
        %v3290 = vpack.c.b16 %v3288, %v3287
        %v3294 = vsel %vm1263, %v3273, 0
        %v3297 = vsel %vm1263, %v3274, 0
        %v3300 = vsel %vm1263, %v3275, 0
        %v3303 = vsel %vm1263, %v3276, 0
        %v3306 = vsel %vm1263, %v3277, 0
        %v3309 = vsel %vm1263, %v3278, 0
        %v3312 = vsel %vm1263, %v3279, 0
        %v3315 = vsel %vm1263, %v3280, 0
        %3317 = vmatprep.subr.bf16.mxu0 0
        %3318 = vmatpush1.bf16.msra.mxu0 0
        %3319 = vmatprep.subr.bf16.mxu0 0
        %3320 = vmatpush1.bf16.msra.mxu0 0
        %3321 = vmatprep.subr.bf16.mxu0 0
        %3322 = vmatpush1.bf16.msra.mxu0 0
        %3323 = vmatprep.subr.bf16.mxu0 0
        %3324 = vmatpush1.bf16.msra.mxu0 0
        %3325 = vmatprep.subr.bf16.mxu0 0
        %3326 = vmatpush1.bf16.msra.mxu0 0
        %3327 = vmatprep.subr.bf16.mxu0 0
        %3328 = vmatpush1.bf16.msra.mxu0 0
        %3329 = vmatprep.subr.bf16.mxu0 0
        %3330 = vmatpush1.bf16.msra.mxu0 %v3290
        %3331 = vmatprep.subr.bf16.mxu0 0
        %3332 = vmatpush1.bf16.msra.mxu0 %v3289
        %3333 = vmatprep.subr.bf16.mxu0 0
        %3334 = vmatpush2.bf16.msra.mxu0 0
        %3335 = vmatprep.subr.bf16.mxu0 0
        %3336 = vmatpush2.bf16.msra.mxu0 0
        %3337 = vmatprep.subr.bf16.mxu0 0
        %3338 = vmatpush2.bf16.msra.mxu0 0
        %3339 = vmatprep.subr.bf16.mxu0 0
        %3340 = vmatpush2.bf16.msra.mxu0 0
        %3341 = vmatprep.subr.bf16.mxu0 0
        %3342 = vmatpush2.bf16.msra.mxu0 0
        %3343 = vmatprep.subr.bf16.mxu0 0
        %3344 = vmatpush2.bf16.msra.mxu0 0
        %3345 = vmatprep.subr.bf16.mxu0 0
        %3346 = vmatpush2.bf16.msra.mxu0 0
        %3347 = vmatprep.subr.bf16.mxu0 0
        %3348 = vmatpush2.bf16.msra.mxu0 0
        %3349 = vmatprep.mubr.bf16.mxu0 0
        %3350 = vmatmul.mubr.bf16.gmra.mxu0 %v3294
        %v3351 = vpop.f32.mrf.mxu0
        %v3352 = vadd.f32 0.0, %v3351
        %v3353 = vpop.f32.mrf.mxu0
        %v3354 = vpop.f32.mrf.mxu0
        %v3355 = vadd.f32 0.0, %v3354
        %v3356 = vpop.f32.mrf.mxu0
        %3357 = vmatprep.mubr.bf16.mxu0 0
        %3358 = vmatmul.mubr.bf16.gmra.mxu0 %v3297
        %v3359 = vpop.f32.mrf.mxu0
        %v3360 = vadd.f32 0.0, %v3359
        %v3361 = vpop.f32.mrf.mxu0
        %v3362 = vpop.f32.mrf.mxu0
        %v3363 = vadd.f32 0.0, %v3362
        %v3364 = vpop.f32.mrf.mxu0
        %3365 = vmatprep.mubr.bf16.mxu0 0
        %3366 = vmatmul.mubr.bf16.gmra.mxu0 %v3300
        %v3367 = vpop.f32.mrf.mxu0
        %v3368 = vadd.f32 0.0, %v3367
        %v3369 = vpop.f32.mrf.mxu0
        %v3370 = vpop.f32.mrf.mxu0
        %v3371 = vadd.f32 0.0, %v3370
        %v3372 = vpop.f32.mrf.mxu0
        %3373 = vmatprep.mubr.bf16.mxu0 0
        %3374 = vmatmul.mubr.bf16.gmra.mxu0 %v3303
        %v3375 = vpop.f32.mrf.mxu0
        %v3376 = vadd.f32 0.0, %v3375
        %v3377 = vpop.f32.mrf.mxu0
        %v3378 = vpop.f32.mrf.mxu0
        %v3379 = vadd.f32 0.0, %v3378
        %v3380 = vpop.f32.mrf.mxu0
        %3381 = vmatprep.mubr.bf16.mxu0 0
        %3382 = vmatmul.mubr.bf16.gmra.mxu0 %v3306
        %v3383 = vpop.f32.mrf.mxu0
        %v3384 = vadd.f32 0.0, %v3383
        %v3385 = vpop.f32.mrf.mxu0
        %v3386 = vpop.f32.mrf.mxu0
        %v3387 = vadd.f32 0.0, %v3386
        %v3388 = vpop.f32.mrf.mxu0
        %3389 = vmatprep.mubr.bf16.mxu0 0
        %3390 = vmatmul.mubr.bf16.gmra.mxu0 %v3309
        %v3391 = vpop.f32.mrf.mxu0
        %v3392 = vadd.f32 0.0, %v3391
        %v3393 = vpop.f32.mrf.mxu0
        %v3394 = vpop.f32.mrf.mxu0
        %v3395 = vadd.f32 0.0, %v3394
        %v3396 = vpop.f32.mrf.mxu0
        %3397 = vmatprep.mubr.bf16.mxu0 0
        %3398 = vmatmul.mubr.bf16.gmra.mxu0 %v3312
        %v3399 = vpop.f32.mrf.mxu0
        %v3400 = vadd.f32 0.0, %v3399
        %v3401 = vpop.f32.mrf.mxu0
        %v3402 = vpop.f32.mrf.mxu0
        %v3403 = vadd.f32 0.0, %v3402
        %v3404 = vpop.f32.mrf.mxu0
        %3405 = vmatprep.mubr.bf16.mxu0 0
        %3406 = vmatmul.mubr.bf16.gmra.mxu0 %v3315
        %v3407 = vpop.f32.mrf.mxu0
        %v3408 = vadd.f32 0.0, %v3407
        %v3409 = vpop.f32.mrf.mxu0
        %v3410 = vpop.f32.mrf.mxu0
        %v3411 = vadd.f32 0.0, %v3410
        %v3412 = vpop.f32.mrf.mxu0
        %3413 = vdwg.mxu0
        %v3414 = vadd.f32 %v2980, %v3352
        %v3415 = vadd.f32 %v2981, %v3355
        %v3416 = vadd.f32 %v2982, %v3360
        %v3417 = vadd.f32 %v2983, %v3363
        %v3418 = vadd.f32 %v2984, %v3368
        %v3419 = vadd.f32 %v2985, %v3371
        %v3420 = vadd.f32 %v2986, %v3376
        %v3421 = vadd.f32 %v2987, %v3379
        %v3422 = vadd.f32 %v2988, %v3384
        %v3423 = vadd.f32 %v2989, %v3387
        %v3424 = vadd.f32 %v2990, %v3392
        %v3425 = vadd.f32 %v2991, %v3395
        %v3426 = vadd.f32 %v2992, %v3400
        %v3427 = vadd.f32 %v2993, %v3403
        %v3428 = vadd.f32 %v2994, %v3408
        %v3429 = vadd.f32 %v2995, %v3411
        %v3430 = vld [vmem:[%s2785] sm:$0xe]
        %v3431 = vld [vmem:[%s2785 + $0x8] sm:$0xe]
        %v3432 = vld [vmem:[%s2785 + $0x10] sm:$0xe]
        %v3433 = vld [vmem:[%s2785 + $0x18] sm:$0xe]
        %v3434 = vld [vmem:[%s2785 + $0x20] sm:$0xe]
        %v3435 = vld [vmem:[%s2785 + $0x28] sm:$0xe]
        %v3436 = vld [vmem:[%s2785 + $0x30] sm:$0xe]
        %v3437 = vld [vmem:[%s2785 + $0x38] sm:$0xe]
        %v3438 = vld [vmem:[%s2785 + $0x50] sm:$0xe]
        %v3439 = vld [vmem:[%s2785 + $0x58] sm:$0xe]
        %v3440 = vld [vmem:[%s2785 + $0x60] sm:$0xe]
        %v3441 = vld [vmem:[%s2785 + $0x68] sm:$0xe]
        %v3442 = vld [vmem:[%s2785 + $0x70] sm:$0xe]
        %v3443 = vld [vmem:[%s2785 + $0x78] sm:$0xe]
        %v3444 = vld [vmem:[%s2785 + $0x80] sm:$0xe]
        %v3445 = vld [vmem:[%s2785 + $0x88] sm:$0xe]
        %v3478 = vrot.slane %v3430, 5
        %v3479 = vrot.slane %v3478, 4
        %v3480 = vrot.slane %v2997, 5
        %v3481 = vsel %vm1608, %v3479, %v3480
        %v3482 = vrot.slane %v3431, 5
        %v3483 = vrot.slane %v3482, 4
        %v3484 = vrot.slane %v2999, 5
        %v3485 = vsel %vm1608, %v3483, %v3484
        %v3486 = vrot.slane %v3432, 5
        %v3487 = vrot.slane %v3486, 4
        %v3488 = vrot.slane %v3001, 5
        %v3489 = vsel %vm1608, %v3487, %v3488
        %v3490 = vrot.slane %v3433, 5
        %v3491 = vrot.slane %v3490, 4
        %v3492 = vrot.slane %v3003, 5
        %v3493 = vsel %vm1608, %v3491, %v3492
        %v3494 = vrot.slane %v3434, 5
        %v3495 = vrot.slane %v3494, 4
        %v3496 = vrot.slane %v3005, 5
        %v3497 = vsel %vm1608, %v3495, %v3496
        %v3498 = vrot.slane %v3435, 5
        %v3499 = vrot.slane %v3498, 4
        %v3500 = vrot.slane %v3007, 5
        %v3501 = vsel %vm1608, %v3499, %v3500
        %v3502 = vrot.slane %v3436, 5
        %v3503 = vrot.slane %v3502, 4
        %v3504 = vrot.slane %v3009, 5
        %v3505 = vsel %vm1608, %v3503, %v3504
        %v3506 = vrot.slane %v3437, 5
        %v3507 = vrot.slane %v3506, 4
        %v3508 = vrot.slane %v3011, 5
        %v3509 = vsel %vm1608, %v3507, %v3508
        %v3510 = vrot.slane %v3438, 5
        %v3511 = vrot.slane %v3510, 4
        %v3512 = vrot.slane %v3013, 5
        %v3513 = vsel %vm1608, %v3511, %v3512
        %v3514 = vrot.slane %v3439, 5
        %v3515 = vrot.slane %v3514, 4
        %v3516 = vrot.slane %v3015, 5
        %v3517 = vsel %vm1608, %v3515, %v3516
        %v3518 = vrot.slane %v3440, 5
        %v3519 = vrot.slane %v3518, 4
        %v3520 = vrot.slane %v3017, 5
        %v3521 = vsel %vm1608, %v3519, %v3520
        %v3522 = vrot.slane %v3441, 5
        %v3523 = vrot.slane %v3522, 4
        %v3524 = vrot.slane %v3019, 5
        %v3525 = vsel %vm1608, %v3523, %v3524
        %v3526 = vrot.slane %v3442, 5
        %v3527 = vrot.slane %v3526, 4
        %v3528 = vrot.slane %v3021, 5
        %v3529 = vsel %vm1608, %v3527, %v3528
        %v3530 = vrot.slane %v3443, 5
        %v3531 = vrot.slane %v3530, 4
        %v3532 = vrot.slane %v3023, 5
        %v3533 = vsel %vm1608, %v3531, %v3532
        %v3534 = vrot.slane %v3444, 5
        %v3535 = vrot.slane %v3534, 4
        %v3536 = vrot.slane %v3025, 5
        %v3537 = vsel %vm1608, %v3535, %v3536
        %v3538 = vrot.slane %v3445, 5
        %v3539 = vrot.slane %v3538, 4
        %v3540 = vrot.slane %v3027, 5
        %v3541 = vsel %vm1608, %v3539, %v3540
        %s3542 = scalar_lea.vmem [#allocation6], 128
        %v3543 = vld [vmem:[%s3542] sm:$0xf]
        %v3544 = vld [vmem:[%s3542 + $0x4] sm:$0xf]
        %v3545 = vld [vmem:[%s3542 + $0x8] sm:$0xf]
        %v3546 = vld [vmem:[%s3542 + $0xc] sm:$0xf]
        %v3547 = vunpack.c.l.b16 %v3481
        %v3548 = vunpack.c.l.b16 %v3485
        %v3549 = vunpack.c.l.b16 %v3489
        %v3550 = vunpack.c.l.b16 %v3493
        %v3551 = vunpack.c.l.b16 %v3497
        %v3552 = vunpack.c.l.b16 %v3501
        %v3553 = vunpack.c.l.b16 %v3505
        %v3554 = vunpack.c.l.b16 %v3509
        %v3555 = vunpack.c.l.b16 %v3513
        %v3556 = vunpack.c.l.b16 %v3517
        %v3557 = vunpack.c.l.b16 %v3521
        %v3558 = vunpack.c.l.b16 %v3525
        %v3559 = vunpack.c.l.b16 %v3529
        %v3560 = vunpack.c.l.b16 %v3533
        %v3561 = vunpack.c.l.b16 %v3537
        %v3562 = vunpack.c.l.b16 %v3541
        %v3563 = vpack.c.b16 %v3548, %v3547
        %v3564 = vpack.c.b16 %v3550, %v3549
        %v3565 = vpack.c.b16 %v3552, %v3551
        %v3566 = vpack.c.b16 %v3554, %v3553
        %v3567 = vpack.c.b16 %v3556, %v3555
        %v3568 = vpack.c.b16 %v3558, %v3557
        %v3569 = vpack.c.b16 %v3560, %v3559
        %v3570 = vpack.c.b16 %v3562, %v3561
        %v3575 = vunpack.c.l.b16 %v3543
        %v3576 = vunpack.c.l.b16 %v3544
        %v3577 = vunpack.c.l.b16 %v3545
        %v3578 = vunpack.c.l.b16 %v3546
        %v3579 = vpack.c.b16 %v3576, %v3575
        %v3580 = vpack.c.b16 %v3578, %v3577
        %v3584 = vsel %vm1263, %v3563, 0
        %v3587 = vsel %vm1263, %v3564, 0
        %v3590 = vsel %vm1263, %v3565, 0
        %v3593 = vsel %vm1263, %v3566, 0
        %v3596 = vsel %vm1263, %v3567, 0
        %v3599 = vsel %vm1263, %v3568, 0
        %v3602 = vsel %vm1263, %v3569, 0
        %v3605 = vsel %vm1263, %v3570, 0
        %3607 = vmatprep.subr.bf16.mxu0 0
        %3608 = vmatpush1.bf16.msra.mxu0 0
        %3609 = vmatprep.subr.bf16.mxu0 0
        %3610 = vmatpush1.bf16.msra.mxu0 0
        %3611 = vmatprep.subr.bf16.mxu0 0
        %3612 = vmatpush1.bf16.msra.mxu0 0
        %3613 = vmatprep.subr.bf16.mxu0 0
        %3614 = vmatpush1.bf16.msra.mxu0 0
        %3615 = vmatprep.subr.bf16.mxu0 0
        %3616 = vmatpush1.bf16.msra.mxu0 0
        %3617 = vmatprep.subr.bf16.mxu0 0
        %3618 = vmatpush1.bf16.msra.mxu0 0
        %3619 = vmatprep.subr.bf16.mxu0 0
        %3620 = vmatpush1.bf16.msra.mxu0 %v3580
        %3621 = vmatprep.subr.bf16.mxu0 0
        %3622 = vmatpush1.bf16.msra.mxu0 %v3579
        %3623 = vmatprep.subr.bf16.mxu0 0
        %3624 = vmatpush2.bf16.msra.mxu0 0
        %3625 = vmatprep.subr.bf16.mxu0 0
        %3626 = vmatpush2.bf16.msra.mxu0 0
        %3627 = vmatprep.subr.bf16.mxu0 0
        %3628 = vmatpush2.bf16.msra.mxu0 0
        %3629 = vmatprep.subr.bf16.mxu0 0
        %3630 = vmatpush2.bf16.msra.mxu0 0
        %3631 = vmatprep.subr.bf16.mxu0 0
        %3632 = vmatpush2.bf16.msra.mxu0 0
        %3633 = vmatprep.subr.bf16.mxu0 0
        %3634 = vmatpush2.bf16.msra.mxu0 0
        %3635 = vmatprep.subr.bf16.mxu0 0
        %3636 = vmatpush2.bf16.msra.mxu0 0
        %3637 = vmatprep.subr.bf16.mxu0 0
        %3638 = vmatpush2.bf16.msra.mxu0 0
        %3639 = vmatprep.mubr.bf16.mxu0 0
        %3640 = vmatmul.mubr.bf16.gmra.mxu0 %v3584
        %v3641 = vpop.f32.mrf.mxu0
        %v3642 = vadd.f32 0.0, %v3641
        %v3643 = vpop.f32.mrf.mxu0
        %v3644 = vpop.f32.mrf.mxu0
        %v3645 = vadd.f32 0.0, %v3644
        %v3646 = vpop.f32.mrf.mxu0
        %3647 = vmatprep.mubr.bf16.mxu0 0
        %3648 = vmatmul.mubr.bf16.gmra.mxu0 %v3587
        %v3649 = vpop.f32.mrf.mxu0
        %v3650 = vadd.f32 0.0, %v3649
        %v3651 = vpop.f32.mrf.mxu0
        %v3652 = vpop.f32.mrf.mxu0
        %v3653 = vadd.f32 0.0, %v3652
        %v3654 = vpop.f32.mrf.mxu0
        %3655 = vmatprep.mubr.bf16.mxu0 0
        %3656 = vmatmul.mubr.bf16.gmra.mxu0 %v3590
        %v3657 = vpop.f32.mrf.mxu0
        %v3658 = vadd.f32 0.0, %v3657
        %v3659 = vpop.f32.mrf.mxu0
        %v3660 = vpop.f32.mrf.mxu0
        %v3661 = vadd.f32 0.0, %v3660
        %v3662 = vpop.f32.mrf.mxu0
        %3663 = vmatprep.mubr.bf16.mxu0 0
        %3664 = vmatmul.mubr.bf16.gmra.mxu0 %v3593
        %v3665 = vpop.f32.mrf.mxu0
        %v3666 = vadd.f32 0.0, %v3665
        %v3667 = vpop.f32.mrf.mxu0
        %v3668 = vpop.f32.mrf.mxu0
        %v3669 = vadd.f32 0.0, %v3668
        %v3670 = vpop.f32.mrf.mxu0
        %3671 = vmatprep.mubr.bf16.mxu0 0
        %3672 = vmatmul.mubr.bf16.gmra.mxu0 %v3596
        %v3673 = vpop.f32.mrf.mxu0
        %v3674 = vadd.f32 0.0, %v3673
        %v3675 = vpop.f32.mrf.mxu0
        %v3676 = vpop.f32.mrf.mxu0
        %v3677 = vadd.f32 0.0, %v3676
        %v3678 = vpop.f32.mrf.mxu0
        %3679 = vmatprep.mubr.bf16.mxu0 0
        %3680 = vmatmul.mubr.bf16.gmra.mxu0 %v3599
        %v3681 = vpop.f32.mrf.mxu0
        %v3682 = vadd.f32 0.0, %v3681
        %v3683 = vpop.f32.mrf.mxu0
        %v3684 = vpop.f32.mrf.mxu0
        %v3685 = vadd.f32 0.0, %v3684
        %v3686 = vpop.f32.mrf.mxu0
        %3687 = vmatprep.mubr.bf16.mxu0 0
        %3688 = vmatmul.mubr.bf16.gmra.mxu0 %v3602
        %v3689 = vpop.f32.mrf.mxu0
        %v3690 = vadd.f32 0.0, %v3689
        %v3691 = vpop.f32.mrf.mxu0
        %v3692 = vpop.f32.mrf.mxu0
        %v3693 = vadd.f32 0.0, %v3692
        %v3694 = vpop.f32.mrf.mxu0
        %3695 = vmatprep.mubr.bf16.mxu0 0
        %3696 = vmatmul.mubr.bf16.gmra.mxu0 %v3605
        %v3697 = vpop.f32.mrf.mxu0
        %v3698 = vadd.f32 0.0, %v3697
        %v3699 = vpop.f32.mrf.mxu0
        %v3700 = vpop.f32.mrf.mxu0
        %v3701 = vadd.f32 0.0, %v3700
        %v3702 = vpop.f32.mrf.mxu0
        %3703 = vdwg.mxu0
        %v3704 = vadd.f32 %v3414, %v3642
        %v3705 = vadd.f32 %v3415, %v3645
        %v3706 = vadd.f32 %v3416, %v3650
        %v3707 = vadd.f32 %v3417, %v3653
        %v3708 = vadd.f32 %v3418, %v3658
        %v3709 = vadd.f32 %v3419, %v3661
        %v3710 = vadd.f32 %v3420, %v3666
        %v3711 = vadd.f32 %v3421, %v3669
        %v3712 = vadd.f32 %v3422, %v3674
        %v3713 = vadd.f32 %v3423, %v3677
        %v3714 = vadd.f32 %v3424, %v3682
        %v3715 = vadd.f32 %v3425, %v3685
        %v3716 = vadd.f32 %v3426, %v3690
        %v3717 = vadd.f32 %v3427, %v3693
        %v3718 = vadd.f32 %v3428, %v3698
        %v3719 = vadd.f32 %v3429, %v3701
        %v3720 = vld [vmem:[%s4] sm:$0x1]
        %v3722 = vlaneseq
        %v3723 = vshrl.u32 %v3722, 7
        %v3724 = vsub.s32 0, %v3723
        %v3725 = vrot.slane %v3720, %v3724
        %v3727 = vadd.f32 %v3704, %v3725
        %v3728 = vadd.f32 %v3705, %v3725
        %v3729 = vadd.f32 %v3706, %v3725
        %v3730 = vadd.f32 %v3707, %v3725
        %v3731 = vadd.f32 %v3708, %v3725
        %v3732 = vadd.f32 %v3709, %v3725
        %v3733 = vadd.f32 %v3710, %v3725
        %v3734 = vadd.f32 %v3711, %v3725
        %v3735 = vadd.f32 %v3712, %v3725
        %v3736 = vadd.f32 %v3713, %v3725
        %v3737 = vadd.f32 %v3714, %v3725
        %v3738 = vadd.f32 %v3715, %v3725
        %v3739 = vadd.f32 %v3716, %v3725
        %v3740 = vadd.f32 %v3717, %v3725
        %v3741 = vadd.f32 %v3718, %v3725
        %v3742 = vadd.f32 %v3719, %v3725
        %v3743 = vmax.f32 %v3727, 0.0
        %v3744 = vmax.f32 %v3728, 0.0
        %v3745 = vmax.f32 %v3729, 0.0
        %v3746 = vmax.f32 %v3730, 0.0
        %v3747 = vmax.f32 %v3731, 0.0
        %v3748 = vmax.f32 %v3732, 0.0
        %v3749 = vmax.f32 %v3733, 0.0
        %v3750 = vmax.f32 %v3734, 0.0
        %v3751 = vmax.f32 %v3735, 0.0
        %v3752 = vmax.f32 %v3736, 0.0
        %v3753 = vmax.f32 %v3737, 0.0
        %v3754 = vmax.f32 %v3738, 0.0
        %v3755 = vmax.f32 %v3739, 0.0
        %v3756 = vmax.f32 %v3740, 0.0
        %v3757 = vmax.f32 %v3741, 0.0
        %v3758 = vmax.f32 %v3742, 0.0
        %v3759 = vpack.c.bf16 %v3744, %v3743
        %v3760 = vpack.c.bf16 %v3746, %v3745
        %v3761 = vpack.c.bf16 %v3748, %v3747
        %v3762 = vpack.c.bf16 %v3750, %v3749
        %v3763 = vpack.c.bf16 %v3752, %v3751
        %v3764 = vpack.c.bf16 %v3754, %v3753
        %v3765 = vpack.c.bf16 %v3756, %v3755
        %v3766 = vpack.c.bf16 %v3758, %v3757
        %v3767 = vld [vmem:[%s5] sm:$0xf]
        %v3768 = vld [vmem:[%s5 + $0x4] sm:$0xf]
        %v3769 = vld [vmem:[%s5 + $0x8] sm:$0xf]
        %v3770 = vld [vmem:[%s5 + $0xc] sm:$0xf]
        %v3771 = vld [vmem:[%s278] sm:$0xff]
        %v3772 = vld [vmem:[%s278 + $0x8] sm:$0xff]
        %v3773 = vld [vmem:[%s278 + $0x10] sm:$0xff]
        %v3774 = vld [vmem:[%s278 + $0x18] sm:$0xff]
        %v3775 = vld [vmem:[%s278 + $0x20] sm:$0xff]
        %v3776 = vld [vmem:[%s278 + $0x28] sm:$0xff]
        %v3777 = vld [vmem:[%s278 + $0x30] sm:$0xff]
        %v3778 = vld [vmem:[%s278 + $0x38] sm:$0xff]
        %v3779 = vld [vmem:[%s278 + $0x40] sm:$0xff]
        %v3780 = vld [vmem:[%s278 + $0x48] sm:$0xff]
        %v3781 = vld [vmem:[%s278 + $0x50] sm:$0xff]
        %v3782 = vld [vmem:[%s278 + $0x58] sm:$0xff]
        %v3783 = vld [vmem:[%s278 + $0x60] sm:$0xff]
        %v3784 = vld [vmem:[%s278 + $0x68] sm:$0xff]
        %v3785 = vld [vmem:[%s278 + $0x70] sm:$0xff]
        %v3786 = vld [vmem:[%s278 + $0x78] sm:$0xff]
        %v3787 = vld [vmem:[%s6] sm:$0x1]
        %v3789 = vlaneseq
        %v3790 = vshrl.u32 %v3789, 7
        %v3791 = vsub.s32 0, %v3790
        %v3792 = vrot.slane %v3787, %v3791
        %v3798 = vunpack.c.l.b16 %v3767
        %v3799 = vunpack.c.l.b16 %v3768
        %v3800 = vunpack.c.l.b16 %v3769
        %v3801 = vunpack.c.l.b16 %v3770
        %v3802 = vpack.c.b16 %v3799, %v3798
        %v3803 = vpack.c.b16 %v3801, %v3800
        %v3807 = vsel %vm1263, %v3759, 0
        %v3810 = vsel %vm1263, %v3760, 0
        %v3813 = vsel %vm1263, %v3761, 0
        %v3816 = vsel %vm1263, %v3762, 0
        %v3819 = vsel %vm1263, %v3763, 0
        %v3822 = vsel %vm1263, %v3764, 0
        %v3825 = vsel %vm1263, %v3765, 0
        %v3828 = vsel %vm1263, %v3766, 0
        %3830 = vmatprep.subr.bf16.mxu0 0
        %3831 = vmatpush1.bf16.msra.mxu0 0
        %3832 = vmatprep.subr.bf16.mxu0 0
        %3833 = vmatpush1.bf16.msra.mxu0 0
        %3834 = vmatprep.subr.bf16.mxu0 0
        %3835 = vmatpush1.bf16.msra.mxu0 0
        %3836 = vmatprep.subr.bf16.mxu0 0
        %3837 = vmatpush1.bf16.msra.mxu0 0
        %3838 = vmatprep.subr.bf16.mxu0 0
        %3839 = vmatpush1.bf16.msra.mxu0 0
        %3840 = vmatprep.subr.bf16.mxu0 0
        %3841 = vmatpush1.bf16.msra.mxu0 0
        %3842 = vmatprep.subr.bf16.mxu0 0
        %3843 = vmatpush1.bf16.msra.mxu0 %v3803
        %3844 = vmatprep.subr.bf16.mxu0 0
        %3845 = vmatpush1.bf16.msra.mxu0 %v3802
        %3846 = vmatprep.subr.bf16.mxu0 0
        %3847 = vmatpush2.bf16.msra.mxu0 0
        %3848 = vmatprep.subr.bf16.mxu0 0
        %3849 = vmatpush2.bf16.msra.mxu0 0
        %3850 = vmatprep.subr.bf16.mxu0 0
        %3851 = vmatpush2.bf16.msra.mxu0 0
        %3852 = vmatprep.subr.bf16.mxu0 0
        %3853 = vmatpush2.bf16.msra.mxu0 0
        %3854 = vmatprep.subr.bf16.mxu0 0
        %3855 = vmatpush2.bf16.msra.mxu0 0
        %3856 = vmatprep.subr.bf16.mxu0 0
        %3857 = vmatpush2.bf16.msra.mxu0 0
        %3858 = vmatprep.subr.bf16.mxu0 0
        %3859 = vmatpush2.bf16.msra.mxu0 0
        %3860 = vmatprep.subr.bf16.mxu0 0
        %3861 = vmatpush2.bf16.msra.mxu0 0
        %3862 = vmatprep.mubr.bf16.mxu0 0
        %3863 = vmatmul.mubr.bf16.gmra.mxu0 %v3807
        %v3864 = vpop.f32.mrf.mxu0
        %v3865 = vadd.f32 %v3792, %v3864
        %v3866 = vpop.f32.mrf.mxu0
        %v3867 = vpop.f32.mrf.mxu0
        %v3868 = vadd.f32 %v3792, %v3867
        %v3869 = vpop.f32.mrf.mxu0
        %3870 = vmatprep.mubr.bf16.mxu0 0
        %3871 = vmatmul.mubr.bf16.gmra.mxu0 %v3810
        %v3872 = vpop.f32.mrf.mxu0
        %v3873 = vadd.f32 %v3792, %v3872
        %v3874 = vpop.f32.mrf.mxu0
        %v3875 = vpop.f32.mrf.mxu0
        %v3876 = vadd.f32 %v3792, %v3875
        %v3877 = vpop.f32.mrf.mxu0
        %3878 = vmatprep.mubr.bf16.mxu0 0
        %3879 = vmatmul.mubr.bf16.gmra.mxu0 %v3813
        %v3880 = vpop.f32.mrf.mxu0
        %v3881 = vadd.f32 %v3792, %v3880
        %v3882 = vpop.f32.mrf.mxu0
        %v3883 = vpop.f32.mrf.mxu0
        %v3884 = vadd.f32 %v3792, %v3883
        %v3885 = vpop.f32.mrf.mxu0
        %3886 = vmatprep.mubr.bf16.mxu0 0
        %3887 = vmatmul.mubr.bf16.gmra.mxu0 %v3816
        %v3888 = vpop.f32.mrf.mxu0
        %v3889 = vadd.f32 %v3792, %v3888
        %v3890 = vpop.f32.mrf.mxu0
        %v3891 = vpop.f32.mrf.mxu0
        %v3892 = vadd.f32 %v3792, %v3891
        %v3893 = vpop.f32.mrf.mxu0
        %3894 = vmatprep.mubr.bf16.mxu0 0
        %3895 = vmatmul.mubr.bf16.gmra.mxu0 %v3819
        %v3896 = vpop.f32.mrf.mxu0
        %v3897 = vadd.f32 %v3792, %v3896
        %v3898 = vpop.f32.mrf.mxu0
        %v3899 = vpop.f32.mrf.mxu0
        %v3900 = vadd.f32 %v3792, %v3899
        %v3901 = vpop.f32.mrf.mxu0
        %3902 = vmatprep.mubr.bf16.mxu0 0
        %3903 = vmatmul.mubr.bf16.gmra.mxu0 %v3822
        %v3904 = vpop.f32.mrf.mxu0
        %v3905 = vadd.f32 %v3792, %v3904
        %v3906 = vpop.f32.mrf.mxu0
        %v3907 = vpop.f32.mrf.mxu0
        %v3908 = vadd.f32 %v3792, %v3907
        %v3909 = vpop.f32.mrf.mxu0
        %3910 = vmatprep.mubr.bf16.mxu0 0
        %3911 = vmatmul.mubr.bf16.gmra.mxu0 %v3825
        %v3912 = vpop.f32.mrf.mxu0
        %v3913 = vadd.f32 %v3792, %v3912
        %v3914 = vpop.f32.mrf.mxu0
        %v3915 = vpop.f32.mrf.mxu0
        %v3916 = vadd.f32 %v3792, %v3915
        %v3917 = vpop.f32.mrf.mxu0
        %3918 = vmatprep.mubr.bf16.mxu0 0
        %3919 = vmatmul.mubr.bf16.gmra.mxu0 %v3828
        %v3920 = vpop.f32.mrf.mxu0
        %v3921 = vadd.f32 %v3792, %v3920
        %v3922 = vpop.f32.mrf.mxu0
        %v3923 = vpop.f32.mrf.mxu0
        %v3924 = vadd.f32 %v3792, %v3923
        %v3925 = vpop.f32.mrf.mxu0
        %3926 = vdwg.mxu0
        %v3927 = vadd.f32 %v3865, %v3771
        %v3928 = vadd.f32 %v3868, %v3772
        %v3929 = vadd.f32 %v3873, %v3773
        %v3930 = vadd.f32 %v3876, %v3774
        %v3931 = vadd.f32 %v3881, %v3775
        %v3932 = vadd.f32 %v3884, %v3776
        %v3933 = vadd.f32 %v3889, %v3777
        %v3934 = vadd.f32 %v3892, %v3778
        %v3935 = vadd.f32 %v3897, %v3779
        %v3936 = vadd.f32 %v3900, %v3780
        %v3937 = vadd.f32 %v3905, %v3781
        %v3938 = vadd.f32 %v3908, %v3782
        %v3939 = vadd.f32 %v3913, %v3783
        %v3940 = vadd.f32 %v3916, %v3784
        %v3941 = vadd.f32 %v3921, %v3785
        %v3942 = vadd.f32 %v3924, %v3786
        %v3943 = vmax.f32 %v3927, 0.0
        %v3944 = vmax.f32 %v3928, 0.0
        %v3945 = vmax.f32 %v3929, 0.0
        %v3946 = vmax.f32 %v3930, 0.0
        %v3947 = vmax.f32 %v3931, 0.0
        %v3948 = vmax.f32 %v3932, 0.0
        %v3949 = vmax.f32 %v3933, 0.0
        %v3950 = vmax.f32 %v3934, 0.0
        %v3951 = vmax.f32 %v3935, 0.0
        %v3952 = vmax.f32 %v3936, 0.0
        %v3953 = vmax.f32 %v3937, 0.0
        %v3954 = vmax.f32 %v3938, 0.0
        %v3955 = vmax.f32 %v3939, 0.0
        %v3956 = vmax.f32 %v3940, 0.0
        %v3957 = vmax.f32 %v3941, 0.0
        %v3958 = vmax.f32 %v3942, 0.0
        %3959 = vst [vmem:[%s312] sm:$0xff] %v3943
        %3960 = vst [vmem:[%s312 + $0x8] sm:$0xff] %v3944
        %3961 = vst [vmem:[%s312 + $0x10] sm:$0xff] %v3945
        %3962 = vst [vmem:[%s312 + $0x18] sm:$0xff] %v3946
        %3963 = vst [vmem:[%s312 + $0x20] sm:$0xff] %v3947
        %3964 = vst [vmem:[%s312 + $0x28] sm:$0xff] %v3948
        %3965 = vst [vmem:[%s312 + $0x30] sm:$0xff] %v3949
        %3966 = vst [vmem:[%s312 + $0x38] sm:$0xff] %v3950
        %3967 = vst [vmem:[%s312 + $0x40] sm:$0xff] %v3951
        %3968 = vst [vmem:[%s312 + $0x48] sm:$0xff] %v3952
        %3969 = vst [vmem:[%s312 + $0x50] sm:$0xff] %v3953
        %3970 = vst [vmem:[%s312 + $0x58] sm:$0xff] %v3954
        %3971 = vst [vmem:[%s312 + $0x60] sm:$0xff] %v3955
        %3972 = vst [vmem:[%s312 + $0x68] sm:$0xff] %v3956
        %3973 = vst [vmem:[%s312 + $0x70] sm:$0xff] %v3957
        %3974 = vst [vmem:[%s312 + $0x78] sm:$0xff] %v3958
        %s3975 = sand.u32 %s185, 1
        %s3976 = scalar_lea.sflag [#allocation5], %s3975
        %s3977 = sand.u32 %s185, 1
        %s3978 = smul.addr %s3977, 128
        %s3979 = scalar_lea.vmem [#allocation8], %s3978
        // Predicated region
        $region57: #{tpu_custom_call.1} parent=47 // pred_check
          %p3980 = pneg %p195
        $region58: #{tpu_custom_call.1} parent=47 // pred_check_branch
          %3982 = sbr.rel (%p3980) target = $region60
        $region59: #{tpu_custom_call.1} parent=47 // pred_region
          %s3983 = smul.u32 2, %s25
          %s3985 = ssub.s32 2048, 2048
          %3986 = vsyncadd %s3976, %s3985
          %s3987 = smul.addr %s3983, 8
          %s3988 = smul.addr %s3987, 128
          %s3989 = scalar_lea.hbm %s7, %s3988
          %s3990 = sshll.u32 %s3979, 4
          %s3991 = int_to_ptr.vmem [resolvable:$true] %s3990
          %3996 = dma.vmem_to_hbm [thread:$0]  %s3991, 2048, %s3989, %s3976, 128, 128, 8
        $region60: #{tpu_custom_call.1} parent=47 // pred_fallthru
          _
      $region48: #{tpu_custom_call.1} parent=5 // pred_fallthru
        _
      %p3997 = scmp.le.s32.totalorder 2, %s20
      // Predicated region
      $region61: #{tpu_custom_call.1} parent=5 // pred_check
        %p3998 = pneg %p3997
      $region62: #{tpu_custom_call.1} parent=5 // pred_check_branch
        %4000 = sbr.rel (%p3998) target = $region64
      $region63: #{tpu_custom_call.1} parent=5 // pred_region
        %s4001 = ssub.s32 %s20, 2
        // Predicated region
        $region65: #{tpu_custom_call.1} parent=63 // pred_check
          %p4002 = pneg %p201
        $region66: #{tpu_custom_call.1} parent=63 // pred_check_branch
          %4004 = sbr.rel (%p4002) target = $region68
        $region67: #{tpu_custom_call.1} parent=63 // pred_region
          %s4005 = sand.u32 %s186, 1
          %s4006 = scalar_lea.sflag [#allocation5], %s4005
          %s4007 = sand.u32 %s186, 1
          %s4008 = smul.addr %s4007, 128
          %s4009 = scalar_lea.vmem [#allocation8], %s4008
          %4010 = dma.done %s4006, 2048
        $region68: #{tpu_custom_call.1} parent=63 // pred_fallthru
          _
      $region64: #{tpu_custom_call.1} parent=5 // pred_fallthru
        _
    $region6: #{tpu_custom_call.1} parent=1 // loop_footer
      %s24 = sadd.s32 1, %s20
    $region7: #{tpu_custom_call.1} parent=1 // loop_footer_branch
      %19 = sbr.rel target = $region3
    $region8: #{tpu_custom_call.1} parent=1 // loop_exit
      _
    %4011 = vsyncpa [#allocation4], 1
    %s4012 = scalar_lea.sflag [#allocation4], 1
    %4013 = vsyncpa %s4012, 1
    %4014 = vsyncpa [#allocation7], 1
    %4015 = vsyncpa [#allocation5], 1
    %s4016 = scalar_lea.sflag [#allocation5], 1
    %4017 = vsyncpa %s4016, 1

</llo_original>
